<compile_context>
chip_gen: v7x
topology: tpu7x:2x2x1
jax: 0.10.0
libtpu: 0.0.40
codegen_flags: <defaults>
</compile_context>

<pallas_src>
import functools

import jax
import jax.numpy as jnp
import numpy as np
from jax.experimental import pallas as pl
from jax.experimental.pallas import tpu as pltpu


def _silu(x):
    return x * jax.nn.sigmoid(x)


# ---------------------------------------------------------------------------
# VMEM budgeting helpers (generation aware: v5e/v6e 128 MiB, v7x 64 MiB)
# ---------------------------------------------------------------------------
def _tpu_vmem_capacity():
    try:
        return int(pltpu.get_tpu_info().vmem_capacity_bytes)
    except Exception:
        return 64 * 1024 * 1024          # conservative (v7x) default


def _vmem_limit_bytes():
    cap = _tpu_vmem_capacity()
    return int(min(cap * 3 // 4, 96 * 1024 * 1024))


def _choose_spatial_tile(hw, cin, cout, dtype_bytes, batch):
    """Largest multiple-of-128 tile dividing hw whose working set (double-buffered
    in/out blocks + resident weight + in-kernel f32 intermediate) fits the budget."""
    if hw % 128 != 0:
        return hw                                     # single full-extent block
    cap = _tpu_vmem_capacity()
    budget = min(cap // 2, 48 * 1024 * 1024)          # ~32 MiB on v7x, 48 MiB on v5e/v6e
    weight_bytes = 2 * cout * cin * dtype_bytes       # double-buffered weight block
    per_lane = 2 * (cin + cout) * dtype_bytes + cout * 4
    max_tile = max(128, (budget - weight_bytes) // max(per_lane, 1))
    tile = 128
    t = 256
    while t <= hw and t <= max_tile:
        if hw % t == 0:
            tile = t
        t += 128
    # keep >= 2 parallel grid steps so both TensorCores (v7x) / megacore get work
    if batch == 1 and tile == hw and (hw // 2) % 128 == 0:
        tile = hw // 2
    return tile


# ---------------------------------------------------------------------------
# Kernel 1: fused 1x1 conv (+ folded BN bias) (+ SiLU), lane-dense spatial
# ---------------------------------------------------------------------------
def _pointwise_kernel(x_ref, w_ref, b_ref, o_ref, *, apply_act, use_dot):
    # x_ref: (Cin, T)   w_ref: (Cout, Cin)   b_ref: (Cout, 1)   o_ref: (Cout, T)
    if use_dot:
        # MXU path; let the MXU do native-dtype multiply, f32 accumulate.
        y = jnp.dot(w_ref[...], x_ref[...], preferred_element_type=jnp.float32)
    else:
        # Tiny channel counts: VPU broadcast-accumulate (avoids degenerate matmuls).
        x = x_ref[...].astype(jnp.float32)
        w = w_ref[...].astype(jnp.float32)
        cout, cin = w_ref.shape
        y = jnp.zeros((cout, x_ref.shape[-1]), jnp.float32)
        for ci in range(cin):
            y = y + w[:, ci:ci + 1] * x[ci:ci + 1, :]
    y = y + b_ref[...].astype(jnp.float32)
    if apply_act:
        y = _silu(y)
    o_ref[...] = y.astype(o_ref.dtype)


def pointwise_conv(x, w, b, act=True):
    """1x1 conv with folded BN (+ SiLU). x: (B, Cin, H, W) -> (B, Cout, H, W)."""
    bsz, cin, h, wd = x.shape
    cout = w.shape[0]
    hw = h * wd
    x2 = x.reshape(bsz, cin, hw)                      # free NCHW view, lane-dense spatial
    b2 = b.reshape(cout, 1)

    tile = _choose_spatial_tile(hw, cin, cout, x.dtype.itemsize, bsz)
    grid = (bsz, hw // tile)
    use_dot = min(cin, cout) >= 32                    # MXU only when it is reasonably filled

    kernel = functools.partial(_pointwise_kernel, apply_act=act, use_dot=use_dot)
    out = pl.pallas_call(
        kernel,
        out_shape=jax.ShapeDtypeStruct((bsz, cout, hw), x.dtype),
        grid=grid,
        in_specs=[
            pl.BlockSpec((None, cin, tile), lambda bi, ti: (bi, 0, ti)),
            pl.BlockSpec((cout, cin), lambda bi, ti: (0, 0)),
            pl.BlockSpec((cout, 1), lambda bi, ti: (0, 0)),
        ],
        out_specs=pl.BlockSpec((None, cout, tile), lambda bi, ti: (bi, 0, ti)),
        compiler_params=pltpu.CompilerParams(
            dimension_semantics=("parallel", "parallel"),
            vmem_limit_bytes=_vmem_limit_bytes()),
    )(x2, w, b2)
    return out.reshape(bsz, cout, h, wd)


# ---------------------------------------------------------------------------
# Kernel 1b: two-input 1x1 conv (split weight) -- replaces concat([y1,y2]) + cv3
# ---------------------------------------------------------------------------
def _pointwise2_kernel(x1_ref, x2_ref, w1_ref, w2_ref, b_ref, o_ref, *, apply_act, use_dot):
    if use_dot:
        y = jnp.dot(w1_ref[...], x1_ref[...], preferred_element_type=jnp.float32)
        y = y + jnp.dot(w2_ref[...], x2_ref[...], preferred_element_type=jnp.float32)
    else:
        t = x1_ref.shape[-1]
        cout = w1_ref.shape[0]
        y = jnp.zeros((cout, t), jnp.float32)
        w1 = w1_ref[...].astype(jnp.float32)
        x1 = x1_ref[...].astype(jnp.float32)
        for ci in range(w1_ref.shape[1]):
            y = y + w1[:, ci:ci + 1] * x1[ci:ci + 1, :]
        w2 = w2_ref[...].astype(jnp.float32)
        x2 = x2_ref[...].astype(jnp.float32)
        for ci in range(w2_ref.shape[1]):
            y = y + w2[:, ci:ci + 1] * x2[ci:ci + 1, :]
    y = y + b_ref[...].astype(jnp.float32)
    if apply_act:
        y = _silu(y)
    o_ref[...] = y.astype(o_ref.dtype)


def pointwise_conv_dual(x1, x2, w1, w2, b, act=True):
    """Computes (w1 @ x1 + w2 @ x2 + b) (+SiLU) == 1x1 conv of concat([x1, x2], C)."""
    bsz, ca, h, wd = x1.shape
    cb = x2.shape[1]
    cout = w1.shape[0]
    hw = h * wd
    a1 = x1.reshape(bsz, ca, hw)
    a2 = x2.reshape(bsz, cb, hw)
    b2 = b.reshape(cout, 1)

    tile = _choose_spatial_tile(hw, ca + cb, cout, x1.dtype.itemsize, bsz)
    grid = (bsz, hw // tile)
    use_dot = min(ca, cb, cout) >= 32

    kernel = functools.partial(_pointwise2_kernel, apply_act=act, use_dot=use_dot)
    out = pl.pallas_call(
        kernel,
        out_shape=jax.ShapeDtypeStruct((bsz, cout, hw), x1.dtype),
        grid=grid,
        in_specs=[
            pl.BlockSpec((None, ca, tile), lambda bi, ti: (bi, 0, ti)),
            pl.BlockSpec((None, cb, tile), lambda bi, ti: (bi, 0, ti)),
            pl.BlockSpec((cout, ca), lambda bi, ti: (0, 0)),
            pl.BlockSpec((cout, cb), lambda bi, ti: (0, 0)),
            pl.BlockSpec((cout, 1), lambda bi, ti: (0, 0)),
        ],
        out_specs=pl.BlockSpec((None, cout, tile), lambda bi, ti: (bi, 0, ti)),
        compiler_params=pltpu.CompilerParams(
            dimension_semantics=("parallel", "parallel"),
            vmem_limit_bytes=_vmem_limit_bytes()),
    )(a1, a2, w1, w2, b2)
    return out.reshape(bsz, cout, h, wd)


# ---------------------------------------------------------------------------
# Kernel 2: fused GhostConv (1x1 conv + SiLU -> 5x5 depthwise + SiLU, both concat
# halves written from one pass; optional fused residual add). One batch per step.
# ---------------------------------------------------------------------------
def _ghost_conv_kernel(x_ref, pw_w, pw_b, dw_w, dw_b, *rest, ksize, apply_act,
                       has_residual):
    # x_ref: (Cin, H, W) VMEM     pw_w: (Ch, Cin) SMEM     pw_b: (Ch,) SMEM
    # dw_w: (Ch, K*K) SMEM        dw_b: (Ch,) SMEM
    # [res_ref: (2*Ch, H, W) VMEM]  o_ref: (2*Ch, H, W) VMEM  ypad: (Ch, H+K-1, W+K-1) f32
    if has_residual:
        res_ref, o_ref, ypad = rest
    else:
        res_ref = None
        o_ref, ypad = rest
    ch, cin = pw_w.shape
    h, wd = o_ref.shape[-2], o_ref.shape[-1]
    pd = ksize // 2

    # zero-filled halo scratch (replaces the HBM pre-pad pass)
    ypad[...] = jnp.zeros_like(ypad)

    # --- pointwise half: y = SiLU(Wx + b), stored to out[:Ch] and into the halo buffer
    for co in range(ch):
        acc = jnp.zeros((h, wd), jnp.float32)
        for ci in range(cin):
            acc = acc + pw_w[co, ci] * x_ref[ci].astype(jnp.float32)
        acc = acc + pw_b[co]
        if apply_act:
            acc = _silu(acc)
        ypad[co, pd:pd + h, pd:pd + wd] = acc
        yout = acc if res_ref is None else acc + res_ref[co].astype(jnp.float32)
        o_ref[co] = yout.astype(o_ref.dtype)

    # --- depthwise half: z = SiLU(DW5x5(y) + b), stored to out[Ch:]
    for co in range(ch):
        acc = jnp.zeros((h, wd), jnp.float32)
        for di in range(ksize):
            for dj in range(ksize):
                acc = acc + ypad[co, di:di + h, dj:dj + wd] * dw_w[co, di * ksize + dj]
        acc = acc + dw_b[co]
        if apply_act:
            acc = _silu(acc)
        if res_ref is not None:
            acc = acc + res_ref[ch + co].astype(jnp.float32)
        o_ref[ch + co] = acc.astype(o_ref.dtype)


def _ghost_conv_fused_call(x, p, act, residual):
    bsz, cin, h, wd = x.shape
    ch = p["pw_w"].shape[0]
    k = p["dw_w"].shape[-1]
    pd = k // 2
    dw2 = p["dw_w"].reshape(ch, k * k)

    kernel = functools.partial(_ghost_conv_kernel, ksize=k, apply_act=act,
                               has_residual=residual is not None)
    in_specs = [
        pl.BlockSpec((None, cin, h, wd), lambda bi: (bi, 0, 0, 0)),
        pl.BlockSpec(memory_space=pltpu.MemorySpace.SMEM),   # pw_w
        pl.BlockSpec(memory_space=pltpu.MemorySpace.SMEM),   # pw_b
        pl.BlockSpec(memory_space=pltpu.MemorySpace.SMEM),   # dw_w
        pl.BlockSpec(memory_space=pltpu.MemorySpace.SMEM),   # dw_b
    ]
    args = [x, p["pw_w"], p["pw_b"], dw2, p["dw_b"]]
    if residual is not None:
        in_specs.append(pl.BlockSpec((None, 2 * ch, h, wd), lambda bi: (bi, 0, 0, 0)))
        args.append(residual)

    return pl.pallas_call(
        kernel,
        out_shape=jax.ShapeDtypeStruct((bsz, 2 * ch, h, wd), x.dtype),
        grid=(bsz,),
        in_specs=in_specs,
        out_specs=pl.BlockSpec((None, 2 * ch, h, wd), lambda bi: (bi, 0, 0, 0)),
        scratch_shapes=[pltpu.VMEM((ch, h + 2 * pd, wd + 2 * pd), jnp.float32)],
        compiler_params=pltpu.CompilerParams(
            dimension_semantics=("parallel",),
            vmem_limit_bytes=_vmem_limit_bytes()),
    )(*args)


# ---------------------------------------------------------------------------
# Fallback depthwise kernel (only for very wide channels where the fused
# GhostConv's unrolled channel loops would explode trace time).
# ---------------------------------------------------------------------------
def _depthwise_kernel(x_ref, w_ref, b_ref, o_ref, xpad_ref, *, ksize, apply_act):
    # x_ref: (H, W) plane for this (batch, channel) grid step
    c = pl.program_id(1)
    h, w = o_ref.shape
    pd = ksize // 2
    xpad_ref[...] = jnp.zeros_like(xpad_ref)
    xpad_ref[pd:pd + h, pd:pd + w] = x_ref[...].astype(jnp.float32)
    acc = jnp.zeros((h, w), jnp.float32)
    for di in range(ksize):
        for dj in range(ksize):
            acc = acc + xpad_ref[di:di + h, dj:dj + w] * w_ref[c, di * ksize + dj]
    acc = acc + b_ref[c]
    if apply_act:
        acc = _silu(acc)
    o_ref[...] = acc.astype(o_ref.dtype)


def depthwise_conv(x, w, b, act=True):
    """KxK depthwise conv (groups=C) with folded BN (+ SiLU). x: (B, C, H, W)."""
    bsz, c, h, wd = x.shape
    k = w.shape[-1]
    pd = k // 2
    w2 = w.reshape(c, k * k)
    kernel = functools.partial(_depthwise_kernel, ksize=k, apply_act=act)
    return pl.pallas_call(
        kernel,
        out_shape=jax.ShapeDtypeStruct((bsz, c, h, wd), x.dtype),
        grid=(bsz, c),
        in_specs=[
            pl.BlockSpec((None, None, h, wd), lambda bi, ci: (bi, ci, 0, 0)),
            pl.BlockSpec(memory_space=pltpu.MemorySpace.SMEM),
            pl.BlockSpec(memory_space=pltpu.MemorySpace.SMEM),
        ],
        out_specs=pl.BlockSpec((None, None, h, wd), lambda bi, ci: (bi, ci, 0, 0)),
        scratch_shapes=[pltpu.VMEM((h + 2 * pd, wd + 2 * pd), jnp.float32)],
        compiler_params=pltpu.CompilerParams(
            dimension_semantics=("parallel", "parallel"),
            vmem_limit_bytes=_vmem_limit_bytes()),
    )(x, w2, b)


# ---------------------------------------------------------------------------
# ghostC3 composition
# ---------------------------------------------------------------------------
def ghost_conv_fwd(x, p, act=True, residual=None):
    ch, cin = p["pw_w"].shape
    # fused path for the (small) hidden widths typical of GhostBottlenecks
    if ch * cin <= 4096 and ch <= 64:
        return _ghost_conv_fused_call(x, p, act, residual)
    # wide-channel fallback: separate kernels
    y = pointwise_conv(x, p["pw_w"], p["pw_b"], act=act)
    z = depthwise_conv(y, p["dw_w"], p["dw_b"], act=act)
    out = jnp.concatenate([y, z], axis=1)
    return out if residual is None else out + residual


def ghost_bottleneck_fwd(x, p):
    # stride-1 GhostBottleneck: GhostConv(act) -> GhostConv(no act) + identity,
    # with the identity shortcut folded into the second kernel's epilogue.
    y = ghost_conv_fwd(x, p["g1"], act=True)
    return ghost_conv_fwd(y, p["g2"], act=False, residual=x)


def ghost_c3_fwd(x, p):
    c_ = p["cv1_w"].shape[0]
    # cv1 + cv2 share the same input -> one kernel with channel-stacked weights
    w12 = jnp.concatenate([p["cv1_w"], p["cv2_w"]], axis=0)
    b12 = jnp.concatenate([p["cv1_b"], p["cv2_b"]], axis=0)
    y12 = pointwise_conv(x, w12, b12, act=True)
    y1 = y12[:, :c_]
    y2 = y12[:, c_:]
    for bp in p["m"]:
        y1 = ghost_bottleneck_fwd(y1, bp)
    # cv3 on concat([y1, y2]) == split-weight dual pointwise (no HBM concat)
    return pointwise_conv_dual(y1, y2, p["cv3_w"][:, :c_], p["cv3_w"][:, c_:],
                               p["cv3_b"], act=True)


# ---------------------------------------------------------------------------
# Parameter construction (Conv + BatchNorm folded, deterministic random init)
# ---------------------------------------------------------------------------
_BN_EPS = 1e-5   # nn.BatchNorm2d default


def _fold_bn(w, gamma, beta, mean, var):
    scale = gamma / jnp.sqrt(var + _BN_EPS)
    w_f = w * scale.reshape((-1,) + (1,) * (w.ndim - 1))
    b_f = beta - mean * scale
    return w_f, b_f


def _init_conv_bn(key, w_shape):
    kw, kg, kb, km, kv = jax.random.split(key, 5)
    fan_in = int(np.prod(w_shape[1:]))
    w = jax.random.normal(kw, w_shape, jnp.float32) / np.sqrt(fan_in)
    gamma = jax.random.uniform(kg, (w_shape[0],), jnp.float32, 0.5, 1.5)
    beta = 0.1 * jax.random.normal(kb, (w_shape[0],), jnp.float32)
    mean = 0.1 * jax.random.normal(km, (w_shape[0],), jnp.float32)
    var = jax.random.uniform(kv, (w_shape[0],), jnp.float32, 0.5, 1.5)
    return _fold_bn(w, gamma, beta, mean, var)


def init_ghost_conv(key, c1, c2):
    c_ = c2 // 2
    k1, k2 = jax.random.split(key)
    pw_w, pw_b = _init_conv_bn(k1, (c_, c1))        # 1x1 conv
    dw_w, dw_b = _init_conv_bn(k2, (c_, 5, 5))      # 5x5 depthwise conv
    return {"pw_w": pw_w, "pw_b": pw_b, "dw_w": dw_w, "dw_b": dw_b}


def init_ghost_bottleneck(key, c1, c2):
    c_ = c2 // 2
    k1, k2 = jax.random.split(key)
    return {"g1": init_ghost_conv(k1, c1, c_), "g2": init_ghost_conv(k2, c_, c2)}


def init_ghost_c3(key, c1, c2, n=1, e=0.5):
    c_ = int(c2 * e)
    keys = jax.random.split(key, 3 + n)
    cv1_w, cv1_b = _init_conv_bn(keys[0], (c_, c1))
    cv2_w, cv2_b = _init_conv_bn(keys[1], (c_, c1))
    cv3_w, cv3_b = _init_conv_bn(keys[2], (c2, 2 * c_))
    return {
        "cv1_w": cv1_w, "cv1_b": cv1_b,
        "cv2_w": cv2_w, "cv2_b": cv2_b,
        "cv3_w": cv3_w, "cv3_b": cv3_b,
        "m": [init_ghost_bottleneck(keys[3 + i], c_, c_) for i in range(n)],
    }


# ---------------------------------------------------------------------------
# Pure-JAX reference (independent math, same folded parameters)
# ---------------------------------------------------------------------------
def _ref_pointwise(x, w, b, act=True):
    y = jnp.einsum("oc,bchw->bohw", w, x, precision=jax.lax.Precision.HIGHEST)
    y = y + b[None, :, None, None]
    return _silu(y) if act else y


def _ref_depthwise(x, w, b, act=True):
    bsz, c, h, wd = x.shape
    k = w.shape[-1]
    p = k // 2
    xp = jnp.pad(x, ((0, 0), (0, 0), (p, p), (p, p)))
    acc = jnp.zeros(x.shape, jnp.float32)
    for di in range(k):
        for dj in range(k):
            acc = acc + xp[:, :, di:di + h, dj:dj + wd] * w[None, :, di, dj, None, None]
    y = acc + b[None, :, None, None]
    return _silu(y) if act else y


def _ref_ghost_conv(x, p, act=True):
    y = _ref_pointwise(x, p["pw_w"], p["pw_b"], act=act)
    z = _ref_depthwise(y, p["dw_w"], p["dw_b"], act=act)
    return jnp.concatenate([y, z], axis=1)


def _ref_ghost_bottleneck(x, p):
    y = _ref_ghost_conv(x, p["g1"], act=True)
    y = _ref_ghost_conv(y, p["g2"], act=False)
    return y + x


def _ref_ghost_c3(x, p):
    y1 = _ref_pointwise(x, p["cv1_w"], p["cv1_b"], act=True)
    for bp in p["m"]:
        y1 = _ref_ghost_bottleneck(y1, bp)
    y2 = _ref_pointwise(x, p["cv2_w"], p["cv2_b"], act=True)
    y = jnp.concatenate([y1, y2], axis=1)
    return _ref_pointwise(y, p["cv3_w"], p["cv3_b"], act=True)


if __name__ == "__main__":
    key = jax.random.PRNGKey(0)
    kx, kp = jax.random.split(key)

    # Small shapes consistent with ghostC3(c1=4, c2=8, n=1, e=0.5) -> hidden c_ = 4.
    batch, c1, c2, h, w = 2, 4, 8, 16, 16
    x = jax.random.normal(kx, (batch, c1, h, w), dtype=jnp.float32)
    params = init_ghost_c3(kp, c1, c2, n=1, e=0.5)

    fwd = jax.jit(ghost_c3_fwd)
    out = jax.block_until_ready(fwd(x, params))

    ref = _ref_ghost_c3(x, params)
    assert out.shape == (batch, c2, h, w), out.shape
    max_err = float(jnp.max(jnp.abs(out - ref)))
    assert jnp.allclose(out, ref, rtol=1e-3, atol=1e-3), f"max abs err {max_err}"

    print("KERNEL_OK")
</pallas_src>

<mosaic_0001>
module attributes {stable_mosaic.version = 11 : i64} {
  func.func @_pointwise_kernel(%arg0: i32, %arg1: i32, %arg2: memref<1x4x256xf32, #tpu.memory_space<vmem>>, %arg3: memref<8x4xf32, #tpu.memory_space<vmem>>, %arg4: memref<8x1xf32, #tpu.memory_space<vmem>>, %arg5: memref<1x8x256xf32, #tpu.memory_space<vmem>>) attributes {dimension_semantics = [#tpu.dimension_semantics<parallel>, #tpu.dimension_semantics<parallel>], iteration_bounds = array<i64: 2, 1>, scalar_prefetch = 0 : i64, scratch_operands = 0 : i64, tpu.core_type = #tpu.core_type<tc>, window_params = [{transform_indices = @transform_0, window_bounds = array<i64: 1, 4, 256>}, {pipeline_mode = #tpu.pipeline_mode<synchronous>, transform_indices = @transform_1, window_bounds = array<i64: 8, 4>}, {pipeline_mode = #tpu.pipeline_mode<synchronous>, transform_indices = @transform_2, window_bounds = array<i64: 8, 1>}, {transform_indices = @transform_3, window_bounds = array<i64: 1, 8, 256>}]} {
    %c0 = arith.constant 0 : index
    %c0_0 = arith.constant 0 : index
    %c0_1 = arith.constant 0 : index
    %0 = vector.load %arg2[%c0, %c0_0, %c0_1] : memref<1x4x256xf32, #tpu.memory_space<vmem>>, vector<1x4x256xf32>
    %1 = vector.shape_cast %0 : vector<1x4x256xf32> to vector<4x256xf32>
    %c0_2 = arith.constant 0 : index
    %c0_3 = arith.constant 0 : index
    %2 = vector.load %arg3[%c0_2, %c0_3] : memref<8x4xf32, #tpu.memory_space<vmem>>, vector<8x4xf32>
    %cst = arith.constant 0.000000e+00 : f32
    %3 = vector.broadcast %cst : f32 to vector<8x256xf32>
    %4 = vector.extract_strided_slice %2 {offsets = [0, 0], sizes = [8, 1], strides = [1, 1]} : vector<8x4xf32> to vector<8x1xf32>
    %5 = vector.extract_strided_slice %1 {offsets = [0, 0], sizes = [1, 256], strides = [1, 1]} : vector<4x256xf32> to vector<1x256xf32>
    %6 = vector.broadcast %4 : vector<8x1xf32> to vector<8x256xf32>
    %7 = vector.broadcast %5 : vector<1x256xf32> to vector<8x256xf32>
    %8 = arith.mulf %6, %7 : vector<8x256xf32>
    %9 = arith.addf %3, %8 : vector<8x256xf32>
    %10 = vector.extract_strided_slice %2 {offsets = [0, 1], sizes = [8, 1], strides = [1, 1]} : vector<8x4xf32> to vector<8x1xf32>
    %11 = vector.extract_strided_slice %1 {offsets = [1, 0], sizes = [1, 256], strides = [1, 1]} : vector<4x256xf32> to vector<1x256xf32>
    %12 = vector.broadcast %10 : vector<8x1xf32> to vector<8x256xf32>
    %13 = vector.broadcast %11 : vector<1x256xf32> to vector<8x256xf32>
    %14 = arith.mulf %12, %13 : vector<8x256xf32>
    %15 = arith.addf %9, %14 : vector<8x256xf32>
    %16 = vector.extract_strided_slice %2 {offsets = [0, 2], sizes = [8, 1], strides = [1, 1]} : vector<8x4xf32> to vector<8x1xf32>
    %17 = vector.extract_strided_slice %1 {offsets = [2, 0], sizes = [1, 256], strides = [1, 1]} : vector<4x256xf32> to vector<1x256xf32>
    %18 = vector.broadcast %16 : vector<8x1xf32> to vector<8x256xf32>
    %19 = vector.broadcast %17 : vector<1x256xf32> to vector<8x256xf32>
    %20 = arith.mulf %18, %19 : vector<8x256xf32>
    %21 = arith.addf %15, %20 : vector<8x256xf32>
    %22 = vector.extract_strided_slice %2 {offsets = [0, 3], sizes = [8, 1], strides = [1, 1]} : vector<8x4xf32> to vector<8x1xf32>
    %23 = vector.extract_strided_slice %1 {offsets = [3, 0], sizes = [1, 256], strides = [1, 1]} : vector<4x256xf32> to vector<1x256xf32>
    %24 = vector.broadcast %22 : vector<8x1xf32> to vector<8x256xf32>
    %25 = vector.broadcast %23 : vector<1x256xf32> to vector<8x256xf32>
    %26 = arith.mulf %24, %25 : vector<8x256xf32>
    %27 = arith.addf %21, %26 : vector<8x256xf32>
    %c0_4 = arith.constant 0 : index
    %c0_5 = arith.constant 0 : index
    %28 = vector.load %arg4[%c0_4, %c0_5] : memref<8x1xf32, #tpu.memory_space<vmem>>, vector<8x1xf32>
    %29 = vector.broadcast %28 : vector<8x1xf32> to vector<8x256xf32>
    %30 = arith.addf %27, %29 : vector<8x256xf32>
    %31 = arith.negf %30 : vector<8x256xf32>
    %32 = math.exp %31 : vector<8x256xf32>
    %cst_6 = arith.constant 1.000000e+00 : f32
    %33 = vector.broadcast %cst_6 : f32 to vector<8x256xf32>
    %34 = arith.addf %33, %32 : vector<8x256xf32>
    %35 = arith.divf %33, %34 : vector<8x256xf32>
    %36 = arith.mulf %30, %35 : vector<8x256xf32>
    %c0_7 = arith.constant 0 : index
    %c0_8 = arith.constant 0 : index
    %c0_9 = arith.constant 0 : index
    %37 = vector.load %arg5[%c0_7, %c0_8, %c0_9] : memref<1x8x256xf32, #tpu.memory_space<vmem>>, vector<1x8x256xf32>
    %38 = vector.shape_cast %37 : vector<1x8x256xf32> to vector<8x256xf32>
    %39 = vector.shape_cast %36 : vector<8x256xf32> to vector<1x8x256xf32>
    tpu.vector_store %arg5[%c0_7, %c0_8, %c0_9], %39 {strides = array<i32>} : memref<1x8x256xf32, #tpu.memory_space<vmem>>, vector<1x8x256xf32>,
    return
  }
  func.func @transform_0(%arg0: i32, %arg1: i32) -> (i32, i32, i32) {
    %c0_i32 = arith.constant 0 : i32
    %c0_i32_0 = arith.constant 0 : i32
    return %arg0, %c0_i32, %arg1 : i32, i32, i32
  }
  func.func @transform_1(%arg0: i32, %arg1: i32) -> (i32, i32) {
    %c0_i32 = arith.constant 0 : i32
    %c0_i32_0 = arith.constant 0 : i32
    %c0_i32_1 = arith.constant 0 : i32
    return %c0_i32, %c0_i32_0 : i32, i32
  }
  func.func @transform_2(%arg0: i32, %arg1: i32) -> (i32, i32) {
    %c0_i32 = arith.constant 0 : i32
    %c0_i32_0 = arith.constant 0 : i32
    %c0_i32_1 = arith.constant 0 : i32
    return %c0_i32, %c0_i32_0 : i32, i32
  }
  func.func @transform_3(%arg0: i32, %arg1: i32) -> (i32, i32, i32) {
    %c0_i32 = arith.constant 0 : i32
    %c0_i32_0 = arith.constant 0 : i32
    return %arg0, %c0_i32, %arg1 : i32, i32, i32
  }
}

module attributes {stable_mosaic.version = 11 : i64} {
  func.func @_pointwise2_kernel(%arg0: i32, %arg1: i32, %arg2: memref<1x4x256xf32, #tpu.memory_space<vmem>>, %arg3: memref<1x4x256xf32, #tpu.memory_space<vmem>>, %arg4: memref<8x4xf32, #tpu.memory_space<vmem>>, %arg5: memref<8x4xf32, #tpu.memory_space<vmem>>, %arg6: memref<8x1xf32, #tpu.memory_space<vmem>>, %arg7: memref<1x8x256xf32, #tpu.memory_space<vmem>>) attributes {dimension_semantics = [#tpu.dimension_semantics<parallel>, #tpu.dimension_semantics<parallel>], iteration_bounds = array<i64: 2, 1>, scalar_prefetch = 0 : i64, scratch_operands = 0 : i64, tpu.core_type = #tpu.core_type<tc>, window_params = [{transform_indices = @transform_0, window_bounds = array<i64: 1, 4, 256>}, {transform_indices = @transform_1, window_bounds = array<i64: 1, 4, 256>}, {pipeline_mode = #tpu.pipeline_mode<synchronous>, transform_indices = @transform_2, window_bounds = array<i64: 8, 4>}, {pipeline_mode = #tpu.pipeline_mode<synchronous>, transform_indices = @transform_3, window_bounds = array<i64: 8, 4>}, {pipeline_mode = #tpu.pipeline_mode<synchronous>, transform_indices = @transform_4, window_bounds = array<i64: 8, 1>}, {transform_indices = @transform_5, window_bounds = array<i64: 1, 8, 256>}]} {
    %cst = arith.constant 0.000000e+00 : f32
    %0 = vector.broadcast %cst : f32 to vector<8x256xf32>
    %c0 = arith.constant 0 : index
    %c0_0 = arith.constant 0 : index
    %1 = vector.load %arg4[%c0, %c0_0] : memref<8x4xf32, #tpu.memory_space<vmem>>, vector<8x4xf32>
    %c0_1 = arith.constant 0 : index
    %c0_2 = arith.constant 0 : index
    %c0_3 = arith.constant 0 : index
    %2 = vector.load %arg2[%c0_1, %c0_2, %c0_3] : memref<1x4x256xf32, #tpu.memory_space<vmem>>, vector<1x4x256xf32>
    %3 = vector.shape_cast %2 : vector<1x4x256xf32> to vector<4x256xf32>
    %4 = vector.extract_strided_slice %1 {offsets = [0, 0], sizes = [8, 1], strides = [1, 1]} : vector<8x4xf32> to vector<8x1xf32>
    %5 = vector.extract_strided_slice %3 {offsets = [0, 0], sizes = [1, 256], strides = [1, 1]} : vector<4x256xf32> to vector<1x256xf32>
    %6 = vector.broadcast %4 : vector<8x1xf32> to vector<8x256xf32>
    %7 = vector.broadcast %5 : vector<1x256xf32> to vector<8x256xf32>
    %8 = arith.mulf %6, %7 : vector<8x256xf32>
    %9 = arith.addf %0, %8 : vector<8x256xf32>
    %10 = vector.extract_strided_slice %1 {offsets = [0, 1], sizes = [8, 1], strides = [1, 1]} : vector<8x4xf32> to vector<8x1xf32>
    %11 = vector.extract_strided_slice %3 {offsets = [1, 0], sizes = [1, 256], strides = [1, 1]} : vector<4x256xf32> to vector<1x256xf32>
    %12 = vector.broadcast %10 : vector<8x1xf32> to vector<8x256xf32>
    %13 = vector.broadcast %11 : vector<1x256xf32> to vector<8x256xf32>
    %14 = arith.mulf %12, %13 : vector<8x256xf32>
    %15 = arith.addf %9, %14 : vector<8x256xf32>
    %16 = vector.extract_strided_slice %1 {offsets = [0, 2], sizes = [8, 1], strides = [1, 1]} : vector<8x4xf32> to vector<8x1xf32>
    %17 = vector.extract_strided_slice %3 {offsets = [2, 0], sizes = [1, 256], strides = [1, 1]} : vector<4x256xf32> to vector<1x256xf32>
    %18 = vector.broadcast %16 : vector<8x1xf32> to vector<8x256xf32>
    %19 = vector.broadcast %17 : vector<1x256xf32> to vector<8x256xf32>
    %20 = arith.mulf %18, %19 : vector<8x256xf32>
    %21 = arith.addf %15, %20 : vector<8x256xf32>
    %22 = vector.extract_strided_slice %1 {offsets = [0, 3], sizes = [8, 1], strides = [1, 1]} : vector<8x4xf32> to vector<8x1xf32>
    %23 = vector.extract_strided_slice %3 {offsets = [3, 0], sizes = [1, 256], strides = [1, 1]} : vector<4x256xf32> to vector<1x256xf32>
    %24 = vector.broadcast %22 : vector<8x1xf32> to vector<8x256xf32>
    %25 = vector.broadcast %23 : vector<1x256xf32> to vector<8x256xf32>
    %26 = arith.mulf %24, %25 : vector<8x256xf32>
    %27 = arith.addf %21, %26 : vector<8x256xf32>
    %c0_4 = arith.constant 0 : index
    %c0_5 = arith.constant 0 : index
    %28 = vector.load %arg5[%c0_4, %c0_5] : memref<8x4xf32, #tpu.memory_space<vmem>>, vector<8x4xf32>
    %c0_6 = arith.constant 0 : index
    %c0_7 = arith.constant 0 : index
    %c0_8 = arith.constant 0 : index
    %29 = vector.load %arg3[%c0_6, %c0_7, %c0_8] : memref<1x4x256xf32, #tpu.memory_space<vmem>>, vector<1x4x256xf32>
    %30 = vector.shape_cast %29 : vector<1x4x256xf32> to vector<4x256xf32>
    %31 = vector.extract_strided_slice %28 {offsets = [0, 0], sizes = [8, 1], strides = [1, 1]} : vector<8x4xf32> to vector<8x1xf32>
    %32 = vector.extract_strided_slice %30 {offsets = [0, 0], sizes = [1, 256], strides = [1, 1]} : vector<4x256xf32> to vector<1x256xf32>
    %33 = vector.broadcast %31 : vector<8x1xf32> to vector<8x256xf32>
    %34 = vector.broadcast %32 : vector<1x256xf32> to vector<8x256xf32>
    %35 = arith.mulf %33, %34 : vector<8x256xf32>
    %36 = arith.addf %27, %35 : vector<8x256xf32>
    %37 = vector.extract_strided_slice %28 {offsets = [0, 1], sizes = [8, 1], strides = [1, 1]} : vector<8x4xf32> to vector<8x1xf32>
    %38 = vector.extract_strided_slice %30 {offsets = [1, 0], sizes = [1, 256], strides = [1, 1]} : vector<4x256xf32> to vector<1x256xf32>
    %39 = vector.broadcast %37 : vector<8x1xf32> to vector<8x256xf32>
    %40 = vector.broadcast %38 : vector<1x256xf32> to vector<8x256xf32>
    %41 = arith.mulf %39, %40 : vector<8x256xf32>
    %42 = arith.addf %36, %41 : vector<8x256xf32>
    %43 = vector.extract_strided_slice %28 {offsets = [0, 2], sizes = [8, 1], strides = [1, 1]} : vector<8x4xf32> to vector<8x1xf32>
    %44 = vector.extract_strided_slice %30 {offsets = [2, 0], sizes = [1, 256], strides = [1, 1]} : vector<4x256xf32> to vector<1x256xf32>
    %45 = vector.broadcast %43 : vector<8x1xf32> to vector<8x256xf32>
    %46 = vector.broadcast %44 : vector<1x256xf32> to vector<8x256xf32>
    %47 = arith.mulf %45, %46 : vector<8x256xf32>
    %48 = arith.addf %42, %47 : vector<8x256xf32>
    %49 = vector.extract_strided_slice %28 {offsets = [0, 3], sizes = [8, 1], strides = [1, 1]} : vector<8x4xf32> to vector<8x1xf32>
    %50 = vector.extract_strided_slice %30 {offsets = [3, 0], sizes = [1, 256], strides = [1, 1]} : vector<4x256xf32> to vector<1x256xf32>
    %51 = vector.broadcast %49 : vector<8x1xf32> to vector<8x256xf32>
    %52 = vector.broadcast %50 : vector<1x256xf32> to vector<8x256xf32>
    %53 = arith.mulf %51, %52 : vector<8x256xf32>
    %54 = arith.addf %48, %53 : vector<8x256xf32>
    %c0_9 = arith.constant 0 : index
    %c0_10 = arith.constant 0 : index
    %55 = vector.load %arg6[%c0_9, %c0_10] : memref<8x1xf32, #tpu.memory_space<vmem>>, vector<8x1xf32>
    %56 = vector.broadcast %55 : vector<8x1xf32> to vector<8x256xf32>
    %57 = arith.addf %54, %56 : vector<8x256xf32>
    %58 = arith.negf %57 : vector<8x256xf32>
    %59 = math.exp %58 : vector<8x256xf32>
    %cst_11 = arith.constant 1.000000e+00 : f32
    %60 = vector.broadcast %cst_11 : f32 to vector<8x256xf32>
    %61 = arith.addf %60, %59 : vector<8x256xf32>
    %62 = arith.divf %60, %61 : vector<8x256xf32>
    %63 = arith.mulf %57, %62 : vector<8x256xf32>
    %c0_12 = arith.constant 0 : index
    %c0_13 = arith.constant 0 : index
    %c0_14 = arith.constant 0 : index
    %64 = vector.load %arg7[%c0_12, %c0_13, %c0_14] : memref<1x8x256xf32, #tpu.memory_space<vmem>>, vector<1x8x256xf32>
    %65 = vector.shape_cast %64 : vector<1x8x256xf32> to vector<8x256xf32>
    %66 = vector.shape_cast %63 : vector<8x256xf32> to vector<1x8x256xf32>
    tpu.vector_store %arg7[%c0_12, %c0_13, %c0_14], %66 {strides = array<i32>} : memref<1x8x256xf32, #tpu.memory_space<vmem>>, vector<1x8x256xf32>,
    return
  }
  func.func @transform_0(%arg0: i32, %arg1: i32) -> (i32, i32, i32) {
    %c0_i32 = arith.constant 0 : i32
    %c0_i32_0 = arith.constant 0 : i32
    return %arg0, %c0_i32, %arg1 : i32, i32, i32
  }
  func.func @transform_1(%arg0: i32, %arg1: i32) -> (i32, i32, i32) {
    %c0_i32 = arith.constant 0 : i32
    %c0_i32_0 = arith.constant 0 : i32
    return %arg0, %c0_i32, %arg1 : i32, i32, i32
  }
  func.func @transform_2(%arg0: i32, %arg1: i32) -> (i32, i32) {
    %c0_i32 = arith.constant 0 : i32
    %c0_i32_0 = arith.constant 0 : i32
    %c0_i32_1 = arith.constant 0 : i32
    return %c0_i32, %c0_i32_0 : i32, i32
  }
  func.func @transform_3(%arg0: i32, %arg1: i32) -> (i32, i32) {
    %c0_i32 = arith.constant 0 : i32
    %c0_i32_0 = arith.constant 0 : i32
    %c0_i32_1 = arith.constant 0 : i32
    return %c0_i32, %c0_i32_0 : i32, i32
  }
  func.func @transform_4(%arg0: i32, %arg1: i32) -> (i32, i32) {
    %c0_i32 = arith.constant 0 : i32
    %c0_i32_0 = arith.constant 0 : i32
    %c0_i32_1 = arith.constant 0 : i32
    return %c0_i32, %c0_i32_0 : i32, i32
  }
  func.func @transform_5(%arg0: i32, %arg1: i32) -> (i32, i32, i32) {
    %c0_i32 = arith.constant 0 : i32
    %c0_i32_0 = arith.constant 0 : i32
    return %arg0, %c0_i32, %arg1 : i32, i32, i32
  }
}

module attributes {stable_mosaic.version = 11 : i64} {
  func.func @_ghost_conv_kernel(%arg0: i32, %arg1: memref<1x4x16x16xf32, #tpu.memory_space<vmem>>, %arg2: memref<1x4xf32, #tpu.memory_space<smem>>, %arg3: memref<1xf32, #tpu.memory_space<smem>>, %arg4: memref<1x25xf32, #tpu.memory_space<smem>>, %arg5: memref<1xf32, #tpu.memory_space<smem>>, %arg6: memref<1x2x16x16xf32, #tpu.memory_space<vmem>>, %arg7: memref<1x20x20xf32, #tpu.memory_space<vmem>>) attributes {dimension_semantics = [#tpu.dimension_semantics<parallel>], iteration_bounds = array<i64: 2>, scalar_prefetch = 0 : i64, scratch_operands = 1 : i64, tpu.core_type = #tpu.core_type<tc>, window_params = [{transform_indices = @transform_0, window_bounds = array<i64: 1, 4, 16, 16>}, {transform_indices = @transform_1, window_bounds = array<i64: 1, 4>}, {transform_indices = @transform_2, window_bounds = array<i64: 1>}, {transform_indices = @transform_3, window_bounds = array<i64: 1, 25>}, {transform_indices = @transform_4, window_bounds = array<i64: 1>}, {transform_indices = @transform_5, window_bounds = array<i64: 1, 2, 16, 16>}]} {
    %cst = arith.constant 0.000000e+00 : f32
    %0 = vector.broadcast %cst : f32 to vector<1x20x20xf32>
    %c0 = arith.constant 0 : index
    %c0_0 = arith.constant 0 : index
    %c0_1 = arith.constant 0 : index
    %1 = vector.load %arg7[%c0, %c0_0, %c0_1] : memref<1x20x20xf32, #tpu.memory_space<vmem>>, vector<1x20x20xf32>
    tpu.vector_store %arg7[%c0, %c0_0, %c0_1], %0 {strides = array<i32>} : memref<1x20x20xf32, #tpu.memory_space<vmem>>, vector<1x20x20xf32>,
    %cst_2 = arith.constant 0.000000e+00 : f32
    %2 = vector.broadcast %cst_2 : f32 to vector<16x16xf32>
    %c0_3 = arith.constant 0 : index
    %c0_4 = arith.constant 0 : index
    %3 = memref.load %arg2[%c0_3, %c0_4] : memref<1x4xf32, #tpu.memory_space<smem>>
    %c0_5 = arith.constant 0 : index
    %c0_6 = arith.constant 0 : index
    %c0_7 = arith.constant 0 : index
    %c0_8 = arith.constant 0 : index
    %4 = vector.load %arg1[%c0_5, %c0_6, %c0_7, %c0_8] : memref<1x4x16x16xf32, #tpu.memory_space<vmem>>, vector<1x1x16x16xf32>
    %5 = vector.shape_cast %4 : vector<1x1x16x16xf32> to vector<16x16xf32>
    %6 = vector.broadcast %3 : f32 to vector<16x16xf32>
    %7 = arith.mulf %6, %5 : vector<16x16xf32>
    %8 = arith.addf %2, %7 : vector<16x16xf32>
    %c0_9 = arith.constant 0 : index
    %c1 = arith.constant 1 : index
    %9 = memref.load %arg2[%c0_9, %c1] : memref<1x4xf32, #tpu.memory_space<smem>>
    %c0_10 = arith.constant 0 : index
    %c1_11 = arith.constant 1 : index
    %c0_12 = arith.constant 0 : index
    %c0_13 = arith.constant 0 : index
    %10 = vector.load %arg1[%c0_10, %c1_11, %c0_12, %c0_13] : memref<1x4x16x16xf32, #tpu.memory_space<vmem>>, vector<1x1x16x16xf32>
    %11 = vector.shape_cast %10 : vector<1x1x16x16xf32> to vector<16x16xf32>
    %12 = vector.broadcast %9 : f32 to vector<16x16xf32>
    %13 = arith.mulf %12, %11 : vector<16x16xf32>
    %14 = arith.addf %8, %13 : vector<16x16xf32>
    %c0_14 = arith.constant 0 : index
    %c2 = arith.constant 2 : index
    %15 = memref.load %arg2[%c0_14, %c2] : memref<1x4xf32, #tpu.memory_space<smem>>
    %c0_15 = arith.constant 0 : index
    %c2_16 = arith.constant 2 : index
    %c0_17 = arith.constant 0 : index
    %c0_18 = arith.constant 0 : index
    %16 = vector.load %arg1[%c0_15, %c2_16, %c0_17, %c0_18] : memref<1x4x16x16xf32, #tpu.memory_space<vmem>>, vector<1x1x16x16xf32>
    %17 = vector.shape_cast %16 : vector<1x1x16x16xf32> to vector<16x16xf32>
    %18 = vector.broadcast %15 : f32 to vector<16x16xf32>
    %19 = arith.mulf %18, %17 : vector<16x16xf32>
    %20 = arith.addf %14, %19 : vector<16x16xf32>
    %c0_19 = arith.constant 0 : index
    %c3 = arith.constant 3 : index
    %21 = memref.load %arg2[%c0_19, %c3] : memref<1x4xf32, #tpu.memory_space<smem>>
    %c0_20 = arith.constant 0 : index
    %c3_21 = arith.constant 3 : index
    %c0_22 = arith.constant 0 : index
    %c0_23 = arith.constant 0 : index
    %22 = vector.load %arg1[%c0_20, %c3_21, %c0_22, %c0_23] : memref<1x4x16x16xf32, #tpu.memory_space<vmem>>, vector<1x1x16x16xf32>
    %23 = vector.shape_cast %22 : vector<1x1x16x16xf32> to vector<16x16xf32>
    %24 = vector.broadcast %21 : f32 to vector<16x16xf32>
    %25 = arith.mulf %24, %23 : vector<16x16xf32>
    %26 = arith.addf %20, %25 : vector<16x16xf32>
    %c0_24 = arith.constant 0 : index
    %27 = memref.load %arg3[%c0_24] : memref<1xf32, #tpu.memory_space<smem>>
    %28 = vector.broadcast %27 : f32 to vector<16x16xf32>
    %29 = arith.addf %26, %28 : vector<16x16xf32>
    %30 = arith.negf %29 : vector<16x16xf32>
    %31 = math.exp %30 : vector<16x16xf32>
    %cst_25 = arith.constant 1.000000e+00 : f32
    %32 = vector.broadcast %cst_25 : f32 to vector<16x16xf32>
    %33 = arith.addf %32, %31 : vector<16x16xf32>
    %34 = arith.divf %32, %33 : vector<16x16xf32>
    %35 = arith.mulf %29, %34 : vector<16x16xf32>
    %c0_26 = arith.constant 0 : index
    %c2_27 = arith.constant 2 : index
    %c2_28 = arith.constant 2 : index
    %36 = vector.load %arg7[%c0_26, %c2_27, %c2_28] : memref<1x20x20xf32, #tpu.memory_space<vmem>>, vector<1x16x16xf32>
    %37 = vector.shape_cast %36 : vector<1x16x16xf32> to vector<16x16xf32>
    %38 = vector.shape_cast %35 : vector<16x16xf32> to vector<1x16x16xf32>
    tpu.vector_store %arg7[%c0_26, %c2_27, %c2_28], %38 {strides = array<i32>} : memref<1x20x20xf32, #tpu.memory_space<vmem>>, vector<1x16x16xf32>,
    %c0_29 = arith.constant 0 : index
    %c0_30 = arith.constant 0 : index
    %c0_31 = arith.constant 0 : index
    %c0_32 = arith.constant 0 : index
    %39 = vector.load %arg6[%c0_29, %c0_30, %c0_31, %c0_32] : memref<1x2x16x16xf32, #tpu.memory_space<vmem>>, vector<1x1x16x16xf32>
    %40 = vector.shape_cast %39 : vector<1x1x16x16xf32> to vector<16x16xf32>
    %41 = vector.shape_cast %35 : vector<16x16xf32> to vector<1x1x16x16xf32>
    tpu.vector_store %arg6[%c0_29, %c0_30, %c0_31, %c0_32], %41 {strides = array<i32>} : memref<1x2x16x16xf32, #tpu.memory_space<vmem>>, vector<1x1x16x16xf32>,
    %cst_33 = arith.constant 0.000000e+00 : f32
    %42 = vector.broadcast %cst_33 : f32 to vector<16x16xf32>
    %c0_34 = arith.constant 0 : index
    %c0_35 = arith.constant 0 : index
    %c0_36 = arith.constant 0 : index
    %43 = vector.load %arg7[%c0_34, %c0_35, %c0_36] : memref<1x20x20xf32, #tpu.memory_space<vmem>>, vector<1x16x16xf32>
    %44 = vector.shape_cast %43 : vector<1x16x16xf32> to vector<16x16xf32>
    %c0_37 = arith.constant 0 : index
    %c0_38 = arith.constant 0 : index
    %45 = memref.load %arg4[%c0_37, %c0_38] : memref<1x25xf32, #tpu.memory_space<smem>>
    %46 = vector.broadcast %45 : f32 to vector<16x16xf32>
    %47 = arith.mulf %44, %46 : vector<16x16xf32>
    %48 = arith.addf %42, %47 : vector<16x16xf32>
    %c0_39 = arith.constant 0 : index
    %c0_40 = arith.constant 0 : index
    %c1_41 = arith.constant 1 : index
    %49 = vector.load %arg7[%c0_39, %c0_40, %c1_41] : memref<1x20x20xf32, #tpu.memory_space<vmem>>, vector<1x16x16xf32>
    %50 = vector.shape_cast %49 : vector<1x16x16xf32> to vector<16x16xf32>
    %c0_42 = arith.constant 0 : index
    %c1_43 = arith.constant 1 : index
    %51 = memref.load %arg4[%c0_42, %c1_43] : memref<1x25xf32, #tpu.memory_space<smem>>
    %52 = vector.broadcast %51 : f32 to vector<16x16xf32>
    %53 = arith.mulf %50, %52 : vector<16x16xf32>
    %54 = arith.addf %48, %53 : vector<16x16xf32>
    %c0_44 = arith.constant 0 : index
    %c0_45 = arith.constant 0 : index
    %c2_46 = arith.constant 2 : index
    %55 = vector.load %arg7[%c0_44, %c0_45, %c2_46] : memref<1x20x20xf32, #tpu.memory_space<vmem>>, vector<1x16x16xf32>
    %56 = vector.shape_cast %55 : vector<1x16x16xf32> to vector<16x16xf32>
    %c0_47 = arith.constant 0 : index
    %c2_48 = arith.constant 2 : index
    %57 = memref.load %arg4[%c0_47, %c2_48] : memref<1x25xf32, #tpu.memory_space<smem>>
    %58 = vector.broadcast %57 : f32 to vector<16x16xf32>
    %59 = arith.mulf %56, %58 : vector<16x16xf32>
    %60 = arith.addf %54, %59 : vector<16x16xf32>
    %c0_49 = arith.constant 0 : index
    %c0_50 = arith.constant 0 : index
    %c3_51 = arith.constant 3 : index
    %61 = vector.load %arg7[%c0_49, %c0_50, %c3_51] : memref<1x20x20xf32, #tpu.memory_space<vmem>>, vector<1x16x16xf32>
    %62 = vector.shape_cast %61 : vector<1x16x16xf32> to vector<16x16xf32>
    %c0_52 = arith.constant 0 : index
    %c3_53 = arith.constant 3 : index
    %63 = memref.load %arg4[%c0_52, %c3_53] : memref<1x25xf32, #tpu.memory_space<smem>>
    %64 = vector.broadcast %63 : f32 to vector<16x16xf32>
    %65 = arith.mulf %62, %64 : vector<16x16xf32>
    %66 = arith.addf %60, %65 : vector<16x16xf32>
    %c0_54 = arith.constant 0 : index
    %c0_55 = arith.constant 0 : index
    %c4 = arith.constant 4 : index
    %67 = vector.load %arg7[%c0_54, %c0_55, %c4] : memref<1x20x20xf32, #tpu.memory_space<vmem>>, vector<1x16x16xf32>
    %68 = vector.shape_cast %67 : vector<1x16x16xf32> to vector<16x16xf32>
    %c0_56 = arith.constant 0 : index
    %c4_57 = arith.constant 4 : index
    %69 = memref.load %arg4[%c0_56, %c4_57] : memref<1x25xf32, #tpu.memory_space<smem>>
    %70 = vector.broadcast %69 : f32 to vector<16x16xf32>
    %71 = arith.mulf %68, %70 : vector<16x16xf32>
    %72 = arith.addf %66, %71 : vector<16x16xf32>
    %c0_58 = arith.constant 0 : index
    %c1_59 = arith.constant 1 : index
    %c0_60 = arith.constant 0 : index
    %73 = vector.load %arg7[%c0_58, %c1_59, %c0_60] : memref<1x20x20xf32, #tpu.memory_space<vmem>>, vector<1x16x16xf32>
    %74 = vector.shape_cast %73 : vector<1x16x16xf32> to vector<16x16xf32>
    %c0_61 = arith.constant 0 : index
    %c5 = arith.constant 5 : index
    %75 = memref.load %arg4[%c0_61, %c5] : memref<1x25xf32, #tpu.memory_space<smem>>
    %76 = vector.broadcast %75 : f32 to vector<16x16xf32>
    %77 = arith.mulf %74, %76 : vector<16x16xf32>
    %78 = arith.addf %72, %77 : vector<16x16xf32>
    %c0_62 = arith.constant 0 : index
    %c1_63 = arith.constant 1 : index
    %c1_64 = arith.constant 1 : index
    %79 = vector.load %arg7[%c0_62, %c1_63, %c1_64] : memref<1x20x20xf32, #tpu.memory_space<vmem>>, vector<1x16x16xf32>
    %80 = vector.shape_cast %79 : vector<1x16x16xf32> to vector<16x16xf32>
    %c0_65 = arith.constant 0 : index
    %c6 = arith.constant 6 : index
    %81 = memref.load %arg4[%c0_65, %c6] : memref<1x25xf32, #tpu.memory_space<smem>>
    %82 = vector.broadcast %81 : f32 to vector<16x16xf32>
    %83 = arith.mulf %80, %82 : vector<16x16xf32>
    %84 = arith.addf %78, %83 : vector<16x16xf32>
    %c0_66 = arith.constant 0 : index
    %c1_67 = arith.constant 1 : index
    %c2_68 = arith.constant 2 : index
    %85 = vector.load %arg7[%c0_66, %c1_67, %c2_68] : memref<1x20x20xf32, #tpu.memory_space<vmem>>, vector<1x16x16xf32>
    %86 = vector.shape_cast %85 : vector<1x16x16xf32> to vector<16x16xf32>
    %c0_69 = arith.constant 0 : index
    %c7 = arith.constant 7 : index
    %87 = memref.load %arg4[%c0_69, %c7] : memref<1x25xf32, #tpu.memory_space<smem>>
    %88 = vector.broadcast %87 : f32 to vector<16x16xf32>
    %89 = arith.mulf %86, %88 : vector<16x16xf32>
    %90 = arith.addf %84, %89 : vector<16x16xf32>
    %c0_70 = arith.constant 0 : index
    %c1_71 = arith.constant 1 : index
    %c3_72 = arith.constant 3 : index
    %91 = vector.load %arg7[%c0_70, %c1_71, %c3_72] : memref<1x20x20xf32, #tpu.memory_space<vmem>>, vector<1x16x16xf32>
    %92 = vector.shape_cast %91 : vector<1x16x16xf32> to vector<16x16xf32>
    %c0_73 = arith.constant 0 : index
    %c8 = arith.constant 8 : index
    %93 = memref.load %arg4[%c0_73, %c8] : memref<1x25xf32, #tpu.memory_space<smem>>
    %94 = vector.broadcast %93 : f32 to vector<16x16xf32>
    %95 = arith.mulf %92, %94 : vector<16x16xf32>
    %96 = arith.addf %90, %95 : vector<16x16xf32>
    %c0_74 = arith.constant 0 : index
    %c1_75 = arith.constant 1 : index
    %c4_76 = arith.constant 4 : index
    %97 = vector.load %arg7[%c0_74, %c1_75, %c4_76] : memref<1x20x20xf32, #tpu.memory_space<vmem>>, vector<1x16x16xf32>
    %98 = vector.shape_cast %97 : vector<1x16x16xf32> to vector<16x16xf32>
    %c0_77 = arith.constant 0 : index
    %c9 = arith.constant 9 : index
    %99 = memref.load %arg4[%c0_77, %c9] : memref<1x25xf32, #tpu.memory_space<smem>>
    %100 = vector.broadcast %99 : f32 to vector<16x16xf32>
    %101 = arith.mulf %98, %100 : vector<16x16xf32>
    %102 = arith.addf %96, %101 : vector<16x16xf32>
    %c0_78 = arith.constant 0 : index
    %c2_79 = arith.constant 2 : index
    %c0_80 = arith.constant 0 : index
    %103 = vector.load %arg7[%c0_78, %c2_79, %c0_80] : memref<1x20x20xf32, #tpu.memory_space<vmem>>, vector<1x16x16xf32>
    %104 = vector.shape_cast %103 : vector<1x16x16xf32> to vector<16x16xf32>
    %c0_81 = arith.constant 0 : index
    %c10 = arith.constant 10 : index
    %105 = memref.load %arg4[%c0_81, %c10] : memref<1x25xf32, #tpu.memory_space<smem>>
    %106 = vector.broadcast %105 : f32 to vector<16x16xf32>
    %107 = arith.mulf %104, %106 : vector<16x16xf32>
    %108 = arith.addf %102, %107 : vector<16x16xf32>
    %c0_82 = arith.constant 0 : index
    %c2_83 = arith.constant 2 : index
    %c1_84 = arith.constant 1 : index
    %109 = vector.load %arg7[%c0_82, %c2_83, %c1_84] : memref<1x20x20xf32, #tpu.memory_space<vmem>>, vector<1x16x16xf32>
    %110 = vector.shape_cast %109 : vector<1x16x16xf32> to vector<16x16xf32>
    %c0_85 = arith.constant 0 : index
    %c11 = arith.constant 11 : index
    %111 = memref.load %arg4[%c0_85, %c11] : memref<1x25xf32, #tpu.memory_space<smem>>
    %112 = vector.broadcast %111 : f32 to vector<16x16xf32>
    %113 = arith.mulf %110, %112 : vector<16x16xf32>
    %114 = arith.addf %108, %113 : vector<16x16xf32>
    %c0_86 = arith.constant 0 : index
    %c2_87 = arith.constant 2 : index
    %c2_88 = arith.constant 2 : index
    %115 = vector.load %arg7[%c0_86, %c2_87, %c2_88] : memref<1x20x20xf32, #tpu.memory_space<vmem>>, vector<1x16x16xf32>
    %116 = vector.shape_cast %115 : vector<1x16x16xf32> to vector<16x16xf32>
    %c0_89 = arith.constant 0 : index
    %c12 = arith.constant 12 : index
    %117 = memref.load %arg4[%c0_89, %c12] : memref<1x25xf32, #tpu.memory_space<smem>>
    %118 = vector.broadcast %117 : f32 to vector<16x16xf32>
    %119 = arith.mulf %116, %118 : vector<16x16xf32>
    %120 = arith.addf %114, %119 : vector<16x16xf32>
    %c0_90 = arith.constant 0 : index
    %c2_91 = arith.constant 2 : index
    %c3_92 = arith.constant 3 : index
    %121 = vector.load %arg7[%c0_90, %c2_91, %c3_92] : memref<1x20x20xf32, #tpu.memory_space<vmem>>, vector<1x16x16xf32>
    %122 = vector.shape_cast %121 : vector<1x16x16xf32> to vector<16x16xf32>
    %c0_93 = arith.constant 0 : index
    %c13 = arith.constant 13 : index
    %123 = memref.load %arg4[%c0_93, %c13] : memref<1x25xf32, #tpu.memory_space<smem>>
    %124 = vector.broadcast %123 : f32 to vector<16x16xf32>
    %125 = arith.mulf %122, %124 : vector<16x16xf32>
    %126 = arith.addf %120, %125 : vector<16x16xf32>
    %c0_94 = arith.constant 0 : index
    %c2_95 = arith.constant 2 : index
    %c4_96 = arith.constant 4 : index
    %127 = vector.load %arg7[%c0_94, %c2_95, %c4_96] : memref<1x20x20xf32, #tpu.memory_space<vmem>>, vector<1x16x16xf32>
    %128 = vector.shape_cast %127 : vector<1x16x16xf32> to vector<16x16xf32>
    %c0_97 = arith.constant 0 : index
    %c14 = arith.constant 14 : index
    %129 = memref.load %arg4[%c0_97, %c14] : memref<1x25xf32, #tpu.memory_space<smem>>
    %130 = vector.broadcast %129 : f32 to vector<16x16xf32>
    %131 = arith.mulf %128, %130 : vector<16x16xf32>
    %132 = arith.addf %126, %131 : vector<16x16xf32>
    %c0_98 = arith.constant 0 : index
    %c3_99 = arith.constant 3 : index
    %c0_100 = arith.constant 0 : index
    %133 = vector.load %arg7[%c0_98, %c3_99, %c0_100] : memref<1x20x20xf32, #tpu.memory_space<vmem>>, vector<1x16x16xf32>
    %134 = vector.shape_cast %133 : vector<1x16x16xf32> to vector<16x16xf32>
    %c0_101 = arith.constant 0 : index
    %c15 = arith.constant 15 : index
    %135 = memref.load %arg4[%c0_101, %c15] : memref<1x25xf32, #tpu.memory_space<smem>>
    %136 = vector.broadcast %135 : f32 to vector<16x16xf32>
    %137 = arith.mulf %134, %136 : vector<16x16xf32>
    %138 = arith.addf %132, %137 : vector<16x16xf32>
    %c0_102 = arith.constant 0 : index
    %c3_103 = arith.constant 3 : index
    %c1_104 = arith.constant 1 : index
    %139 = vector.load %arg7[%c0_102, %c3_103, %c1_104] : memref<1x20x20xf32, #tpu.memory_space<vmem>>, vector<1x16x16xf32>
    %140 = vector.shape_cast %139 : vector<1x16x16xf32> to vector<16x16xf32>
    %c0_105 = arith.constant 0 : index
    %c16 = arith.constant 16 : index
    %141 = memref.load %arg4[%c0_105, %c16] : memref<1x25xf32, #tpu.memory_space<smem>>
    %142 = vector.broadcast %141 : f32 to vector<16x16xf32>
    %143 = arith.mulf %140, %142 : vector<16x16xf32>
    %144 = arith.addf %138, %143 : vector<16x16xf32>
    %c0_106 = arith.constant 0 : index
    %c3_107 = arith.constant 3 : index
    %c2_108 = arith.constant 2 : index
    %145 = vector.load %arg7[%c0_106, %c3_107, %c2_108] : memref<1x20x20xf32, #tpu.memory_space<vmem>>, vector<1x16x16xf32>
    %146 = vector.shape_cast %145 : vector<1x16x16xf32> to vector<16x16xf32>
    %c0_109 = arith.constant 0 : index
    %c17 = arith.constant 17 : index
    %147 = memref.load %arg4[%c0_109, %c17] : memref<1x25xf32, #tpu.memory_space<smem>>
    %148 = vector.broadcast %147 : f32 to vector<16x16xf32>
    %149 = arith.mulf %146, %148 : vector<16x16xf32>
    %150 = arith.addf %144, %149 : vector<16x16xf32>
    %c0_110 = arith.constant 0 : index
    %c3_111 = arith.constant 3 : index
    %c3_112 = arith.constant 3 : index
    %151 = vector.load %arg7[%c0_110, %c3_111, %c3_112] : memref<1x20x20xf32, #tpu.memory_space<vmem>>, vector<1x16x16xf32>
    %152 = vector.shape_cast %151 : vector<1x16x16xf32> to vector<16x16xf32>
    %c0_113 = arith.constant 0 : index
    %c18 = arith.constant 18 : index
    %153 = memref.load %arg4[%c0_113, %c18] : memref<1x25xf32, #tpu.memory_space<smem>>
    %154 = vector.broadcast %153 : f32 to vector<16x16xf32>
    %155 = arith.mulf %152, %154 : vector<16x16xf32>
    %156 = arith.addf %150, %155 : vector<16x16xf32>
    %c0_114 = arith.constant 0 : index
    %c3_115 = arith.constant 3 : index
    %c4_116 = arith.constant 4 : index
    %157 = vector.load %arg7[%c0_114, %c3_115, %c4_116] : memref<1x20x20xf32, #tpu.memory_space<vmem>>, vector<1x16x16xf32>
    %158 = vector.shape_cast %157 : vector<1x16x16xf32> to vector<16x16xf32>
    %c0_117 = arith.constant 0 : index
    %c19 = arith.constant 19 : index
    %159 = memref.load %arg4[%c0_117, %c19] : memref<1x25xf32, #tpu.memory_space<smem>>
    %160 = vector.broadcast %159 : f32 to vector<16x16xf32>
    %161 = arith.mulf %158, %160 : vector<16x16xf32>
    %162 = arith.addf %156, %161 : vector<16x16xf32>
    %c0_118 = arith.constant 0 : index
    %c4_119 = arith.constant 4 : index
    %c0_120 = arith.constant 0 : index
    %163 = vector.load %arg7[%c0_118, %c4_119, %c0_120] : memref<1x20x20xf32, #tpu.memory_space<vmem>>, vector<1x16x16xf32>
    %164 = vector.shape_cast %163 : vector<1x16x16xf32> to vector<16x16xf32>
    %c0_121 = arith.constant 0 : index
    %c20 = arith.constant 20 : index
    %165 = memref.load %arg4[%c0_121, %c20] : memref<1x25xf32, #tpu.memory_space<smem>>
    %166 = vector.broadcast %165 : f32 to vector<16x16xf32>
    %167 = arith.mulf %164, %166 : vector<16x16xf32>
    %168 = arith.addf %162, %167 : vector<16x16xf32>
    %c0_122 = arith.constant 0 : index
    %c4_123 = arith.constant 4 : index
    %c1_124 = arith.constant 1 : index
    %169 = vector.load %arg7[%c0_122, %c4_123, %c1_124] : memref<1x20x20xf32, #tpu.memory_space<vmem>>, vector<1x16x16xf32>
    %170 = vector.shape_cast %169 : vector<1x16x16xf32> to vector<16x16xf32>
    %c0_125 = arith.constant 0 : index
    %c21 = arith.constant 21 : index
    %171 = memref.load %arg4[%c0_125, %c21] : memref<1x25xf32, #tpu.memory_space<smem>>
    %172 = vector.broadcast %171 : f32 to vector<16x16xf32>
    %173 = arith.mulf %170, %172 : vector<16x16xf32>
    %174 = arith.addf %168, %173 : vector<16x16xf32>
    %c0_126 = arith.constant 0 : index
    %c4_127 = arith.constant 4 : index
    %c2_128 = arith.constant 2 : index
    %175 = vector.load %arg7[%c0_126, %c4_127, %c2_128] : memref<1x20x20xf32, #tpu.memory_space<vmem>>, vector<1x16x16xf32>
    %176 = vector.shape_cast %175 : vector<1x16x16xf32> to vector<16x16xf32>
    %c0_129 = arith.constant 0 : index
    %c22 = arith.constant 22 : index
    %177 = memref.load %arg4[%c0_129, %c22] : memref<1x25xf32, #tpu.memory_space<smem>>
    %178 = vector.broadcast %177 : f32 to vector<16x16xf32>
    %179 = arith.mulf %176, %178 : vector<16x16xf32>
    %180 = arith.addf %174, %179 : vector<16x16xf32>
    %c0_130 = arith.constant 0 : index
    %c4_131 = arith.constant 4 : index
    %c3_132 = arith.constant 3 : index
    %181 = vector.load %arg7[%c0_130, %c4_131, %c3_132] : memref<1x20x20xf32, #tpu.memory_space<vmem>>, vector<1x16x16xf32>
    %182 = vector.shape_cast %181 : vector<1x16x16xf32> to vector<16x16xf32>
    %c0_133 = arith.constant 0 : index
    %c23 = arith.constant 23 : index
    %183 = memref.load %arg4[%c0_133, %c23] : memref<1x25xf32, #tpu.memory_space<smem>>
    %184 = vector.broadcast %183 : f32 to vector<16x16xf32>
    %185 = arith.mulf %182, %184 : vector<16x16xf32>
    %186 = arith.addf %180, %185 : vector<16x16xf32>
    %c0_134 = arith.constant 0 : index
    %c4_135 = arith.constant 4 : index
    %c4_136 = arith.constant 4 : index
    %187 = vector.load %arg7[%c0_134, %c4_135, %c4_136] : memref<1x20x20xf32, #tpu.memory_space<vmem>>, vector<1x16x16xf32>
    %188 = vector.shape_cast %187 : vector<1x16x16xf32> to vector<16x16xf32>
    %c0_137 = arith.constant 0 : index
    %c24 = arith.constant 24 : index
    %189 = memref.load %arg4[%c0_137, %c24] : memref<1x25xf32, #tpu.memory_space<smem>>
    %190 = vector.broadcast %189 : f32 to vector<16x16xf32>
    %191 = arith.mulf %188, %190 : vector<16x16xf32>
    %192 = arith.addf %186, %191 : vector<16x16xf32>
    %c0_138 = arith.constant 0 : index
    %193 = memref.load %arg5[%c0_138] : memref<1xf32, #tpu.memory_space<smem>>
    %194 = vector.broadcast %193 : f32 to vector<16x16xf32>
    %195 = arith.addf %192, %194 : vector<16x16xf32>
    %196 = arith.negf %195 : vector<16x16xf32>
    %197 = math.exp %196 : vector<16x16xf32>
    %cst_139 = arith.constant 1.000000e+00 : f32
    %198 = vector.broadcast %cst_139 : f32 to vector<16x16xf32>
    %199 = arith.addf %198, %197 : vector<16x16xf32>
    %200 = arith.divf %198, %199 : vector<16x16xf32>
    %201 = arith.mulf %195, %200 : vector<16x16xf32>
    %c0_140 = arith.constant 0 : index
    %c1_141 = arith.constant 1 : index
    %c0_142 = arith.constant 0 : index
    %c0_143 = arith.constant 0 : index
    %202 = vector.load %arg6[%c0_140, %c1_141, %c0_142, %c0_143] : memref<1x2x16x16xf32, #tpu.memory_space<vmem>>, vector<1x1x16x16xf32>
    %203 = vector.shape_cast %202 : vector<1x1x16x16xf32> to vector<16x16xf32>
    %204 = vector.shape_cast %201 : vector<16x16xf32> to vector<1x1x16x16xf32>
    tpu.vector_store %arg6[%c0_140, %c1_141, %c0_142, %c0_143], %204 {strides = array<i32>} : memref<1x2x16x16xf32, #tpu.memory_space<vmem>>, vector<1x1x16x16xf32>,
    return
  }
  func.func @transform_0(%arg0: i32) -> (i32, i32, i32, i32) {
    %c0_i32 = arith.constant 0 : i32
    %c0_i32_0 = arith.constant 0 : i32
    %c0_i32_1 = arith.constant 0 : i32
    %c0_i32_2 = arith.constant 0 : i32
    return %arg0, %c0_i32, %c0_i32_0, %c0_i32_1 : i32, i32, i32, i32
  }
  func.func @transform_1(%arg0: i32) -> (i32, i32) {
    %c0_i32 = arith.constant 0 : i32
    %c0_i32_0 = arith.constant 0 : i32
    %c0_i32_1 = arith.constant 0 : i32
    return %c0_i32, %c0_i32_0 : i32, i32
  }
  func.func @transform_2(%arg0: i32) -> i32 {
    %c0_i32 = arith.constant 0 : i32
    %c0_i32_0 = arith.constant 0 : i32
    return %c0_i32 : i32
  }
  func.func @transform_3(%arg0: i32) -> (i32, i32) {
    %c0_i32 = arith.constant 0 : i32
    %c0_i32_0 = arith.constant 0 : i32
    %c0_i32_1 = arith.constant 0 : i32
    return %c0_i32, %c0_i32_0 : i32, i32
  }
  func.func @transform_4(%arg0: i32) -> i32 {
    %c0_i32 = arith.constant 0 : i32
    %c0_i32_0 = arith.constant 0 : i32
    return %c0_i32 : i32
  }
  func.func @transform_5(%arg0: i32) -> (i32, i32, i32, i32) {
    %c0_i32 = arith.constant 0 : i32
    %c0_i32_0 = arith.constant 0 : i32
    %c0_i32_1 = arith.constant 0 : i32
    %c0_i32_2 = arith.constant 0 : i32
    return %arg0, %c0_i32, %c0_i32_0, %c0_i32_1 : i32, i32, i32, i32
  }
}

module attributes {stable_mosaic.version = 11 : i64} {
  func.func @_ghost_conv_kernel(%arg0: i32, %arg1: memref<1x2x16x16xf32, #tpu.memory_space<vmem>>, %arg2: memref<2x2xf32, #tpu.memory_space<smem>>, %arg3: memref<2xf32, #tpu.memory_space<smem>>, %arg4: memref<2x25xf32, #tpu.memory_space<smem>>, %arg5: memref<2xf32, #tpu.memory_space<smem>>, %arg6: memref<1x4x16x16xf32, #tpu.memory_space<vmem>>, %arg7: memref<1x4x16x16xf32, #tpu.memory_space<vmem>>, %arg8: memref<2x20x20xf32, #tpu.memory_space<vmem>>) attributes {dimension_semantics = [#tpu.dimension_semantics<parallel>], iteration_bounds = array<i64: 2>, scalar_prefetch = 0 : i64, scratch_operands = 1 : i64, tpu.core_type = #tpu.core_type<tc>, window_params = [{transform_indices = @transform_0, window_bounds = array<i64: 1, 2, 16, 16>}, {transform_indices = @transform_1, window_bounds = array<i64: 2, 2>}, {transform_indices = @transform_2, window_bounds = array<i64: 2>}, {transform_indices = @transform_3, window_bounds = array<i64: 2, 25>}, {transform_indices = @transform_4, window_bounds = array<i64: 2>}, {transform_indices = @transform_5, window_bounds = array<i64: 1, 4, 16, 16>}, {transform_indices = @transform_6, window_bounds = array<i64: 1, 4, 16, 16>}]} {
    %cst = arith.constant 0.000000e+00 : f32
    %0 = vector.broadcast %cst : f32 to vector<2x20x20xf32>
    %c0 = arith.constant 0 : index
    %c0_0 = arith.constant 0 : index
    %c0_1 = arith.constant 0 : index
    %1 = vector.load %arg8[%c0, %c0_0, %c0_1] : memref<2x20x20xf32, #tpu.memory_space<vmem>>, vector<2x20x20xf32>
    tpu.vector_store %arg8[%c0, %c0_0, %c0_1], %0 {strides = array<i32>} : memref<2x20x20xf32, #tpu.memory_space<vmem>>, vector<2x20x20xf32>,
    %cst_2 = arith.constant 0.000000e+00 : f32
    %2 = vector.broadcast %cst_2 : f32 to vector<16x16xf32>
    %c0_3 = arith.constant 0 : index
    %c0_4 = arith.constant 0 : index
    %3 = memref.load %arg2[%c0_3, %c0_4] : memref<2x2xf32, #tpu.memory_space<smem>>
    %c0_5 = arith.constant 0 : index
    %c0_6 = arith.constant 0 : index
    %c0_7 = arith.constant 0 : index
    %c0_8 = arith.constant 0 : index
    %4 = vector.load %arg1[%c0_5, %c0_6, %c0_7, %c0_8] : memref<1x2x16x16xf32, #tpu.memory_space<vmem>>, vector<1x1x16x16xf32>
    %5 = vector.shape_cast %4 : vector<1x1x16x16xf32> to vector<16x16xf32>
    %6 = vector.broadcast %3 : f32 to vector<16x16xf32>
    %7 = arith.mulf %6, %5 : vector<16x16xf32>
    %8 = arith.addf %2, %7 : vector<16x16xf32>
    %c0_9 = arith.constant 0 : index
    %c1 = arith.constant 1 : index
    %9 = memref.load %arg2[%c0_9, %c1] : memref<2x2xf32, #tpu.memory_space<smem>>
    %c0_10 = arith.constant 0 : index
    %c1_11 = arith.constant 1 : index
    %c0_12 = arith.constant 0 : index
    %c0_13 = arith.constant 0 : index
    %10 = vector.load %arg1[%c0_10, %c1_11, %c0_12, %c0_13] : memref<1x2x16x16xf32, #tpu.memory_space<vmem>>, vector<1x1x16x16xf32>
    %11 = vector.shape_cast %10 : vector<1x1x16x16xf32> to vector<16x16xf32>
    %12 = vector.broadcast %9 : f32 to vector<16x16xf32>
    %13 = arith.mulf %12, %11 : vector<16x16xf32>
    %14 = arith.addf %8, %13 : vector<16x16xf32>
    %c0_14 = arith.constant 0 : index
    %15 = memref.load %arg3[%c0_14] : memref<2xf32, #tpu.memory_space<smem>>
    %16 = vector.broadcast %15 : f32 to vector<16x16xf32>
    %17 = arith.addf %14, %16 : vector<16x16xf32>
    %c0_15 = arith.constant 0 : index
    %c2 = arith.constant 2 : index
    %c2_16 = arith.constant 2 : index
    %18 = vector.load %arg8[%c0_15, %c2, %c2_16] : memref<2x20x20xf32, #tpu.memory_space<vmem>>, vector<1x16x16xf32>
    %19 = vector.shape_cast %18 : vector<1x16x16xf32> to vector<16x16xf32>
    %20 = vector.shape_cast %17 : vector<16x16xf32> to vector<1x16x16xf32>
    tpu.vector_store %arg8[%c0_15, %c2, %c2_16], %20 {strides = array<i32>} : memref<2x20x20xf32, #tpu.memory_space<vmem>>, vector<1x16x16xf32>,
    %c0_17 = arith.constant 0 : index
    %c0_18 = arith.constant 0 : index
    %c0_19 = arith.constant 0 : index
    %c0_20 = arith.constant 0 : index
    %21 = vector.load %arg6[%c0_17, %c0_18, %c0_19, %c0_20] : memref<1x4x16x16xf32, #tpu.memory_space<vmem>>, vector<1x1x16x16xf32>
    %22 = vector.shape_cast %21 : vector<1x1x16x16xf32> to vector<16x16xf32>
    %23 = arith.addf %17, %22 : vector<16x16xf32>
    %c0_21 = arith.constant 0 : index
    %c0_22 = arith.constant 0 : index
    %c0_23 = arith.constant 0 : index
    %c0_24 = arith.constant 0 : index
    %24 = vector.load %arg7[%c0_21, %c0_22, %c0_23, %c0_24] : memref<1x4x16x16xf32, #tpu.memory_space<vmem>>, vector<1x1x16x16xf32>
    %25 = vector.shape_cast %24 : vector<1x1x16x16xf32> to vector<16x16xf32>
    %26 = vector.shape_cast %23 : vector<16x16xf32> to vector<1x1x16x16xf32>
    tpu.vector_store %arg7[%c0_21, %c0_22, %c0_23, %c0_24], %26 {strides = array<i32>} : memref<1x4x16x16xf32, #tpu.memory_space<vmem>>, vector<1x1x16x16xf32>,
    %cst_25 = arith.constant 0.000000e+00 : f32
    %27 = vector.broadcast %cst_25 : f32 to vector<16x16xf32>
    %c1_26 = arith.constant 1 : index
    %c0_27 = arith.constant 0 : index
    %28 = memref.load %arg2[%c1_26, %c0_27] : memref<2x2xf32, #tpu.memory_space<smem>>
    %c0_28 = arith.constant 0 : index
    %c0_29 = arith.constant 0 : index
    %c0_30 = arith.constant 0 : index
    %c0_31 = arith.constant 0 : index
    %29 = vector.load %arg1[%c0_28, %c0_29, %c0_30, %c0_31] : memref<1x2x16x16xf32, #tpu.memory_space<vmem>>, vector<1x1x16x16xf32>
    %30 = vector.shape_cast %29 : vector<1x1x16x16xf32> to vector<16x16xf32>
    %31 = vector.broadcast %28 : f32 to vector<16x16xf32>
    %32 = arith.mulf %31, %30 : vector<16x16xf32>
    %33 = arith.addf %27, %32 : vector<16x16xf32>
    %c1_32 = arith.constant 1 : index
    %c1_33 = arith.constant 1 : index
    %34 = memref.load %arg2[%c1_32, %c1_33] : memref<2x2xf32, #tpu.memory_space<smem>>
    %c0_34 = arith.constant 0 : index
    %c1_35 = arith.constant 1 : index
    %c0_36 = arith.constant 0 : index
    %c0_37 = arith.constant 0 : index
    %35 = vector.load %arg1[%c0_34, %c1_35, %c0_36, %c0_37] : memref<1x2x16x16xf32, #tpu.memory_space<vmem>>, vector<1x1x16x16xf32>
    %36 = vector.shape_cast %35 : vector<1x1x16x16xf32> to vector<16x16xf32>
    %37 = vector.broadcast %34 : f32 to vector<16x16xf32>
    %38 = arith.mulf %37, %36 : vector<16x16xf32>
    %39 = arith.addf %33, %38 : vector<16x16xf32>
    %c1_38 = arith.constant 1 : index
    %40 = memref.load %arg3[%c1_38] : memref<2xf32, #tpu.memory_space<smem>>
    %41 = vector.broadcast %40 : f32 to vector<16x16xf32>
    %42 = arith.addf %39, %41 : vector<16x16xf32>
    %c1_39 = arith.constant 1 : index
    %c2_40 = arith.constant 2 : index
    %c2_41 = arith.constant 2 : index
    %43 = vector.load %arg8[%c1_39, %c2_40, %c2_41] : memref<2x20x20xf32, #tpu.memory_space<vmem>>, vector<1x16x16xf32>
    %44 = vector.shape_cast %43 : vector<1x16x16xf32> to vector<16x16xf32>
    %45 = vector.shape_cast %42 : vector<16x16xf32> to vector<1x16x16xf32>
    tpu.vector_store %arg8[%c1_39, %c2_40, %c2_41], %45 {strides = array<i32>} : memref<2x20x20xf32, #tpu.memory_space<vmem>>, vector<1x16x16xf32>,
    %c0_42 = arith.constant 0 : index
    %c1_43 = arith.constant 1 : index
    %c0_44 = arith.constant 0 : index
    %c0_45 = arith.constant 0 : index
    %46 = vector.load %arg6[%c0_42, %c1_43, %c0_44, %c0_45] : memref<1x4x16x16xf32, #tpu.memory_space<vmem>>, vector<1x1x16x16xf32>
    %47 = vector.shape_cast %46 : vector<1x1x16x16xf32> to vector<16x16xf32>
    %48 = arith.addf %42, %47 : vector<16x16xf32>
    %c0_46 = arith.constant 0 : index
    %c1_47 = arith.constant 1 : index
    %c0_48 = arith.constant 0 : index
    %c0_49 = arith.constant 0 : index
    %49 = vector.load %arg7[%c0_46, %c1_47, %c0_48, %c0_49] : memref<1x4x16x16xf32, #tpu.memory_space<vmem>>, vector<1x1x16x16xf32>
    %50 = vector.shape_cast %49 : vector<1x1x16x16xf32> to vector<16x16xf32>
    %51 = vector.shape_cast %48 : vector<16x16xf32> to vector<1x1x16x16xf32>
    tpu.vector_store %arg7[%c0_46, %c1_47, %c0_48, %c0_49], %51 {strides = array<i32>} : memref<1x4x16x16xf32, #tpu.memory_space<vmem>>, vector<1x1x16x16xf32>,
    %cst_50 = arith.constant 0.000000e+00 : f32
    %52 = vector.broadcast %cst_50 : f32 to vector<16x16xf32>
    %c0_51 = arith.constant 0 : index
    %c0_52 = arith.constant 0 : index
    %c0_53 = arith.constant 0 : index
    %53 = vector.load %arg8[%c0_51, %c0_52, %c0_53] : memref<2x20x20xf32, #tpu.memory_space<vmem>>, vector<1x16x16xf32>
    %54 = vector.shape_cast %53 : vector<1x16x16xf32> to vector<16x16xf32>
    %c0_54 = arith.constant 0 : index
    %c0_55 = arith.constant 0 : index
    %55 = memref.load %arg4[%c0_54, %c0_55] : memref<2x25xf32, #tpu.memory_space<smem>>
    %56 = vector.broadcast %55 : f32 to vector<16x16xf32>
    %57 = arith.mulf %54, %56 : vector<16x16xf32>
    %58 = arith.addf %52, %57 : vector<16x16xf32>
    %c0_56 = arith.constant 0 : index
    %c0_57 = arith.constant 0 : index
    %c1_58 = arith.constant 1 : index
    %59 = vector.load %arg8[%c0_56, %c0_57, %c1_58] : memref<2x20x20xf32, #tpu.memory_space<vmem>>, vector<1x16x16xf32>
    %60 = vector.shape_cast %59 : vector<1x16x16xf32> to vector<16x16xf32>
    %c0_59 = arith.constant 0 : index
    %c1_60 = arith.constant 1 : index
    %61 = memref.load %arg4[%c0_59, %c1_60] : memref<2x25xf32, #tpu.memory_space<smem>>
    %62 = vector.broadcast %61 : f32 to vector<16x16xf32>
    %63 = arith.mulf %60, %62 : vector<16x16xf32>
    %64 = arith.addf %58, %63 : vector<16x16xf32>
    %c0_61 = arith.constant 0 : index
    %c0_62 = arith.constant 0 : index
    %c2_63 = arith.constant 2 : index
    %65 = vector.load %arg8[%c0_61, %c0_62, %c2_63] : memref<2x20x20xf32, #tpu.memory_space<vmem>>, vector<1x16x16xf32>
    %66 = vector.shape_cast %65 : vector<1x16x16xf32> to vector<16x16xf32>
    %c0_64 = arith.constant 0 : index
    %c2_65 = arith.constant 2 : index
    %67 = memref.load %arg4[%c0_64, %c2_65] : memref<2x25xf32, #tpu.memory_space<smem>>
    %68 = vector.broadcast %67 : f32 to vector<16x16xf32>
    %69 = arith.mulf %66, %68 : vector<16x16xf32>
    %70 = arith.addf %64, %69 : vector<16x16xf32>
    %c0_66 = arith.constant 0 : index
    %c0_67 = arith.constant 0 : index
    %c3 = arith.constant 3 : index
    %71 = vector.load %arg8[%c0_66, %c0_67, %c3] : memref<2x20x20xf32, #tpu.memory_space<vmem>>, vector<1x16x16xf32>
    %72 = vector.shape_cast %71 : vector<1x16x16xf32> to vector<16x16xf32>
    %c0_68 = arith.constant 0 : index
    %c3_69 = arith.constant 3 : index
    %73 = memref.load %arg4[%c0_68, %c3_69] : memref<2x25xf32, #tpu.memory_space<smem>>
    %74 = vector.broadcast %73 : f32 to vector<16x16xf32>
    %75 = arith.mulf %72, %74 : vector<16x16xf32>
    %76 = arith.addf %70, %75 : vector<16x16xf32>
    %c0_70 = arith.constant 0 : index
    %c0_71 = arith.constant 0 : index
    %c4 = arith.constant 4 : index
    %77 = vector.load %arg8[%c0_70, %c0_71, %c4] : memref<2x20x20xf32, #tpu.memory_space<vmem>>, vector<1x16x16xf32>
    %78 = vector.shape_cast %77 : vector<1x16x16xf32> to vector<16x16xf32>
    %c0_72 = arith.constant 0 : index
    %c4_73 = arith.constant 4 : index
    %79 = memref.load %arg4[%c0_72, %c4_73] : memref<2x25xf32, #tpu.memory_space<smem>>
    %80 = vector.broadcast %79 : f32 to vector<16x16xf32>
    %81 = arith.mulf %78, %80 : vector<16x16xf32>
    %82 = arith.addf %76, %81 : vector<16x16xf32>
    %c0_74 = arith.constant 0 : index
    %c1_75 = arith.constant 1 : index
    %c0_76 = arith.constant 0 : index
    %83 = vector.load %arg8[%c0_74, %c1_75, %c0_76] : memref<2x20x20xf32, #tpu.memory_space<vmem>>, vector<1x16x16xf32>
    %84 = vector.shape_cast %83 : vector<1x16x16xf32> to vector<16x16xf32>
    %c0_77 = arith.constant 0 : index
    %c5 = arith.constant 5 : index
    %85 = memref.load %arg4[%c0_77, %c5] : memref<2x25xf32, #tpu.memory_space<smem>>
    %86 = vector.broadcast %85 : f32 to vector<16x16xf32>
    %87 = arith.mulf %84, %86 : vector<16x16xf32>
    %88 = arith.addf %82, %87 : vector<16x16xf32>
    %c0_78 = arith.constant 0 : index
    %c1_79 = arith.constant 1 : index
    %c1_80 = arith.constant 1 : index
    %89 = vector.load %arg8[%c0_78, %c1_79, %c1_80] : memref<2x20x20xf32, #tpu.memory_space<vmem>>, vector<1x16x16xf32>
    %90 = vector.shape_cast %89 : vector<1x16x16xf32> to vector<16x16xf32>
    %c0_81 = arith.constant 0 : index
    %c6 = arith.constant 6 : index
    %91 = memref.load %arg4[%c0_81, %c6] : memref<2x25xf32, #tpu.memory_space<smem>>
    %92 = vector.broadcast %91 : f32 to vector<16x16xf32>
    %93 = arith.mulf %90, %92 : vector<16x16xf32>
    %94 = arith.addf %88, %93 : vector<16x16xf32>
    %c0_82 = arith.constant 0 : index
    %c1_83 = arith.constant 1 : index
    %c2_84 = arith.constant 2 : index
    %95 = vector.load %arg8[%c0_82, %c1_83, %c2_84] : memref<2x20x20xf32, #tpu.memory_space<vmem>>, vector<1x16x16xf32>
    %96 = vector.shape_cast %95 : vector<1x16x16xf32> to vector<16x16xf32>
    %c0_85 = arith.constant 0 : index
    %c7 = arith.constant 7 : index
    %97 = memref.load %arg4[%c0_85, %c7] : memref<2x25xf32, #tpu.memory_space<smem>>
    %98 = vector.broadcast %97 : f32 to vector<16x16xf32>
    %99 = arith.mulf %96, %98 : vector<16x16xf32>
    %100 = arith.addf %94, %99 : vector<16x16xf32>
    %c0_86 = arith.constant 0 : index
    %c1_87 = arith.constant 1 : index
    %c3_88 = arith.constant 3 : index
    %101 = vector.load %arg8[%c0_86, %c1_87, %c3_88] : memref<2x20x20xf32, #tpu.memory_space<vmem>>, vector<1x16x16xf32>
    %102 = vector.shape_cast %101 : vector<1x16x16xf32> to vector<16x16xf32>
    %c0_89 = arith.constant 0 : index
    %c8 = arith.constant 8 : index
    %103 = memref.load %arg4[%c0_89, %c8] : memref<2x25xf32, #tpu.memory_space<smem>>
    %104 = vector.broadcast %103 : f32 to vector<16x16xf32>
    %105 = arith.mulf %102, %104 : vector<16x16xf32>
    %106 = arith.addf %100, %105 : vector<16x16xf32>
    %c0_90 = arith.constant 0 : index
    %c1_91 = arith.constant 1 : index
    %c4_92 = arith.constant 4 : index
    %107 = vector.load %arg8[%c0_90, %c1_91, %c4_92] : memref<2x20x20xf32, #tpu.memory_space<vmem>>, vector<1x16x16xf32>
    %108 = vector.shape_cast %107 : vector<1x16x16xf32> to vector<16x16xf32>
    %c0_93 = arith.constant 0 : index
    %c9 = arith.constant 9 : index
    %109 = memref.load %arg4[%c0_93, %c9] : memref<2x25xf32, #tpu.memory_space<smem>>
    %110 = vector.broadcast %109 : f32 to vector<16x16xf32>
    %111 = arith.mulf %108, %110 : vector<16x16xf32>
    %112 = arith.addf %106, %111 : vector<16x16xf32>
    %c0_94 = arith.constant 0 : index
    %c2_95 = arith.constant 2 : index
    %c0_96 = arith.constant 0 : index
    %113 = vector.load %arg8[%c0_94, %c2_95, %c0_96] : memref<2x20x20xf32, #tpu.memory_space<vmem>>, vector<1x16x16xf32>
    %114 = vector.shape_cast %113 : vector<1x16x16xf32> to vector<16x16xf32>
    %c0_97 = arith.constant 0 : index
    %c10 = arith.constant 10 : index
    %115 = memref.load %arg4[%c0_97, %c10] : memref<2x25xf32, #tpu.memory_space<smem>>
    %116 = vector.broadcast %115 : f32 to vector<16x16xf32>
    %117 = arith.mulf %114, %116 : vector<16x16xf32>
    %118 = arith.addf %112, %117 : vector<16x16xf32>
    %c0_98 = arith.constant 0 : index
    %c2_99 = arith.constant 2 : index
    %c1_100 = arith.constant 1 : index
    %119 = vector.load %arg8[%c0_98, %c2_99, %c1_100] : memref<2x20x20xf32, #tpu.memory_space<vmem>>, vector<1x16x16xf32>
    %120 = vector.shape_cast %119 : vector<1x16x16xf32> to vector<16x16xf32>
    %c0_101 = arith.constant 0 : index
    %c11 = arith.constant 11 : index
    %121 = memref.load %arg4[%c0_101, %c11] : memref<2x25xf32, #tpu.memory_space<smem>>
    %122 = vector.broadcast %121 : f32 to vector<16x16xf32>
    %123 = arith.mulf %120, %122 : vector<16x16xf32>
    %124 = arith.addf %118, %123 : vector<16x16xf32>
    %c0_102 = arith.constant 0 : index
    %c2_103 = arith.constant 2 : index
    %c2_104 = arith.constant 2 : index
    %125 = vector.load %arg8[%c0_102, %c2_103, %c2_104] : memref<2x20x20xf32, #tpu.memory_space<vmem>>, vector<1x16x16xf32>
    %126 = vector.shape_cast %125 : vector<1x16x16xf32> to vector<16x16xf32>
    %c0_105 = arith.constant 0 : index
    %c12 = arith.constant 12 : index
    %127 = memref.load %arg4[%c0_105, %c12] : memref<2x25xf32, #tpu.memory_space<smem>>
    %128 = vector.broadcast %127 : f32 to vector<16x16xf32>
    %129 = arith.mulf %126, %128 : vector<16x16xf32>
    %130 = arith.addf %124, %129 : vector<16x16xf32>
    %c0_106 = arith.constant 0 : index
    %c2_107 = arith.constant 2 : index
    %c3_108 = arith.constant 3 : index
    %131 = vector.load %arg8[%c0_106, %c2_107, %c3_108] : memref<2x20x20xf32, #tpu.memory_space<vmem>>, vector<1x16x16xf32>
    %132 = vector.shape_cast %131 : vector<1x16x16xf32> to vector<16x16xf32>
    %c0_109 = arith.constant 0 : index
    %c13 = arith.constant 13 : index
    %133 = memref.load %arg4[%c0_109, %c13] : memref<2x25xf32, #tpu.memory_space<smem>>
    %134 = vector.broadcast %133 : f32 to vector<16x16xf32>
    %135 = arith.mulf %132, %134 : vector<16x16xf32>
    %136 = arith.addf %130, %135 : vector<16x16xf32>
    %c0_110 = arith.constant 0 : index
    %c2_111 = arith.constant 2 : index
    %c4_112 = arith.constant 4 : index
    %137 = vector.load %arg8[%c0_110, %c2_111, %c4_112] : memref<2x20x20xf32, #tpu.memory_space<vmem>>, vector<1x16x16xf32>
    %138 = vector.shape_cast %137 : vector<1x16x16xf32> to vector<16x16xf32>
    %c0_113 = arith.constant 0 : index
    %c14 = arith.constant 14 : index
    %139 = memref.load %arg4[%c0_113, %c14] : memref<2x25xf32, #tpu.memory_space<smem>>
    %140 = vector.broadcast %139 : f32 to vector<16x16xf32>
    %141 = arith.mulf %138, %140 : vector<16x16xf32>
    %142 = arith.addf %136, %141 : vector<16x16xf32>
    %c0_114 = arith.constant 0 : index
    %c3_115 = arith.constant 3 : index
    %c0_116 = arith.constant 0 : index
    %143 = vector.load %arg8[%c0_114, %c3_115, %c0_116] : memref<2x20x20xf32, #tpu.memory_space<vmem>>, vector<1x16x16xf32>
    %144 = vector.shape_cast %143 : vector<1x16x16xf32> to vector<16x16xf32>
    %c0_117 = arith.constant 0 : index
    %c15 = arith.constant 15 : index
    %145 = memref.load %arg4[%c0_117, %c15] : memref<2x25xf32, #tpu.memory_space<smem>>
    %146 = vector.broadcast %145 : f32 to vector<16x16xf32>
    %147 = arith.mulf %144, %146 : vector<16x16xf32>
    %148 = arith.addf %142, %147 : vector<16x16xf32>
    %c0_118 = arith.constant 0 : index
    %c3_119 = arith.constant 3 : index
    %c1_120 = arith.constant 1 : index
    %149 = vector.load %arg8[%c0_118, %c3_119, %c1_120] : memref<2x20x20xf32, #tpu.memory_space<vmem>>, vector<1x16x16xf32>
    %150 = vector.shape_cast %149 : vector<1x16x16xf32> to vector<16x16xf32>
    %c0_121 = arith.constant 0 : index
    %c16 = arith.constant 16 : index
    %151 = memref.load %arg4[%c0_121, %c16] : memref<2x25xf32, #tpu.memory_space<smem>>
    %152 = vector.broadcast %151 : f32 to vector<16x16xf32>
    %153 = arith.mulf %150, %152 : vector<16x16xf32>
    %154 = arith.addf %148, %153 : vector<16x16xf32>
    %c0_122 = arith.constant 0 : index
    %c3_123 = arith.constant 3 : index
    %c2_124 = arith.constant 2 : index
    %155 = vector.load %arg8[%c0_122, %c3_123, %c2_124] : memref<2x20x20xf32, #tpu.memory_space<vmem>>, vector<1x16x16xf32>
    %156 = vector.shape_cast %155 : vector<1x16x16xf32> to vector<16x16xf32>
    %c0_125 = arith.constant 0 : index
    %c17 = arith.constant 17 : index
    %157 = memref.load %arg4[%c0_125, %c17] : memref<2x25xf32, #tpu.memory_space<smem>>
    %158 = vector.broadcast %157 : f32 to vector<16x16xf32>
    %159 = arith.mulf %156, %158 : vector<16x16xf32>
    %160 = arith.addf %154, %159 : vector<16x16xf32>
    %c0_126 = arith.constant 0 : index
    %c3_127 = arith.constant 3 : index
    %c3_128 = arith.constant 3 : index
    %161 = vector.load %arg8[%c0_126, %c3_127, %c3_128] : memref<2x20x20xf32, #tpu.memory_space<vmem>>, vector<1x16x16xf32>
    %162 = vector.shape_cast %161 : vector<1x16x16xf32> to vector<16x16xf32>
    %c0_129 = arith.constant 0 : index
    %c18 = arith.constant 18 : index
    %163 = memref.load %arg4[%c0_129, %c18] : memref<2x25xf32, #tpu.memory_space<smem>>
    %164 = vector.broadcast %163 : f32 to vector<16x16xf32>
    %165 = arith.mulf %162, %164 : vector<16x16xf32>
    %166 = arith.addf %160, %165 : vector<16x16xf32>
    %c0_130 = arith.constant 0 : index
    %c3_131 = arith.constant 3 : index
    %c4_132 = arith.constant 4 : index
    %167 = vector.load %arg8[%c0_130, %c3_131, %c4_132] : memref<2x20x20xf32, #tpu.memory_space<vmem>>, vector<1x16x16xf32>
    %168 = vector.shape_cast %167 : vector<1x16x16xf32> to vector<16x16xf32>
    %c0_133 = arith.constant 0 : index
    %c19 = arith.constant 19 : index
    %169 = memref.load %arg4[%c0_133, %c19] : memref<2x25xf32, #tpu.memory_space<smem>>
    %170 = vector.broadcast %169 : f32 to vector<16x16xf32>
    %171 = arith.mulf %168, %170 : vector<16x16xf32>
    %172 = arith.addf %166, %171 : vector<16x16xf32>
    %c0_134 = arith.constant 0 : index
    %c4_135 = arith.constant 4 : index
    %c0_136 = arith.constant 0 : index
    %173 = vector.load %arg8[%c0_134, %c4_135, %c0_136] : memref<2x20x20xf32, #tpu.memory_space<vmem>>, vector<1x16x16xf32>
    %174 = vector.shape_cast %173 : vector<1x16x16xf32> to vector<16x16xf32>
    %c0_137 = arith.constant 0 : index
    %c20 = arith.constant 20 : index
    %175 = memref.load %arg4[%c0_137, %c20] : memref<2x25xf32, #tpu.memory_space<smem>>
    %176 = vector.broadcast %175 : f32 to vector<16x16xf32>
    %177 = arith.mulf %174, %176 : vector<16x16xf32>
    %178 = arith.addf %172, %177 : vector<16x16xf32>
    %c0_138 = arith.constant 0 : index
    %c4_139 = arith.constant 4 : index
    %c1_140 = arith.constant 1 : index
    %179 = vector.load %arg8[%c0_138, %c4_139, %c1_140] : memref<2x20x20xf32, #tpu.memory_space<vmem>>, vector<1x16x16xf32>
    %180 = vector.shape_cast %179 : vector<1x16x16xf32> to vector<16x16xf32>
    %c0_141 = arith.constant 0 : index
    %c21 = arith.constant 21 : index
    %181 = memref.load %arg4[%c0_141, %c21] : memref<2x25xf32, #tpu.memory_space<smem>>
    %182 = vector.broadcast %181 : f32 to vector<16x16xf32>
    %183 = arith.mulf %180, %182 : vector<16x16xf32>
    %184 = arith.addf %178, %183 : vector<16x16xf32>
    %c0_142 = arith.constant 0 : index
    %c4_143 = arith.constant 4 : index
    %c2_144 = arith.constant 2 : index
    %185 = vector.load %arg8[%c0_142, %c4_143, %c2_144] : memref<2x20x20xf32, #tpu.memory_space<vmem>>, vector<1x16x16xf32>
    %186 = vector.shape_cast %185 : vector<1x16x16xf32> to vector<16x16xf32>
    %c0_145 = arith.constant 0 : index
    %c22 = arith.constant 22 : index
    %187 = memref.load %arg4[%c0_145, %c22] : memref<2x25xf32, #tpu.memory_space<smem>>
    %188 = vector.broadcast %187 : f32 to vector<16x16xf32>
    %189 = arith.mulf %186, %188 : vector<16x16xf32>
    %190 = arith.addf %184, %189 : vector<16x16xf32>
    %c0_146 = arith.constant 0 : index
    %c4_147 = arith.constant 4 : index
    %c3_148 = arith.constant 3 : index
    %191 = vector.load %arg8[%c0_146, %c4_147, %c3_148] : memref<2x20x20xf32, #tpu.memory_space<vmem>>, vector<1x16x16xf32>
    %192 = vector.shape_cast %191 : vector<1x16x16xf32> to vector<16x16xf32>
    %c0_149 = arith.constant 0 : index
    %c23 = arith.constant 23 : index
    %193 = memref.load %arg4[%c0_149, %c23] : memref<2x25xf32, #tpu.memory_space<smem>>
    %194 = vector.broadcast %193 : f32 to vector<16x16xf32>
    %195 = arith.mulf %192, %194 : vector<16x16xf32>
    %196 = arith.addf %190, %195 : vector<16x16xf32>
    %c0_150 = arith.constant 0 : index
    %c4_151 = arith.constant 4 : index
    %c4_152 = arith.constant 4 : index
    %197 = vector.load %arg8[%c0_150, %c4_151, %c4_152] : memref<2x20x20xf32, #tpu.memory_space<vmem>>, vector<1x16x16xf32>
    %198 = vector.shape_cast %197 : vector<1x16x16xf32> to vector<16x16xf32>
    %c0_153 = arith.constant 0 : index
    %c24 = arith.constant 24 : index
    %199 = memref.load %arg4[%c0_153, %c24] : memref<2x25xf32, #tpu.memory_space<smem>>
    %200 = vector.broadcast %199 : f32 to vector<16x16xf32>
    %201 = arith.mulf %198, %200 : vector<16x16xf32>
    %202 = arith.addf %196, %201 : vector<16x16xf32>
    %c0_154 = arith.constant 0 : index
    %203 = memref.load %arg5[%c0_154] : memref<2xf32, #tpu.memory_space<smem>>
    %204 = vector.broadcast %203 : f32 to vector<16x16xf32>
    %205 = arith.addf %202, %204 : vector<16x16xf32>
    %c0_155 = arith.constant 0 : index
    %c2_156 = arith.constant 2 : index
    %c0_157 = arith.constant 0 : index
    %c0_158 = arith.constant 0 : index
    %206 = vector.load %arg6[%c0_155, %c2_156, %c0_157, %c0_158] : memref<1x4x16x16xf32, #tpu.memory_space<vmem>>, vector<1x1x16x16xf32>
    %207 = vector.shape_cast %206 : vector<1x1x16x16xf32> to vector<16x16xf32>
    %208 = arith.addf %205, %207 : vector<16x16xf32>
    %c0_159 = arith.constant 0 : index
    %c2_160 = arith.constant 2 : index
    %c0_161 = arith.constant 0 : index
    %c0_162 = arith.constant 0 : index
    %209 = vector.load %arg7[%c0_159, %c2_160, %c0_161, %c0_162] : memref<1x4x16x16xf32, #tpu.memory_space<vmem>>, vector<1x1x16x16xf32>
    %210 = vector.shape_cast %209 : vector<1x1x16x16xf32> to vector<16x16xf32>
    %211 = vector.shape_cast %208 : vector<16x16xf32> to vector<1x1x16x16xf32>
    tpu.vector_store %arg7[%c0_159, %c2_160, %c0_161, %c0_162], %211 {strides = array<i32>} : memref<1x4x16x16xf32, #tpu.memory_space<vmem>>, vector<1x1x16x16xf32>,
    %cst_163 = arith.constant 0.000000e+00 : f32
    %212 = vector.broadcast %cst_163 : f32 to vector<16x16xf32>
    %c1_164 = arith.constant 1 : index
    %c0_165 = arith.constant 0 : index
    %c0_166 = arith.constant 0 : index
    %213 = vector.load %arg8[%c1_164, %c0_165, %c0_166] : memref<2x20x20xf32, #tpu.memory_space<vmem>>, vector<1x16x16xf32>
    %214 = vector.shape_cast %213 : vector<1x16x16xf32> to vector<16x16xf32>
    %c1_167 = arith.constant 1 : index
    %c0_168 = arith.constant 0 : index
    %215 = memref.load %arg4[%c1_167, %c0_168] : memref<2x25xf32, #tpu.memory_space<smem>>
    %216 = vector.broadcast %215 : f32 to vector<16x16xf32>
    %217 = arith.mulf %214, %216 : vector<16x16xf32>
    %218 = arith.addf %212, %217 : vector<16x16xf32>
    %c1_169 = arith.constant 1 : index
    %c0_170 = arith.constant 0 : index
    %c1_171 = arith.constant 1 : index
    %219 = vector.load %arg8[%c1_169, %c0_170, %c1_171] : memref<2x20x20xf32, #tpu.memory_space<vmem>>, vector<1x16x16xf32>
    %220 = vector.shape_cast %219 : vector<1x16x16xf32> to vector<16x16xf32>
    %c1_172 = arith.constant 1 : index
    %c1_173 = arith.constant 1 : index
    %221 = memref.load %arg4[%c1_172, %c1_173] : memref<2x25xf32, #tpu.memory_space<smem>>
    %222 = vector.broadcast %221 : f32 to vector<16x16xf32>
    %223 = arith.mulf %220, %222 : vector<16x16xf32>
    %224 = arith.addf %218, %223 : vector<16x16xf32>
    %c1_174 = arith.constant 1 : index
    %c0_175 = arith.constant 0 : index
    %c2_176 = arith.constant 2 : index
    %225 = vector.load %arg8[%c1_174, %c0_175, %c2_176] : memref<2x20x20xf32, #tpu.memory_space<vmem>>, vector<1x16x16xf32>
    %226 = vector.shape_cast %225 : vector<1x16x16xf32> to vector<16x16xf32>
    %c1_177 = arith.constant 1 : index
    %c2_178 = arith.constant 2 : index
    %227 = memref.load %arg4[%c1_177, %c2_178] : memref<2x25xf32, #tpu.memory_space<smem>>
    %228 = vector.broadcast %227 : f32 to vector<16x16xf32>
    %229 = arith.mulf %226, %228 : vector<16x16xf32>
    %230 = arith.addf %224, %229 : vector<16x16xf32>
    %c1_179 = arith.constant 1 : index
    %c0_180 = arith.constant 0 : index
    %c3_181 = arith.constant 3 : index
    %231 = vector.load %arg8[%c1_179, %c0_180, %c3_181] : memref<2x20x20xf32, #tpu.memory_space<vmem>>, vector<1x16x16xf32>
    %232 = vector.shape_cast %231 : vector<1x16x16xf32> to vector<16x16xf32>
    %c1_182 = arith.constant 1 : index
    %c3_183 = arith.constant 3 : index
    %233 = memref.load %arg4[%c1_182, %c3_183] : memref<2x25xf32, #tpu.memory_space<smem>>
    %234 = vector.broadcast %233 : f32 to vector<16x16xf32>
    %235 = arith.mulf %232, %234 : vector<16x16xf32>
    %236 = arith.addf %230, %235 : vector<16x16xf32>
    %c1_184 = arith.constant 1 : index
    %c0_185 = arith.constant 0 : index
    %c4_186 = arith.constant 4 : index
    %237 = vector.load %arg8[%c1_184, %c0_185, %c4_186] : memref<2x20x20xf32, #tpu.memory_space<vmem>>, vector<1x16x16xf32>
    %238 = vector.shape_cast %237 : vector<1x16x16xf32> to vector<16x16xf32>
    %c1_187 = arith.constant 1 : index
    %c4_188 = arith.constant 4 : index
    %239 = memref.load %arg4[%c1_187, %c4_188] : memref<2x25xf32, #tpu.memory_space<smem>>
    %240 = vector.broadcast %239 : f32 to vector<16x16xf32>
    %241 = arith.mulf %238, %240 : vector<16x16xf32>
    %242 = arith.addf %236, %241 : vector<16x16xf32>
    %c1_189 = arith.constant 1 : index
    %c1_190 = arith.constant 1 : index
    %c0_191 = arith.constant 0 : index
    %243 = vector.load %arg8[%c1_189, %c1_190, %c0_191] : memref<2x20x20xf32, #tpu.memory_space<vmem>>, vector<1x16x16xf32>
    %244 = vector.shape_cast %243 : vector<1x16x16xf32> to vector<16x16xf32>
    %c1_192 = arith.constant 1 : index
    %c5_193 = arith.constant 5 : index
    %245 = memref.load %arg4[%c1_192, %c5_193] : memref<2x25xf32, #tpu.memory_space<smem>>
    %246 = vector.broadcast %245 : f32 to vector<16x16xf32>
    %247 = arith.mulf %244, %246 : vector<16x16xf32>
    %248 = arith.addf %242, %247 : vector<16x16xf32>
    %c1_194 = arith.constant 1 : index
    %c1_195 = arith.constant 1 : index
    %c1_196 = arith.constant 1 : index
    %249 = vector.load %arg8[%c1_194, %c1_195, %c1_196] : memref<2x20x20xf32, #tpu.memory_space<vmem>>, vector<1x16x16xf32>
    %250 = vector.shape_cast %249 : vector<1x16x16xf32> to vector<16x16xf32>
    %c1_197 = arith.constant 1 : index
    %c6_198 = arith.constant 6 : index
    %251 = memref.load %arg4[%c1_197, %c6_198] : memref<2x25xf32, #tpu.memory_space<smem>>
    %252 = vector.broadcast %251 : f32 to vector<16x16xf32>
    %253 = arith.mulf %250, %252 : vector<16x16xf32>
    %254 = arith.addf %248, %253 : vector<16x16xf32>
    %c1_199 = arith.constant 1 : index
    %c1_200 = arith.constant 1 : index
    %c2_201 = arith.constant 2 : index
    %255 = vector.load %arg8[%c1_199, %c1_200, %c2_201] : memref<2x20x20xf32, #tpu.memory_space<vmem>>, vector<1x16x16xf32>
    %256 = vector.shape_cast %255 : vector<1x16x16xf32> to vector<16x16xf32>
    %c1_202 = arith.constant 1 : index
    %c7_203 = arith.constant 7 : index
    %257 = memref.load %arg4[%c1_202, %c7_203] : memref<2x25xf32, #tpu.memory_space<smem>>
    %258 = vector.broadcast %257 : f32 to vector<16x16xf32>
    %259 = arith.mulf %256, %258 : vector<16x16xf32>
    %260 = arith.addf %254, %259 : vector<16x16xf32>
    %c1_204 = arith.constant 1 : index
    %c1_205 = arith.constant 1 : index
    %c3_206 = arith.constant 3 : index
    %261 = vector.load %arg8[%c1_204, %c1_205, %c3_206] : memref<2x20x20xf32, #tpu.memory_space<vmem>>, vector<1x16x16xf32>
    %262 = vector.shape_cast %261 : vector<1x16x16xf32> to vector<16x16xf32>
    %c1_207 = arith.constant 1 : index
    %c8_208 = arith.constant 8 : index
    %263 = memref.load %arg4[%c1_207, %c8_208] : memref<2x25xf32, #tpu.memory_space<smem>>
    %264 = vector.broadcast %263 : f32 to vector<16x16xf32>
    %265 = arith.mulf %262, %264 : vector<16x16xf32>
    %266 = arith.addf %260, %265 : vector<16x16xf32>
    %c1_209 = arith.constant 1 : index
    %c1_210 = arith.constant 1 : index
    %c4_211 = arith.constant 4 : index
    %267 = vector.load %arg8[%c1_209, %c1_210, %c4_211] : memref<2x20x20xf32, #tpu.memory_space<vmem>>, vector<1x16x16xf32>
    %268 = vector.shape_cast %267 : vector<1x16x16xf32> to vector<16x16xf32>
    %c1_212 = arith.constant 1 : index
    %c9_213 = arith.constant 9 : index
    %269 = memref.load %arg4[%c1_212, %c9_213] : memref<2x25xf32, #tpu.memory_space<smem>>
    %270 = vector.broadcast %269 : f32 to vector<16x16xf32>
    %271 = arith.mulf %268, %270 : vector<16x16xf32>
    %272 = arith.addf %266, %271 : vector<16x16xf32>
    %c1_214 = arith.constant 1 : index
    %c2_215 = arith.constant 2 : index
    %c0_216 = arith.constant 0 : index
    %273 = vector.load %arg8[%c1_214, %c2_215, %c0_216] : memref<2x20x20xf32, #tpu.memory_space<vmem>>, vector<1x16x16xf32>
    %274 = vector.shape_cast %273 : vector<1x16x16xf32> to vector<16x16xf32>
    %c1_217 = arith.constant 1 : index
    %c10_218 = arith.constant 10 : index
    %275 = memref.load %arg4[%c1_217, %c10_218] : memref<2x25xf32, #tpu.memory_space<smem>>
    %276 = vector.broadcast %275 : f32 to vector<16x16xf32>
    %277 = arith.mulf %274, %276 : vector<16x16xf32>
    %278 = arith.addf %272, %277 : vector<16x16xf32>
    %c1_219 = arith.constant 1 : index
    %c2_220 = arith.constant 2 : index
    %c1_221 = arith.constant 1 : index
    %279 = vector.load %arg8[%c1_219, %c2_220, %c1_221] : memref<2x20x20xf32, #tpu.memory_space<vmem>>, vector<1x16x16xf32>
    %280 = vector.shape_cast %279 : vector<1x16x16xf32> to vector<16x16xf32>
    %c1_222 = arith.constant 1 : index
    %c11_223 = arith.constant 11 : index
    %281 = memref.load %arg4[%c1_222, %c11_223] : memref<2x25xf32, #tpu.memory_space<smem>>
    %282 = vector.broadcast %281 : f32 to vector<16x16xf32>
    %283 = arith.mulf %280, %282 : vector<16x16xf32>
    %284 = arith.addf %278, %283 : vector<16x16xf32>
    %c1_224 = arith.constant 1 : index
    %c2_225 = arith.constant 2 : index
    %c2_226 = arith.constant 2 : index
    %285 = vector.load %arg8[%c1_224, %c2_225, %c2_226] : memref<2x20x20xf32, #tpu.memory_space<vmem>>, vector<1x16x16xf32>
    %286 = vector.shape_cast %285 : vector<1x16x16xf32> to vector<16x16xf32>
    %c1_227 = arith.constant 1 : index
    %c12_228 = arith.constant 12 : index
    %287 = memref.load %arg4[%c1_227, %c12_228] : memref<2x25xf32, #tpu.memory_space<smem>>
    %288 = vector.broadcast %287 : f32 to vector<16x16xf32>
    %289 = arith.mulf %286, %288 : vector<16x16xf32>
    %290 = arith.addf %284, %289 : vector<16x16xf32>
    %c1_229 = arith.constant 1 : index
    %c2_230 = arith.constant 2 : index
    %c3_231 = arith.constant 3 : index
    %291 = vector.load %arg8[%c1_229, %c2_230, %c3_231] : memref<2x20x20xf32, #tpu.memory_space<vmem>>, vector<1x16x16xf32>
    %292 = vector.shape_cast %291 : vector<1x16x16xf32> to vector<16x16xf32>
    %c1_232 = arith.constant 1 : index
    %c13_233 = arith.constant 13 : index
    %293 = memref.load %arg4[%c1_232, %c13_233] : memref<2x25xf32, #tpu.memory_space<smem>>
    %294 = vector.broadcast %293 : f32 to vector<16x16xf32>
    %295 = arith.mulf %292, %294 : vector<16x16xf32>
    %296 = arith.addf %290, %295 : vector<16x16xf32>
    %c1_234 = arith.constant 1 : index
    %c2_235 = arith.constant 2 : index
    %c4_236 = arith.constant 4 : index
    %297 = vector.load %arg8[%c1_234, %c2_235, %c4_236] : memref<2x20x20xf32, #tpu.memory_space<vmem>>, vector<1x16x16xf32>
    %298 = vector.shape_cast %297 : vector<1x16x16xf32> to vector<16x16xf32>
    %c1_237 = arith.constant 1 : index
    %c14_238 = arith.constant 14 : index
    %299 = memref.load %arg4[%c1_237, %c14_238] : memref<2x25xf32, #tpu.memory_space<smem>>
    %300 = vector.broadcast %299 : f32 to vector<16x16xf32>
    %301 = arith.mulf %298, %300 : vector<16x16xf32>
    %302 = arith.addf %296, %301 : vector<16x16xf32>
    %c1_239 = arith.constant 1 : index
    %c3_240 = arith.constant 3 : index
    %c0_241 = arith.constant 0 : index
    %303 = vector.load %arg8[%c1_239, %c3_240, %c0_241] : memref<2x20x20xf32, #tpu.memory_space<vmem>>, vector<1x16x16xf32>
    %304 = vector.shape_cast %303 : vector<1x16x16xf32> to vector<16x16xf32>
    %c1_242 = arith.constant 1 : index
    %c15_243 = arith.constant 15 : index
    %305 = memref.load %arg4[%c1_242, %c15_243] : memref<2x25xf32, #tpu.memory_space<smem>>
    %306 = vector.broadcast %305 : f32 to vector<16x16xf32>
    %307 = arith.mulf %304, %306 : vector<16x16xf32>
    %308 = arith.addf %302, %307 : vector<16x16xf32>
    %c1_244 = arith.constant 1 : index
    %c3_245 = arith.constant 3 : index
    %c1_246 = arith.constant 1 : index
    %309 = vector.load %arg8[%c1_244, %c3_245, %c1_246] : memref<2x20x20xf32, #tpu.memory_space<vmem>>, vector<1x16x16xf32>
    %310 = vector.shape_cast %309 : vector<1x16x16xf32> to vector<16x16xf32>
    %c1_247 = arith.constant 1 : index
    %c16_248 = arith.constant 16 : index
    %311 = memref.load %arg4[%c1_247, %c16_248] : memref<2x25xf32, #tpu.memory_space<smem>>
    %312 = vector.broadcast %311 : f32 to vector<16x16xf32>
    %313 = arith.mulf %310, %312 : vector<16x16xf32>
    %314 = arith.addf %308, %313 : vector<16x16xf32>
    %c1_249 = arith.constant 1 : index
    %c3_250 = arith.constant 3 : index
    %c2_251 = arith.constant 2 : index
    %315 = vector.load %arg8[%c1_249, %c3_250, %c2_251] : memref<2x20x20xf32, #tpu.memory_space<vmem>>, vector<1x16x16xf32>
    %316 = vector.shape_cast %315 : vector<1x16x16xf32> to vector<16x16xf32>
    %c1_252 = arith.constant 1 : index
    %c17_253 = arith.constant 17 : index
    %317 = memref.load %arg4[%c1_252, %c17_253] : memref<2x25xf32, #tpu.memory_space<smem>>
    %318 = vector.broadcast %317 : f32 to vector<16x16xf32>
    %319 = arith.mulf %316, %318 : vector<16x16xf32>
    %320 = arith.addf %314, %319 : vector<16x16xf32>
    %c1_254 = arith.constant 1 : index
    %c3_255 = arith.constant 3 : index
    %c3_256 = arith.constant 3 : index
    %321 = vector.load %arg8[%c1_254, %c3_255, %c3_256] : memref<2x20x20xf32, #tpu.memory_space<vmem>>, vector<1x16x16xf32>
    %322 = vector.shape_cast %321 : vector<1x16x16xf32> to vector<16x16xf32>
    %c1_257 = arith.constant 1 : index
    %c18_258 = arith.constant 18 : index
    %323 = memref.load %arg4[%c1_257, %c18_258] : memref<2x25xf32, #tpu.memory_space<smem>>
    %324 = vector.broadcast %323 : f32 to vector<16x16xf32>
    %325 = arith.mulf %322, %324 : vector<16x16xf32>
    %326 = arith.addf %320, %325 : vector<16x16xf32>
    %c1_259 = arith.constant 1 : index
    %c3_260 = arith.constant 3 : index
    %c4_261 = arith.constant 4 : index
    %327 = vector.load %arg8[%c1_259, %c3_260, %c4_261] : memref<2x20x20xf32, #tpu.memory_space<vmem>>, vector<1x16x16xf32>
    %328 = vector.shape_cast %327 : vector<1x16x16xf32> to vector<16x16xf32>
    %c1_262 = arith.constant 1 : index
    %c19_263 = arith.constant 19 : index
    %329 = memref.load %arg4[%c1_262, %c19_263] : memref<2x25xf32, #tpu.memory_space<smem>>
    %330 = vector.broadcast %329 : f32 to vector<16x16xf32>
    %331 = arith.mulf %328, %330 : vector<16x16xf32>
    %332 = arith.addf %326, %331 : vector<16x16xf32>
    %c1_264 = arith.constant 1 : index
    %c4_265 = arith.constant 4 : index
    %c0_266 = arith.constant 0 : index
    %333 = vector.load %arg8[%c1_264, %c4_265, %c0_266] : memref<2x20x20xf32, #tpu.memory_space<vmem>>, vector<1x16x16xf32>
    %334 = vector.shape_cast %333 : vector<1x16x16xf32> to vector<16x16xf32>
    %c1_267 = arith.constant 1 : index
    %c20_268 = arith.constant 20 : index
    %335 = memref.load %arg4[%c1_267, %c20_268] : memref<2x25xf32, #tpu.memory_space<smem>>
    %336 = vector.broadcast %335 : f32 to vector<16x16xf32>
    %337 = arith.mulf %334, %336 : vector<16x16xf32>
    %338 = arith.addf %332, %337 : vector<16x16xf32>
    %c1_269 = arith.constant 1 : index
    %c4_270 = arith.constant 4 : index
    %c1_271 = arith.constant 1 : index
    %339 = vector.load %arg8[%c1_269, %c4_270, %c1_271] : memref<2x20x20xf32, #tpu.memory_space<vmem>>, vector<1x16x16xf32>
    %340 = vector.shape_cast %339 : vector<1x16x16xf32> to vector<16x16xf32>
    %c1_272 = arith.constant 1 : index
    %c21_273 = arith.constant 21 : index
    %341 = memref.load %arg4[%c1_272, %c21_273] : memref<2x25xf32, #tpu.memory_space<smem>>
    %342 = vector.broadcast %341 : f32 to vector<16x16xf32>
    %343 = arith.mulf %340, %342 : vector<16x16xf32>
    %344 = arith.addf %338, %343 : vector<16x16xf32>
    %c1_274 = arith.constant 1 : index
    %c4_275 = arith.constant 4 : index
    %c2_276 = arith.constant 2 : index
    %345 = vector.load %arg8[%c1_274, %c4_275, %c2_276] : memref<2x20x20xf32, #tpu.memory_space<vmem>>, vector<1x16x16xf32>
    %346 = vector.shape_cast %345 : vector<1x16x16xf32> to vector<16x16xf32>
    %c1_277 = arith.constant 1 : index
    %c22_278 = arith.constant 22 : index
    %347 = memref.load %arg4[%c1_277, %c22_278] : memref<2x25xf32, #tpu.memory_space<smem>>
    %348 = vector.broadcast %347 : f32 to vector<16x16xf32>
    %349 = arith.mulf %346, %348 : vector<16x16xf32>
    %350 = arith.addf %344, %349 : vector<16x16xf32>
    %c1_279 = arith.constant 1 : index
    %c4_280 = arith.constant 4 : index
    %c3_281 = arith.constant 3 : index
    %351 = vector.load %arg8[%c1_279, %c4_280, %c3_281] : memref<2x20x20xf32, #tpu.memory_space<vmem>>, vector<1x16x16xf32>
    %352 = vector.shape_cast %351 : vector<1x16x16xf32> to vector<16x16xf32>
    %c1_282 = arith.constant 1 : index
    %c23_283 = arith.constant 23 : index
    %353 = memref.load %arg4[%c1_282, %c23_283] : memref<2x25xf32, #tpu.memory_space<smem>>
    %354 = vector.broadcast %353 : f32 to vector<16x16xf32>
    %355 = arith.mulf %352, %354 : vector<16x16xf32>
    %356 = arith.addf %350, %355 : vector<16x16xf32>
    %c1_284 = arith.constant 1 : index
    %c4_285 = arith.constant 4 : index
    %c4_286 = arith.constant 4 : index
    %357 = vector.load %arg8[%c1_284, %c4_285, %c4_286] : memref<2x20x20xf32, #tpu.memory_space<vmem>>, vector<1x16x16xf32>
    %358 = vector.shape_cast %357 : vector<1x16x16xf32> to vector<16x16xf32>
    %c1_287 = arith.constant 1 : index
    %c24_288 = arith.constant 24 : index
    %359 = memref.load %arg4[%c1_287, %c24_288] : memref<2x25xf32, #tpu.memory_space<smem>>
    %360 = vector.broadcast %359 : f32 to vector<16x16xf32>
    %361 = arith.mulf %358, %360 : vector<16x16xf32>
    %362 = arith.addf %356, %361 : vector<16x16xf32>
    %c1_289 = arith.constant 1 : index
    %363 = memref.load %arg5[%c1_289] : memref<2xf32, #tpu.memory_space<smem>>
    %364 = vector.broadcast %363 : f32 to vector<16x16xf32>
    %365 = arith.addf %362, %364 : vector<16x16xf32>
    %c0_290 = arith.constant 0 : index
    %c3_291 = arith.constant 3 : index
    %c0_292 = arith.constant 0 : index
    %c0_293 = arith.constant 0 : index
    %366 = vector.load %arg6[%c0_290, %c3_291, %c0_292, %c0_293] : memref<1x4x16x16xf32, #tpu.memory_space<vmem>>, vector<1x1x16x16xf32>
    %367 = vector.shape_cast %366 : vector<1x1x16x16xf32> to vector<16x16xf32>
    %368 = arith.addf %365, %367 : vector<16x16xf32>
    %c0_294 = arith.constant 0 : index
    %c3_295 = arith.constant 3 : index
    %c0_296 = arith.constant 0 : index
    %c0_297 = arith.constant 0 : index
    %369 = vector.load %arg7[%c0_294, %c3_295, %c0_296, %c0_297] : memref<1x4x16x16xf32, #tpu.memory_space<vmem>>, vector<1x1x16x16xf32>
    %370 = vector.shape_cast %369 : vector<1x1x16x16xf32> to vector<16x16xf32>
    %371 = vector.shape_cast %368 : vector<16x16xf32> to vector<1x1x16x16xf32>
    tpu.vector_store %arg7[%c0_294, %c3_295, %c0_296, %c0_297], %371 {strides = array<i32>} : memref<1x4x16x16xf32, #tpu.memory_space<vmem>>, vector<1x1x16x16xf32>,
    return
  }
  func.func @transform_0(%arg0: i32) -> (i32, i32, i32, i32) {
    %c0_i32 = arith.constant 0 : i32
    %c0_i32_0 = arith.constant 0 : i32
    %c0_i32_1 = arith.constant 0 : i32
    %c0_i32_2 = arith.constant 0 : i32
    return %arg0, %c0_i32, %c0_i32_0, %c0_i32_1 : i32, i32, i32, i32
  }
  func.func @transform_1(%arg0: i32) -> (i32, i32) {
    %c0_i32 = arith.constant 0 : i32
    %c0_i32_0 = arith.constant 0 : i32
    %c0_i32_1 = arith.constant 0 : i32
    return %c0_i32, %c0_i32_0 : i32, i32
  }
  func.func @transform_2(%arg0: i32) -> i32 {
    %c0_i32 = arith.constant 0 : i32
    %c0_i32_0 = arith.constant 0 : i32
    return %c0_i32 : i32
  }
  func.func @transform_3(%arg0: i32) -> (i32, i32) {
    %c0_i32 = arith.constant 0 : i32
    %c0_i32_0 = arith.constant 0 : i32
    %c0_i32_1 = arith.constant 0 : i32
    return %c0_i32, %c0_i32_0 : i32, i32
  }
  func.func @transform_4(%arg0: i32) -> i32 {
    %c0_i32 = arith.constant 0 : i32
    %c0_i32_0 = arith.constant 0 : i32
    return %c0_i32 : i32
  }
  func.func @transform_5(%arg0: i32) -> (i32, i32, i32, i32) {
    %c0_i32 = arith.constant 0 : i32
    %c0_i32_0 = arith.constant 0 : i32
    %c0_i32_1 = arith.constant 0 : i32
    %c0_i32_2 = arith.constant 0 : i32
    return %arg0, %c0_i32, %c0_i32_0, %c0_i32_1 : i32, i32, i32, i32
  }
  func.func @transform_6(%arg0: i32) -> (i32, i32, i32, i32) {
    %c0_i32 = arith.constant 0 : i32
    %c0_i32_0 = arith.constant 0 : i32
    %c0_i32_1 = arith.constant 0 : i32
    %c0_i32_2 = arith.constant 0 : i32
    return %arg0, %c0_i32, %c0_i32_0, %c0_i32_1 : i32, i32, i32, i32
  }
}

</mosaic_0001>

<llo_original>
// kernel: ghost_c3_fwd.4
$region0: #{ghost_c3_fwd.4}
  #allocation0 [shape = 'u32[]', space=smem, size = 0x4, offset = 0x4, fixed_abs, tag = 'smem constant byte address 0x4 - core index']
  #allocation1 [shape = 'u32[144,128]{1,0:T(1,128)}', space=vmem, size = 0x12000, scoped, tag = 'internal scratch']
  %s0 = inlined_call_operand.vmem [shape: f32[2,4,256], index: 0, kind: input, shape index: {}]
  %s1 = inlined_call_operand.vmem [shape: f32[8,4], index: 1, kind: input, shape index: {}]
  %s2 = inlined_call_operand.vmem [shape: f32[8,1], index: 2, kind: input, shape index: {}]
  %s3 = inlined_call_operand.vmem [shape: f32[2,8,256], index: 3, kind: output, shape index: {}]
  %s4 = sld [smem:[#allocation0]]
  $region45: #{ghost_c3_fwd.4} parent=0
    _
  %s6 = ssub.s32 1, %s4
  %s7 = scalar_select 0, %s6, %s4
  loop: start=0, step=1, limit=4
  $region2: #{ghost_c3_fwd.4} parent=0 // loop_pre_header
    _
  $region3: #{ghost_c3_fwd.4} parent=0 // loop_header
    %s9 = sphi 0, %s13
    %p10 = scmp.ge.s32.totalorder %s9, 4
    %s16 = sphi 0, %s28
    %s17 = sphi 0, %s24
    %s18 = sphi 0, %s16
    %s19 = sphi 0, %s17
    %s20 = sphi 0, %s18
    %s21 = sphi 0, %s19
    %s33 = sphi 0, %s35
    %s36 = sphi 0, %s33
    %s37 = sphi 0, %s36
    %s53 = sphi 0, %s37
    %s57 = sphi 0, %s57
    %s59 = sphi 0, %s57
    %s60 = sphi 0, %s59
    %s74 = sphi 0, %s60
    %s78 = sphi 0, %s78
    %s80 = sphi 0, %s78
    %s81 = sphi 0, %s80
    %s95 = sphi 0, %s81
    %s103 = sphi 0, %s105
    %s106 = sphi 0, %s103
    %s107 = sphi 0, %s106
    %s123 = sphi 0, %s107
  $region4: #{ghost_c3_fwd.4} parent=0 // loop_header_branch
    %12 = sbr.rel (%p10) target = $region8
  $region5: #{ghost_c3_fwd.4} parent=0 // loop_body
    %s14 = ssub.s32 %s9, 1
    %s15 = ssub.s32 %s9, 2
    %s22 = sadd.s32 1, %s17
    %p23 = scmp.ge.s32.totalorder %s22, 1
    %s24 = scalar_select %p23, 0, %s22
    %s25 = sadd.s32 1, %s16
    %s26 = scalar_select %p23, %s25, %s16
    %p27 = scmp.ge.s32.totalorder %s26, 2
    %s28 = scalar_select %p27, 0, %s26
    %s29 = ssub.s32 %s16, %s28
    %s30 = ssub.s32 %s17, %s24
    %s31 = sor.u32 %s29, %s30
    %p32 = scmp.eq.s32.totalorder %s31, 0
    %s34 = sadd.s32 %s33, 1
    %s35 = scalar_select %p32, %s33, %s34
    %p38 = pneg %p32
    %p39 = scmp.eq.s32.totalorder %s9, 1
    %p40 = por %p38, %p39
    %p41 = scmp.ne.s32.totalorder %s33, %s36
    %p42 = scmp.eq.s32.totalorder %s9, 0
    %p43 = por %p41, %p42
    %p44 = scmp.ne.s32.totalorder %s33, %s36
    %p45 = scmp.eq.s32.totalorder %s14, 1
    %p46 = por %p44, %p45
    %p47 = scmp.ne.s32.totalorder %s36, %s37
    %p48 = scmp.eq.s32.totalorder %s14, 0
    %p49 = por %p47, %p48
    %p50 = scmp.ne.s32.totalorder %s36, %s37
    %p51 = scmp.eq.s32.totalorder %s15, 1
    %p52 = por %p50, %p51
    %p54 = scmp.ne.s32.totalorder %s37, %s53
    %p55 = scmp.eq.s32.totalorder %s15, 0
    %p56 = por %p54, %p55
    %s58 = sadd.s32 %s57, 1
    %p61 = scmp.eq.s32.totalorder %s9, 1
    %p62 = scmp.ne.s32.totalorder %s57, %s59
    %p63 = scmp.eq.s32.totalorder %s9, 0
    %p64 = por %p62, %p63
    %p65 = scmp.ne.s32.totalorder %s57, %s59
    %p66 = scmp.eq.s32.totalorder %s14, 1
    %p67 = por %p65, %p66
    %p68 = scmp.ne.s32.totalorder %s59, %s60
    %p69 = scmp.eq.s32.totalorder %s14, 0
    %p70 = por %p68, %p69
    %p71 = scmp.ne.s32.totalorder %s59, %s60
    %p72 = scmp.eq.s32.totalorder %s15, 1
    %p73 = por %p71, %p72
    %p75 = scmp.ne.s32.totalorder %s60, %s74
    %p76 = scmp.eq.s32.totalorder %s15, 0
    %p77 = por %p75, %p76
    %s79 = sadd.s32 %s78, 1
    %p82 = scmp.eq.s32.totalorder %s9, 1
    %p83 = scmp.ne.s32.totalorder %s78, %s80
    %p84 = scmp.eq.s32.totalorder %s9, 0
    %p85 = por %p83, %p84
    %p86 = scmp.ne.s32.totalorder %s78, %s80
    %p87 = scmp.eq.s32.totalorder %s14, 1
    %p88 = por %p86, %p87
    %p89 = scmp.ne.s32.totalorder %s80, %s81
    %p90 = scmp.eq.s32.totalorder %s14, 0
    %p91 = por %p89, %p90
    %p92 = scmp.ne.s32.totalorder %s80, %s81
    %p93 = scmp.eq.s32.totalorder %s15, 1
    %p94 = por %p92, %p93
    %p96 = scmp.ne.s32.totalorder %s81, %s95
    %p97 = scmp.eq.s32.totalorder %s15, 0
    %p98 = por %p96, %p97
    %s99 = ssub.s32 %s16, %s28
    %s100 = ssub.s32 %s17, %s24
    %s101 = sor.u32 %s99, %s100
    %p102 = scmp.eq.s32.totalorder %s101, 0
    %s104 = sadd.s32 %s103, 1
    %s105 = scalar_select %p102, %s103, %s104
    %p108 = pneg %p102
    %p109 = scmp.eq.s32.totalorder %s9, 1
    %p110 = por %p108, %p109
    %p111 = scmp.ne.s32.totalorder %s103, %s106
    %p112 = scmp.eq.s32.totalorder %s9, 0
    %p113 = por %p111, %p112
    %p114 = scmp.ne.s32.totalorder %s103, %s106
    %p115 = scmp.eq.s32.totalorder %s14, 1
    %p116 = por %p114, %p115
    %p117 = scmp.ne.s32.totalorder %s106, %s107
    %p118 = scmp.eq.s32.totalorder %s14, 0
    %p119 = por %p117, %p118
    %p120 = scmp.ne.s32.totalorder %s106, %s107
    %p121 = scmp.eq.s32.totalorder %s15, 1
    %p122 = por %p120, %p121
    %p124 = scmp.ne.s32.totalorder %s107, %s123
    %p125 = scmp.eq.s32.totalorder %s15, 0
    %p126 = por %p124, %p125
    %p127 = scmp.le.s32.totalorder 1, %s9
    %p128 = scmp.lt.s32.totalorder %s9, 3
    %p129 = pnand %p127, %p128
    %p130 = pneg %p129
    // Predicated region
    $region9: #{ghost_c3_fwd.4} parent=5 // pred_check
      _
    $region10: #{ghost_c3_fwd.4} parent=5 // pred_check_branch
      %132 = sbr.rel (%p129) target = $region12
    $region11: #{ghost_c3_fwd.4} parent=5 // pred_region
      %s133 = ssub.s32 %s9, 1
      // Predicated region
      $region13: #{ghost_c3_fwd.4} parent=11 // pred_check
        %p134 = pneg %p70
      $region14: #{ghost_c3_fwd.4} parent=11 // pred_check_branch
        %136 = sbr.rel (%p134) target = $region16
      $region15: #{ghost_c3_fwd.4} parent=11 // pred_region
        _
      $region16: #{ghost_c3_fwd.4} parent=11 // pred_fallthru
        _
      // Predicated region
      $region17: #{ghost_c3_fwd.4} parent=11 // pred_check
        %p137 = pneg %p91
      $region18: #{ghost_c3_fwd.4} parent=11 // pred_check_branch
        %139 = sbr.rel (%p137) target = $region20
      $region19: #{ghost_c3_fwd.4} parent=11 // pred_region
        _
      $region20: #{ghost_c3_fwd.4} parent=11 // pred_fallthru
        _
    $region12: #{ghost_c3_fwd.4} parent=5 // pred_fallthru
      _
    %p140 = scmp.lt.s32.totalorder %s9, 2
    // Predicated region
    $region21: #{ghost_c3_fwd.4} parent=5 // pred_check
      %p141 = pneg %p140
    $region22: #{ghost_c3_fwd.4} parent=5 // pred_check_branch
      %143 = sbr.rel (%p141) target = $region24
    $region23: #{ghost_c3_fwd.4} parent=5 // pred_region
      // Predicated region
      $region25: #{ghost_c3_fwd.4} parent=23 // pred_check
        %p144 = pneg %p43
      $region26: #{ghost_c3_fwd.4} parent=23 // pred_check_branch
        %146 = sbr.rel (%p144) target = $region28
      $region27: #{ghost_c3_fwd.4} parent=23 // pred_region
        %s147 = smul.u32 2, %s17
        %p148 = scmp.lt.s32.totalorder %s16, 1
        %s149 = scalar_select %p148, %s16, 1
        %p150 = scmp.lt.s32.totalorder %s147, 1
        %s151 = scalar_select %p150, %s147, 1
        %s152 = smul.addr %s149, 2
        %s153 = sadd.s32 %s151, %s152
        %s154 = smul.addr %s153, 4
        %s155 = scalar_lea.vmem %s0, %s154
        %s156 = smul.u32 2, %s17
      $region28: #{ghost_c3_fwd.4} parent=23 // pred_fallthru
        _
    $region24: #{ghost_c3_fwd.4} parent=5 // pred_fallthru
      _
    %p157 = scmp.le.s32.totalorder 1, %s9
    %p158 = scmp.lt.s32.totalorder %s9, 3
    %p159 = pnand %p157, %p158
    %p160 = pneg %p159
    // Predicated region
    $region29: #{ghost_c3_fwd.4} parent=5 // pred_check
      _
    $region30: #{ghost_c3_fwd.4} parent=5 // pred_check_branch
      %162 = sbr.rel (%p159) target = $region32
    $region31: #{ghost_c3_fwd.4} parent=5 // pred_region
      %s163 = ssub.s32 %s9, 1
      %s164 = smul.u32 2, %s19
      %p165 = scmp.lt.s32.totalorder %s18, 1
      %s166 = scalar_select %p165, %s18, 1
      %p167 = scmp.lt.s32.totalorder %s164, 1
      %s168 = scalar_select %p167, %s164, 1
      %s169 = smul.addr %s166, 2
      %s170 = sadd.s32 %s168, %s169
      %s171 = smul.addr %s170, 4
      %s172 = scalar_lea.vmem %s0, %s171
      %p173 = pneg %p49
      %p174 = pneg %p46
      %p175 = pneg %p70
      %p176 = pneg %p67
      %p177 = pneg %p91
      %p178 = pneg %p88
      %p179 = pneg %p119
      %p180 = pneg %p116
      %s181 = smul.u32 2, %s19
      %p182 = scmp.lt.s32.totalorder %s18, 1
      %s183 = scalar_select %p182, %s18, 1
      %p184 = scmp.lt.s32.totalorder %s181, 1
      %s185 = scalar_select %p184, %s181, 1
      %s186 = smul.addr %s183, 2
      %s187 = sadd.s32 %s185, %s186
      %s188 = smul.addr %s187, 8
      %s189 = scalar_lea.vmem %s3, %s188
      %s190 = smul.u32 2, %s19
      %p191 = scmp.lt.s32.totalorder %s18, 1
      %s192 = scalar_select %p191, %s18, 1
      %p193 = scmp.lt.s32.totalorder %s190, 1
      %s194 = scalar_select %p193, %s190, 1
      %s195 = smul.addr %s192, 2
      %s196 = sadd.s32 %s194, %s195
      %s197 = smul.addr %s196, 4
      %s198 = scalar_lea.vmem %s0, %s197
      %s199 = smul.u32 2, %s19
      %s200 = smul.u32 2, %s19
      %p201 = scmp.lt.s32.totalorder %s18, 1
      %s202 = scalar_select %p201, %s18, 1
      %p203 = scmp.lt.s32.totalorder %s200, 1
      %s204 = scalar_select %p203, %s200, 1
      %s205 = smul.addr %s202, 2
      %s206 = sadd.s32 %s204, %s205
      %s207 = smul.addr %s206, 8
      %s208 = scalar_lea.vmem %s3, %s207
      %s209 = smul.u32 2, %s19
      %v210 = vld [vmem:[%s198] sm:$0xff]
      %v211 = vld [vmem:[%s1] sm:$0xff]
      %213 = vset.pattern.permute.xlu0 0
      %214 = vperm.xlu0 %213, %v211
      %v215 = vpop.permute.xlu0 %214
      %v218 = vlaneseq
      %v219 = vshrl.u32 %v218, 7
      %v220 = vsub.s32 0, %v219
      %v221 = vrot.slane %v210, %v220
      %v222 = vlaneseq
      %v223 = vshrl.u32 %v222, 7
      %v224 = vsub.s32 4, %v223
      %v225 = vrot.slane %v210, %v224
      %v228 = vlaneseq
      %v229 = vshrl.u32 %v228, 7
      %v230 = vsub.s32 0, %v229
      %v231 = vrot.slane %v221, %v230
      %v232 = vlaneseq
      %v233 = vshrl.u32 %v232, 7
      %v234 = vsub.s32 0, %v233
      %v235 = vrot.slane %v225, %v234
      %v236 = vmul.f32 %v215, %v231
      %v237 = vmul.f32 %v215, %v235
      %v238 = vadd.f32 %v236, 0.0
      %v239 = vadd.f32 %v237, 0.0
      %240 = vset.pattern.permute.xlu0 1
      %241 = vperm.xlu0 %240, %v211
      %v242 = vpop.permute.xlu0 %241
      %v244 = vlaneseq
      %v245 = vshrl.u32 %v244, 7
      %v246 = vsub.s32 1, %v245
      %v247 = vrot.slane %v210, %v246
      %v248 = vlaneseq
      %v249 = vshrl.u32 %v248, 7
      %v250 = vsub.s32 5, %v249
      %v251 = vrot.slane %v210, %v250
      %v254 = vlaneseq
      %v255 = vshrl.u32 %v254, 7
      %v256 = vsub.s32 1, %v255
      %v257 = vrot.slane %v247, %v256
      %v258 = vlaneseq
      %v259 = vshrl.u32 %v258, 7
      %v260 = vsub.s32 1, %v259
      %v261 = vrot.slane %v251, %v260
      %v262 = vmul.f32 %v242, %v257
      %v263 = vmul.f32 %v242, %v261
      %v264 = vadd.f32 %v238, %v262
      %v265 = vadd.f32 %v239, %v263
      %266 = vset.pattern.permute.xlu0 2
      %267 = vperm.xlu0 %266, %v211
      %v268 = vpop.permute.xlu0 %267
      %v270 = vlaneseq
      %v271 = vshrl.u32 %v270, 7
      %v272 = vsub.s32 2, %v271
      %v273 = vrot.slane %v210, %v272
      %v274 = vlaneseq
      %v275 = vshrl.u32 %v274, 7
      %v276 = vsub.s32 6, %v275
      %v277 = vrot.slane %v210, %v276
      %v280 = vlaneseq
      %v281 = vshrl.u32 %v280, 7
      %v282 = vsub.s32 2, %v281
      %v283 = vrot.slane %v273, %v282
      %v284 = vlaneseq
      %v285 = vshrl.u32 %v284, 7
      %v286 = vsub.s32 2, %v285
      %v287 = vrot.slane %v277, %v286
      %v288 = vmul.f32 %v268, %v283
      %v289 = vmul.f32 %v268, %v287
      %v290 = vadd.f32 %v264, %v288
      %v291 = vadd.f32 %v265, %v289
      %292 = vset.pattern.permute.xlu0 3
      %293 = vperm.xlu0 %292, %v211
      %v294 = vpop.permute.xlu0 %293
      %v296 = vlaneseq
      %v297 = vshrl.u32 %v296, 7
      %v298 = vsub.s32 3, %v297
      %v299 = vrot.slane %v210, %v298
      %v300 = vlaneseq
      %v301 = vshrl.u32 %v300, 7
      %v302 = vsub.s32 7, %v301
      %v303 = vrot.slane %v210, %v302
      %v306 = vlaneseq
      %v307 = vshrl.u32 %v306, 7
      %v308 = vsub.s32 3, %v307
      %v309 = vrot.slane %v299, %v308
      %v310 = vlaneseq
      %v311 = vshrl.u32 %v310, 7
      %v312 = vsub.s32 3, %v311
      %v313 = vrot.slane %v303, %v312
      %v314 = vmul.f32 %v294, %v309
      %v315 = vmul.f32 %v294, %v313
      %v316 = vadd.f32 %v290, %v314
      %v317 = vadd.f32 %v291, %v315
      %v318 = vld [vmem:[%s2] sm:$0xff]
      %320 = vset.pattern.permute.xlu0 0
      %321 = vperm.xlu0 %320, %v318
      %v322 = vpop.permute.xlu0 %321
      %v324 = vadd.f32 %v316, %v322
      %v325 = vadd.f32 %v317, %v322
      %v326 = vxor.u32 %v324, 2147483648
      %v327 = vxor.u32 %v325, 2147483648
      %v328 = vmul.f32 %v326, 1.442695
      %v329 = vpow.pop %v328
      %v330 = vmul.f32 %v327, 1.442695
      %v331 = vpow.pop %v330
      %v332 = vadd.f32 %v329, 1.0
      %v333 = vadd.f32 %v331, 1.0
      %v334 = vrcp.pop %v332
      %v335 = vmul.f32 1.0, %v334
      %v336 = vrcp.pop %v333
      %v337 = vmul.f32 1.0, %v336
      %v338 = vmul.f32 %v324, %v335
      %v339 = vmul.f32 %v325, %v337
      %340 = vst [vmem:[%s208] sm:$0xff] %v338
      %341 = vst [vmem:[%s208 + $0x8] sm:$0xff] %v339
      %s342 = smul.u32 2, %s19
      %p343 = scmp.lt.s32.totalorder %s18, 1
      %s344 = scalar_select %p343, %s18, 1
      %p345 = scmp.lt.s32.totalorder %s342, 1
      %s346 = scalar_select %p345, %s342, 1
      %s347 = smul.addr %s344, 2
      %s348 = sadd.s32 %s346, %s347
      %s349 = smul.addr %s348, 8
      %s350 = scalar_lea.vmem %s3, %s349
      // Predicated region
      $region33: #{ghost_c3_fwd.4} parent=31 // pred_check
        %p351 = pneg %p116
      $region34: #{ghost_c3_fwd.4} parent=31 // pred_check_branch
        %353 = sbr.rel (%p351) target = $region36
      $region35: #{ghost_c3_fwd.4} parent=31 // pred_region
        %s354 = smul.u32 2, %s19
      $region36: #{ghost_c3_fwd.4} parent=31 // pred_fallthru
        _
    $region32: #{ghost_c3_fwd.4} parent=5 // pred_fallthru
      _
    %p355 = scmp.le.s32.totalorder 2, %s9
    // Predicated region
    $region37: #{ghost_c3_fwd.4} parent=5 // pred_check
      %p356 = pneg %p355
    $region38: #{ghost_c3_fwd.4} parent=5 // pred_check_branch
      %358 = sbr.rel (%p356) target = $region40
    $region39: #{ghost_c3_fwd.4} parent=5 // pred_region
      %s359 = ssub.s32 %s9, 2
      // Predicated region
      $region41: #{ghost_c3_fwd.4} parent=39 // pred_check
        %p360 = pneg %p122
      $region42: #{ghost_c3_fwd.4} parent=39 // pred_check_branch
        %362 = sbr.rel (%p360) target = $region44
      $region43: #{ghost_c3_fwd.4} parent=39 // pred_region
        %s363 = smul.u32 2, %s21
        %p364 = scmp.lt.s32.totalorder %s20, 1
        %s365 = scalar_select %p364, %s20, 1
        %p366 = scmp.lt.s32.totalorder %s363, 1
        %s367 = scalar_select %p366, %s363, 1
        %s368 = smul.addr %s365, 2
        %s369 = sadd.s32 %s367, %s368
        %s370 = smul.addr %s369, 8
        %s371 = scalar_lea.vmem %s3, %s370
      $region44: #{ghost_c3_fwd.4} parent=39 // pred_fallthru
        _
    $region40: #{ghost_c3_fwd.4} parent=5 // pred_fallthru
      _
  $region6: #{ghost_c3_fwd.4} parent=0 // loop_footer
    %s13 = sadd.s32 1, %s9
  $region7: #{ghost_c3_fwd.4} parent=0 // loop_footer_branch
    %8 = sbr.rel target = $region3
  $region8: #{ghost_c3_fwd.4} parent=0 // loop_exit
    _

// kernel: ghost_c3_fwd.7
$region0: #{ghost_c3_fwd.7}
  #allocation0 [shape = 'u32[]', space=smem, size = 0x4, offset = 0x4, fixed_abs, tag = 'smem constant byte address 0x4 - core index']
  #allocation1 [shape = 'u32[144,128]{1,0:T(1,128)}', space=vmem, size = 0x12000, scoped, tag = 'internal scratch']
  %s0 = inlined_call_operand.vmem [shape: f32[2,4,256], index: 0, kind: input, shape index: {}]
  %s1 = inlined_call_operand.vmem [shape: f32[2,4,256], index: 1, kind: input, shape index: {}]
  %s2 = inlined_call_operand.vmem [shape: f32[8,4], index: 2, kind: input, shape index: {}]
  %s3 = inlined_call_operand.vmem [shape: f32[8,4], index: 3, kind: input, shape index: {}]
  %s4 = inlined_call_operand.vmem [shape: f32[8,1], index: 4, kind: input, shape index: {}]
  %s5 = inlined_call_operand.vmem [shape: f32[2,8,256], index: 5, kind: output, shape index: {}]
  %s6 = sld [smem:[#allocation0]]
  $region53: #{ghost_c3_fwd.7} parent=0
    _
  %s8 = ssub.s32 1, %s6
  %s9 = scalar_select 0, %s8, %s6
  loop: start=0, step=1, limit=4
  $region2: #{ghost_c3_fwd.7} parent=0 // loop_pre_header
    _
  $region3: #{ghost_c3_fwd.7} parent=0 // loop_header
    %s11 = sphi 0, %s15
    %p12 = scmp.ge.s32.totalorder %s11, 4
    %s18 = sphi 0, %s30
    %s19 = sphi 0, %s26
    %s20 = sphi 0, %s18
    %s21 = sphi 0, %s19
    %s22 = sphi 0, %s20
    %s23 = sphi 0, %s21
    %s35 = sphi 0, %s37
    %s38 = sphi 0, %s35
    %s39 = sphi 0, %s38
    %s55 = sphi 0, %s39
    %s63 = sphi 0, %s65
    %s66 = sphi 0, %s63
    %s67 = sphi 0, %s66
    %s83 = sphi 0, %s67
    %s87 = sphi 0, %s87
    %s89 = sphi 0, %s87
    %s90 = sphi 0, %s89
    %s104 = sphi 0, %s90
    %s108 = sphi 0, %s108
    %s110 = sphi 0, %s108
    %s111 = sphi 0, %s110
    %s125 = sphi 0, %s111
    %s129 = sphi 0, %s129
    %s131 = sphi 0, %s129
    %s132 = sphi 0, %s131
    %s146 = sphi 0, %s132
    %s154 = sphi 0, %s156
    %s157 = sphi 0, %s154
    %s158 = sphi 0, %s157
    %s174 = sphi 0, %s158
  $region4: #{ghost_c3_fwd.7} parent=0 // loop_header_branch
    %14 = sbr.rel (%p12) target = $region8
  $region5: #{ghost_c3_fwd.7} parent=0 // loop_body
    %s16 = ssub.s32 %s11, 1
    %s17 = ssub.s32 %s11, 2
    %s24 = sadd.s32 1, %s19
    %p25 = scmp.ge.s32.totalorder %s24, 1
    %s26 = scalar_select %p25, 0, %s24
    %s27 = sadd.s32 1, %s18
    %s28 = scalar_select %p25, %s27, %s18
    %p29 = scmp.ge.s32.totalorder %s28, 2
    %s30 = scalar_select %p29, 0, %s28
    %s31 = ssub.s32 %s18, %s30
    %s32 = ssub.s32 %s19, %s26
    %s33 = sor.u32 %s31, %s32
    %p34 = scmp.eq.s32.totalorder %s33, 0
    %s36 = sadd.s32 %s35, 1
    %s37 = scalar_select %p34, %s35, %s36
    %p40 = pneg %p34
    %p41 = scmp.eq.s32.totalorder %s11, 1
    %p42 = por %p40, %p41
    %p43 = scmp.ne.s32.totalorder %s35, %s38
    %p44 = scmp.eq.s32.totalorder %s11, 0
    %p45 = por %p43, %p44
    %p46 = scmp.ne.s32.totalorder %s35, %s38
    %p47 = scmp.eq.s32.totalorder %s16, 1
    %p48 = por %p46, %p47
    %p49 = scmp.ne.s32.totalorder %s38, %s39
    %p50 = scmp.eq.s32.totalorder %s16, 0
    %p51 = por %p49, %p50
    %p52 = scmp.ne.s32.totalorder %s38, %s39
    %p53 = scmp.eq.s32.totalorder %s17, 1
    %p54 = por %p52, %p53
    %p56 = scmp.ne.s32.totalorder %s39, %s55
    %p57 = scmp.eq.s32.totalorder %s17, 0
    %p58 = por %p56, %p57
    %s59 = ssub.s32 %s18, %s30
    %s60 = ssub.s32 %s19, %s26
    %s61 = sor.u32 %s59, %s60
    %p62 = scmp.eq.s32.totalorder %s61, 0
    %s64 = sadd.s32 %s63, 1
    %s65 = scalar_select %p62, %s63, %s64
    %p68 = pneg %p62
    %p69 = scmp.eq.s32.totalorder %s11, 1
    %p70 = por %p68, %p69
    %p71 = scmp.ne.s32.totalorder %s63, %s66
    %p72 = scmp.eq.s32.totalorder %s11, 0
    %p73 = por %p71, %p72
    %p74 = scmp.ne.s32.totalorder %s63, %s66
    %p75 = scmp.eq.s32.totalorder %s16, 1
    %p76 = por %p74, %p75
    %p77 = scmp.ne.s32.totalorder %s66, %s67
    %p78 = scmp.eq.s32.totalorder %s16, 0
    %p79 = por %p77, %p78
    %p80 = scmp.ne.s32.totalorder %s66, %s67
    %p81 = scmp.eq.s32.totalorder %s17, 1
    %p82 = por %p80, %p81
    %p84 = scmp.ne.s32.totalorder %s67, %s83
    %p85 = scmp.eq.s32.totalorder %s17, 0
    %p86 = por %p84, %p85
    %s88 = sadd.s32 %s87, 1
    %p91 = scmp.eq.s32.totalorder %s11, 1
    %p92 = scmp.ne.s32.totalorder %s87, %s89
    %p93 = scmp.eq.s32.totalorder %s11, 0
    %p94 = por %p92, %p93
    %p95 = scmp.ne.s32.totalorder %s87, %s89
    %p96 = scmp.eq.s32.totalorder %s16, 1
    %p97 = por %p95, %p96
    %p98 = scmp.ne.s32.totalorder %s89, %s90
    %p99 = scmp.eq.s32.totalorder %s16, 0
    %p100 = por %p98, %p99
    %p101 = scmp.ne.s32.totalorder %s89, %s90
    %p102 = scmp.eq.s32.totalorder %s17, 1
    %p103 = por %p101, %p102
    %p105 = scmp.ne.s32.totalorder %s90, %s104
    %p106 = scmp.eq.s32.totalorder %s17, 0
    %p107 = por %p105, %p106
    %s109 = sadd.s32 %s108, 1
    %p112 = scmp.eq.s32.totalorder %s11, 1
    %p113 = scmp.ne.s32.totalorder %s108, %s110
    %p114 = scmp.eq.s32.totalorder %s11, 0
    %p115 = por %p113, %p114
    %p116 = scmp.ne.s32.totalorder %s108, %s110
    %p117 = scmp.eq.s32.totalorder %s16, 1
    %p118 = por %p116, %p117
    %p119 = scmp.ne.s32.totalorder %s110, %s111
    %p120 = scmp.eq.s32.totalorder %s16, 0
    %p121 = por %p119, %p120
    %p122 = scmp.ne.s32.totalorder %s110, %s111
    %p123 = scmp.eq.s32.totalorder %s17, 1
    %p124 = por %p122, %p123
    %p126 = scmp.ne.s32.totalorder %s111, %s125
    %p127 = scmp.eq.s32.totalorder %s17, 0
    %p128 = por %p126, %p127
    %s130 = sadd.s32 %s129, 1
    %p133 = scmp.eq.s32.totalorder %s11, 1
    %p134 = scmp.ne.s32.totalorder %s129, %s131
    %p135 = scmp.eq.s32.totalorder %s11, 0
    %p136 = por %p134, %p135
    %p137 = scmp.ne.s32.totalorder %s129, %s131
    %p138 = scmp.eq.s32.totalorder %s16, 1
    %p139 = por %p137, %p138
    %p140 = scmp.ne.s32.totalorder %s131, %s132
    %p141 = scmp.eq.s32.totalorder %s16, 0
    %p142 = por %p140, %p141
    %p143 = scmp.ne.s32.totalorder %s131, %s132
    %p144 = scmp.eq.s32.totalorder %s17, 1
    %p145 = por %p143, %p144
    %p147 = scmp.ne.s32.totalorder %s132, %s146
    %p148 = scmp.eq.s32.totalorder %s17, 0
    %p149 = por %p147, %p148
    %s150 = ssub.s32 %s18, %s30
    %s151 = ssub.s32 %s19, %s26
    %s152 = sor.u32 %s150, %s151
    %p153 = scmp.eq.s32.totalorder %s152, 0
    %s155 = sadd.s32 %s154, 1
    %s156 = scalar_select %p153, %s154, %s155
    %p159 = pneg %p153
    %p160 = scmp.eq.s32.totalorder %s11, 1
    %p161 = por %p159, %p160
    %p162 = scmp.ne.s32.totalorder %s154, %s157
    %p163 = scmp.eq.s32.totalorder %s11, 0
    %p164 = por %p162, %p163
    %p165 = scmp.ne.s32.totalorder %s154, %s157
    %p166 = scmp.eq.s32.totalorder %s16, 1
    %p167 = por %p165, %p166
    %p168 = scmp.ne.s32.totalorder %s157, %s158
    %p169 = scmp.eq.s32.totalorder %s16, 0
    %p170 = por %p168, %p169
    %p171 = scmp.ne.s32.totalorder %s157, %s158
    %p172 = scmp.eq.s32.totalorder %s17, 1
    %p173 = por %p171, %p172
    %p175 = scmp.ne.s32.totalorder %s158, %s174
    %p176 = scmp.eq.s32.totalorder %s17, 0
    %p177 = por %p175, %p176
    %p178 = scmp.le.s32.totalorder 1, %s11
    %p179 = scmp.lt.s32.totalorder %s11, 3
    %p180 = pnand %p178, %p179
    %p181 = pneg %p180
    // Predicated region
    $region9: #{ghost_c3_fwd.7} parent=5 // pred_check
      _
    $region10: #{ghost_c3_fwd.7} parent=5 // pred_check_branch
      %183 = sbr.rel (%p180) target = $region12
    $region11: #{ghost_c3_fwd.7} parent=5 // pred_region
      %s184 = ssub.s32 %s11, 1
      // Predicated region
      $region13: #{ghost_c3_fwd.7} parent=11 // pred_check
        %p185 = pneg %p100
      $region14: #{ghost_c3_fwd.7} parent=11 // pred_check_branch
        %187 = sbr.rel (%p185) target = $region16
      $region15: #{ghost_c3_fwd.7} parent=11 // pred_region
        _
      $region16: #{ghost_c3_fwd.7} parent=11 // pred_fallthru
        _
      // Predicated region
      $region17: #{ghost_c3_fwd.7} parent=11 // pred_check
        %p188 = pneg %p121
      $region18: #{ghost_c3_fwd.7} parent=11 // pred_check_branch
        %190 = sbr.rel (%p188) target = $region20
      $region19: #{ghost_c3_fwd.7} parent=11 // pred_region
        _
      $region20: #{ghost_c3_fwd.7} parent=11 // pred_fallthru
        _
      // Predicated region
      $region21: #{ghost_c3_fwd.7} parent=11 // pred_check
        %p191 = pneg %p142
      $region22: #{ghost_c3_fwd.7} parent=11 // pred_check_branch
        %193 = sbr.rel (%p191) target = $region24
      $region23: #{ghost_c3_fwd.7} parent=11 // pred_region
        _
      $region24: #{ghost_c3_fwd.7} parent=11 // pred_fallthru
        _
    $region12: #{ghost_c3_fwd.7} parent=5 // pred_fallthru
      _
    %p194 = scmp.lt.s32.totalorder %s11, 2
    // Predicated region
    $region25: #{ghost_c3_fwd.7} parent=5 // pred_check
      %p195 = pneg %p194
    $region26: #{ghost_c3_fwd.7} parent=5 // pred_check_branch
      %197 = sbr.rel (%p195) target = $region28
    $region27: #{ghost_c3_fwd.7} parent=5 // pred_region
      // Predicated region
      $region29: #{ghost_c3_fwd.7} parent=27 // pred_check
        %p198 = pneg %p45
      $region30: #{ghost_c3_fwd.7} parent=27 // pred_check_branch
        %200 = sbr.rel (%p198) target = $region32
      $region31: #{ghost_c3_fwd.7} parent=27 // pred_region
        %s201 = smul.u32 2, %s19
        %p202 = scmp.lt.s32.totalorder %s18, 1
        %s203 = scalar_select %p202, %s18, 1
        %p204 = scmp.lt.s32.totalorder %s201, 1
        %s205 = scalar_select %p204, %s201, 1
        %s206 = smul.addr %s203, 2
        %s207 = sadd.s32 %s205, %s206
        %s208 = smul.addr %s207, 4
        %s209 = scalar_lea.vmem %s0, %s208
        %s210 = smul.u32 2, %s19
      $region32: #{ghost_c3_fwd.7} parent=27 // pred_fallthru
        _
      // Predicated region
      $region33: #{ghost_c3_fwd.7} parent=27 // pred_check
        %p211 = pneg %p73
      $region34: #{ghost_c3_fwd.7} parent=27 // pred_check_branch
        %213 = sbr.rel (%p211) target = $region36
      $region35: #{ghost_c3_fwd.7} parent=27 // pred_region
        %s214 = smul.u32 2, %s19
        %p215 = scmp.lt.s32.totalorder %s18, 1
        %s216 = scalar_select %p215, %s18, 1
        %p217 = scmp.lt.s32.totalorder %s214, 1
        %s218 = scalar_select %p217, %s214, 1
        %s219 = smul.addr %s216, 2
        %s220 = sadd.s32 %s218, %s219
        %s221 = smul.addr %s220, 4
        %s222 = scalar_lea.vmem %s1, %s221
        %s223 = smul.u32 2, %s19
      $region36: #{ghost_c3_fwd.7} parent=27 // pred_fallthru
        _
    $region28: #{ghost_c3_fwd.7} parent=5 // pred_fallthru
      _
    %p224 = scmp.le.s32.totalorder 1, %s11
    %p225 = scmp.lt.s32.totalorder %s11, 3
    %p226 = pnand %p224, %p225
    %p227 = pneg %p226
    // Predicated region
    $region37: #{ghost_c3_fwd.7} parent=5 // pred_check
      _
    $region38: #{ghost_c3_fwd.7} parent=5 // pred_check_branch
      %229 = sbr.rel (%p226) target = $region40
    $region39: #{ghost_c3_fwd.7} parent=5 // pred_region
      %s230 = ssub.s32 %s11, 1
      %s231 = smul.u32 2, %s21
      %p232 = scmp.lt.s32.totalorder %s20, 1
      %s233 = scalar_select %p232, %s20, 1
      %p234 = scmp.lt.s32.totalorder %s231, 1
      %s235 = scalar_select %p234, %s231, 1
      %s236 = smul.addr %s233, 2
      %s237 = sadd.s32 %s235, %s236
      %s238 = smul.addr %s237, 4
      %s239 = scalar_lea.vmem %s0, %s238
      %p240 = pneg %p51
      %p241 = pneg %p48
      %s242 = smul.u32 2, %s21
      %p243 = scmp.lt.s32.totalorder %s20, 1
      %s244 = scalar_select %p243, %s20, 1
      %p245 = scmp.lt.s32.totalorder %s242, 1
      %s246 = scalar_select %p245, %s242, 1
      %s247 = smul.addr %s244, 2
      %s248 = sadd.s32 %s246, %s247
      %s249 = smul.addr %s248, 4
      %s250 = scalar_lea.vmem %s1, %s249
      %p251 = pneg %p79
      %p252 = pneg %p76
      %p253 = pneg %p100
      %p254 = pneg %p97
      %p255 = pneg %p121
      %p256 = pneg %p118
      %p257 = pneg %p142
      %p258 = pneg %p139
      %p259 = pneg %p170
      %p260 = pneg %p167
      %s261 = smul.u32 2, %s21
      %p262 = scmp.lt.s32.totalorder %s20, 1
      %s263 = scalar_select %p262, %s20, 1
      %p264 = scmp.lt.s32.totalorder %s261, 1
      %s265 = scalar_select %p264, %s261, 1
      %s266 = smul.addr %s263, 2
      %s267 = sadd.s32 %s265, %s266
      %s268 = smul.addr %s267, 8
      %s269 = scalar_lea.vmem %s5, %s268
      %s270 = smul.u32 2, %s21
      %p271 = scmp.lt.s32.totalorder %s20, 1
      %s272 = scalar_select %p271, %s20, 1
      %p273 = scmp.lt.s32.totalorder %s270, 1
      %s274 = scalar_select %p273, %s270, 1
      %s275 = smul.addr %s272, 2
      %s276 = sadd.s32 %s274, %s275
      %s277 = smul.addr %s276, 4
      %s278 = scalar_lea.vmem %s0, %s277
      %s279 = smul.u32 2, %s21
      %s280 = smul.u32 2, %s21
      %p281 = scmp.lt.s32.totalorder %s20, 1
      %s282 = scalar_select %p281, %s20, 1
      %p283 = scmp.lt.s32.totalorder %s280, 1
      %s284 = scalar_select %p283, %s280, 1
      %s285 = smul.addr %s282, 2
      %s286 = sadd.s32 %s284, %s285
      %s287 = smul.addr %s286, 4
      %s288 = scalar_lea.vmem %s1, %s287
      %s289 = smul.u32 2, %s21
      %s290 = smul.u32 2, %s21
      %p291 = scmp.lt.s32.totalorder %s20, 1
      %s292 = scalar_select %p291, %s20, 1
      %p293 = scmp.lt.s32.totalorder %s290, 1
      %s294 = scalar_select %p293, %s290, 1
      %s295 = smul.addr %s292, 2
      %s296 = sadd.s32 %s294, %s295
      %s297 = smul.addr %s296, 8
      %s298 = scalar_lea.vmem %s5, %s297
      %s299 = smul.u32 2, %s21
      %v300 = vld [vmem:[%s2] sm:$0xff]
      %v301 = vld [vmem:[%s278] sm:$0xff]
      %303 = vset.pattern.permute.xlu0 0
      %304 = vperm.xlu0 %303, %v300
      %v305 = vpop.permute.xlu0 %304
      %v308 = vlaneseq
      %v309 = vshrl.u32 %v308, 7
      %v310 = vsub.s32 0, %v309
      %v311 = vrot.slane %v301, %v310
      %v312 = vlaneseq
      %v313 = vshrl.u32 %v312, 7
      %v314 = vsub.s32 4, %v313
      %v315 = vrot.slane %v301, %v314
      %v318 = vlaneseq
      %v319 = vshrl.u32 %v318, 7
      %v320 = vsub.s32 0, %v319
      %v321 = vrot.slane %v311, %v320
      %v322 = vlaneseq
      %v323 = vshrl.u32 %v322, 7
      %v324 = vsub.s32 0, %v323
      %v325 = vrot.slane %v315, %v324
      %v326 = vmul.f32 %v305, %v321
      %v327 = vmul.f32 %v305, %v325
      %v328 = vadd.f32 %v326, 0.0
      %v329 = vadd.f32 %v327, 0.0
      %330 = vset.pattern.permute.xlu0 1
      %331 = vperm.xlu0 %330, %v300
      %v332 = vpop.permute.xlu0 %331
      %v334 = vlaneseq
      %v335 = vshrl.u32 %v334, 7
      %v336 = vsub.s32 1, %v335
      %v337 = vrot.slane %v301, %v336
      %v338 = vlaneseq
      %v339 = vshrl.u32 %v338, 7
      %v340 = vsub.s32 5, %v339
      %v341 = vrot.slane %v301, %v340
      %v344 = vlaneseq
      %v345 = vshrl.u32 %v344, 7
      %v346 = vsub.s32 1, %v345
      %v347 = vrot.slane %v337, %v346
      %v348 = vlaneseq
      %v349 = vshrl.u32 %v348, 7
      %v350 = vsub.s32 1, %v349
      %v351 = vrot.slane %v341, %v350
      %v352 = vmul.f32 %v332, %v347
      %v353 = vmul.f32 %v332, %v351
      %v354 = vadd.f32 %v328, %v352
      %v355 = vadd.f32 %v329, %v353
      %356 = vset.pattern.permute.xlu0 2
      %357 = vperm.xlu0 %356, %v300
      %v358 = vpop.permute.xlu0 %357
      %v360 = vlaneseq
      %v361 = vshrl.u32 %v360, 7
      %v362 = vsub.s32 2, %v361
      %v363 = vrot.slane %v301, %v362
      %v364 = vlaneseq
      %v365 = vshrl.u32 %v364, 7
      %v366 = vsub.s32 6, %v365
      %v367 = vrot.slane %v301, %v366
      %v370 = vlaneseq
      %v371 = vshrl.u32 %v370, 7
      %v372 = vsub.s32 2, %v371
      %v373 = vrot.slane %v363, %v372
      %v374 = vlaneseq
      %v375 = vshrl.u32 %v374, 7
      %v376 = vsub.s32 2, %v375
      %v377 = vrot.slane %v367, %v376
      %v378 = vmul.f32 %v358, %v373
      %v379 = vmul.f32 %v358, %v377
      %v380 = vadd.f32 %v354, %v378
      %v381 = vadd.f32 %v355, %v379
      %382 = vset.pattern.permute.xlu0 3
      %383 = vperm.xlu0 %382, %v300
      %v384 = vpop.permute.xlu0 %383
      %v386 = vlaneseq
      %v387 = vshrl.u32 %v386, 7
      %v388 = vsub.s32 3, %v387
      %v389 = vrot.slane %v301, %v388
      %v390 = vlaneseq
      %v391 = vshrl.u32 %v390, 7
      %v392 = vsub.s32 7, %v391
      %v393 = vrot.slane %v301, %v392
      %v396 = vlaneseq
      %v397 = vshrl.u32 %v396, 7
      %v398 = vsub.s32 3, %v397
      %v399 = vrot.slane %v389, %v398
      %v400 = vlaneseq
      %v401 = vshrl.u32 %v400, 7
      %v402 = vsub.s32 3, %v401
      %v403 = vrot.slane %v393, %v402
      %v404 = vmul.f32 %v384, %v399
      %v405 = vmul.f32 %v384, %v403
      %v406 = vadd.f32 %v380, %v404
      %v407 = vadd.f32 %v381, %v405
      %v408 = vld [vmem:[%s3] sm:$0xff]
      %v409 = vld [vmem:[%s288] sm:$0xff]
      %411 = vset.pattern.permute.xlu0 0
      %412 = vperm.xlu0 %411, %v408
      %v413 = vpop.permute.xlu0 %412
      %v416 = vlaneseq
      %v417 = vshrl.u32 %v416, 7
      %v418 = vsub.s32 0, %v417
      %v419 = vrot.slane %v409, %v418
      %v420 = vlaneseq
      %v421 = vshrl.u32 %v420, 7
      %v422 = vsub.s32 4, %v421
      %v423 = vrot.slane %v409, %v422
      %v426 = vlaneseq
      %v427 = vshrl.u32 %v426, 7
      %v428 = vsub.s32 0, %v427
      %v429 = vrot.slane %v419, %v428
      %v430 = vlaneseq
      %v431 = vshrl.u32 %v430, 7
      %v432 = vsub.s32 0, %v431
      %v433 = vrot.slane %v423, %v432
      %v434 = vmul.f32 %v413, %v429
      %v435 = vmul.f32 %v413, %v433
      %v436 = vadd.f32 %v406, %v434
      %v437 = vadd.f32 %v407, %v435
      %438 = vset.pattern.permute.xlu0 1
      %439 = vperm.xlu0 %438, %v408
      %v440 = vpop.permute.xlu0 %439
      %v442 = vlaneseq
      %v443 = vshrl.u32 %v442, 7
      %v444 = vsub.s32 1, %v443
      %v445 = vrot.slane %v409, %v444
      %v446 = vlaneseq
      %v447 = vshrl.u32 %v446, 7
      %v448 = vsub.s32 5, %v447
      %v449 = vrot.slane %v409, %v448
      %v452 = vlaneseq
      %v453 = vshrl.u32 %v452, 7
      %v454 = vsub.s32 1, %v453
      %v455 = vrot.slane %v445, %v454
      %v456 = vlaneseq
      %v457 = vshrl.u32 %v456, 7
      %v458 = vsub.s32 1, %v457
      %v459 = vrot.slane %v449, %v458
      %v460 = vmul.f32 %v440, %v455
      %v461 = vmul.f32 %v440, %v459
      %v462 = vadd.f32 %v436, %v460
      %v463 = vadd.f32 %v437, %v461
      %464 = vset.pattern.permute.xlu0 2
      %465 = vperm.xlu0 %464, %v408
      %v466 = vpop.permute.xlu0 %465
      %v468 = vlaneseq
      %v469 = vshrl.u32 %v468, 7
      %v470 = vsub.s32 2, %v469
      %v471 = vrot.slane %v409, %v470
      %v472 = vlaneseq
      %v473 = vshrl.u32 %v472, 7
      %v474 = vsub.s32 6, %v473
      %v475 = vrot.slane %v409, %v474
      %v478 = vlaneseq
      %v479 = vshrl.u32 %v478, 7
      %v480 = vsub.s32 2, %v479
      %v481 = vrot.slane %v471, %v480
      %v482 = vlaneseq
      %v483 = vshrl.u32 %v482, 7
      %v484 = vsub.s32 2, %v483
      %v485 = vrot.slane %v475, %v484
      %v486 = vmul.f32 %v466, %v481
      %v487 = vmul.f32 %v466, %v485
      %v488 = vadd.f32 %v462, %v486
      %v489 = vadd.f32 %v463, %v487
      %490 = vset.pattern.permute.xlu0 3
      %491 = vperm.xlu0 %490, %v408
      %v492 = vpop.permute.xlu0 %491
      %v494 = vlaneseq
      %v495 = vshrl.u32 %v494, 7
      %v496 = vsub.s32 3, %v495
      %v497 = vrot.slane %v409, %v496
      %v498 = vlaneseq
      %v499 = vshrl.u32 %v498, 7
      %v500 = vsub.s32 7, %v499
      %v501 = vrot.slane %v409, %v500
      %v504 = vlaneseq
      %v505 = vshrl.u32 %v504, 7
      %v506 = vsub.s32 3, %v505
      %v507 = vrot.slane %v497, %v506
      %v508 = vlaneseq
      %v509 = vshrl.u32 %v508, 7
      %v510 = vsub.s32 3, %v509
      %v511 = vrot.slane %v501, %v510
      %v512 = vmul.f32 %v492, %v507
      %v513 = vmul.f32 %v492, %v511
      %v514 = vadd.f32 %v488, %v512
      %v515 = vadd.f32 %v489, %v513
      %v516 = vld [vmem:[%s4] sm:$0xff]
      %518 = vset.pattern.permute.xlu0 0
      %519 = vperm.xlu0 %518, %v516
      %v520 = vpop.permute.xlu0 %519
      %v522 = vadd.f32 %v514, %v520
      %v523 = vadd.f32 %v515, %v520
      %v524 = vxor.u32 %v522, 2147483648
      %v525 = vxor.u32 %v523, 2147483648
      %v526 = vmul.f32 %v524, 1.442695
      %v527 = vpow.pop %v526
      %v528 = vmul.f32 %v525, 1.442695
      %v529 = vpow.pop %v528
      %v530 = vadd.f32 %v527, 1.0
      %v531 = vadd.f32 %v529, 1.0
      %v532 = vrcp.pop %v530
      %v533 = vmul.f32 1.0, %v532
      %v534 = vrcp.pop %v531
      %v535 = vmul.f32 1.0, %v534
      %v536 = vmul.f32 %v522, %v533
      %v537 = vmul.f32 %v523, %v535
      %538 = vst [vmem:[%s298] sm:$0xff] %v536
      %539 = vst [vmem:[%s298 + $0x8] sm:$0xff] %v537
      %s540 = smul.u32 2, %s21
      %p541 = scmp.lt.s32.totalorder %s20, 1
      %s542 = scalar_select %p541, %s20, 1
      %p543 = scmp.lt.s32.totalorder %s540, 1
      %s544 = scalar_select %p543, %s540, 1
      %s545 = smul.addr %s542, 2
      %s546 = sadd.s32 %s544, %s545
      %s547 = smul.addr %s546, 8
      %s548 = scalar_lea.vmem %s5, %s547
      // Predicated region
      $region41: #{ghost_c3_fwd.7} parent=39 // pred_check
        %p549 = pneg %p167
      $region42: #{ghost_c3_fwd.7} parent=39 // pred_check_branch
        %551 = sbr.rel (%p549) target = $region44
      $region43: #{ghost_c3_fwd.7} parent=39 // pred_region
        %s552 = smul.u32 2, %s21
      $region44: #{ghost_c3_fwd.7} parent=39 // pred_fallthru
        _
    $region40: #{ghost_c3_fwd.7} parent=5 // pred_fallthru
      _
    %p553 = scmp.le.s32.totalorder 2, %s11
    // Predicated region
    $region45: #{ghost_c3_fwd.7} parent=5 // pred_check
      %p554 = pneg %p553
    $region46: #{ghost_c3_fwd.7} parent=5 // pred_check_branch
      %556 = sbr.rel (%p554) target = $region48
    $region47: #{ghost_c3_fwd.7} parent=5 // pred_region
      %s557 = ssub.s32 %s11, 2
      // Predicated region
      $region49: #{ghost_c3_fwd.7} parent=47 // pred_check
        %p558 = pneg %p173
      $region50: #{ghost_c3_fwd.7} parent=47 // pred_check_branch
        %560 = sbr.rel (%p558) target = $region52
      $region51: #{ghost_c3_fwd.7} parent=47 // pred_region
        %s561 = smul.u32 2, %s23
        %p562 = scmp.lt.s32.totalorder %s22, 1
        %s563 = scalar_select %p562, %s22, 1
        %p564 = scmp.lt.s32.totalorder %s561, 1
        %s565 = scalar_select %p564, %s561, 1
        %s566 = smul.addr %s563, 2
        %s567 = sadd.s32 %s565, %s566
        %s568 = smul.addr %s567, 8
        %s569 = scalar_lea.vmem %s5, %s568
      $region52: #{ghost_c3_fwd.7} parent=47 // pred_fallthru
        _
    $region48: #{ghost_c3_fwd.7} parent=5 // pred_fallthru
      _
  $region6: #{ghost_c3_fwd.7} parent=0 // loop_footer
    %s15 = sadd.s32 1, %s11
  $region7: #{ghost_c3_fwd.7} parent=0 // loop_footer_branch
    %10 = sbr.rel target = $region3
  $region8: #{ghost_c3_fwd.7} parent=0 // loop_exit
    _

// kernel: ghost_c3_fwd.5
$region0: #{ghost_c3_fwd.5}
  #allocation0 [shape = 'u32[]', space=smem, size = 0x4, offset = 0x4, fixed_abs, tag = 'smem constant byte address 0x4 - core index']
  #allocation1 [shape = 'u32[144,128]{1,0:T(1,128)}', space=vmem, size = 0x12000, scoped, tag = 'internal scratch']
  #allocation2 [shape = 'f32[1,20,20]{2,1,0:T(8,128)}', space=vmem, size = 0x3000, scoped, tag = 'scratch operand']
  #allocation3 [shape = 'f32[1]{0:T(128)S(6)}', space=smem, size = 0x200, scoped, tag = 'scoped memory for ghost_c3_fwd.5']
  #allocation4 [shape = 'f32[1]{0:T(128)S(6)}', space=smem, size = 0x200, scoped, tag = 'scoped memory for ghost_c3_fwd.5']
  %s0 = inlined_call_operand.vmem [shape: f32[2,4,16,16], index: 0, kind: input, shape index: {}]
  %s1 = inlined_call_operand.vmem [shape: f32[1,4], index: 1, kind: input, shape index: {}]
  %s2 = inlined_call_operand.<no memory space> [shape: f32[1], index: 2, kind: input, shape index: {}]
  %s3 = inlined_call_operand.vmem [shape: f32[1,25], index: 3, kind: input, shape index: {}]
  %s4 = inlined_call_operand.<no memory space> [shape: f32[1], index: 4, kind: input, shape index: {}]
  %s5 = inlined_call_operand.vmem [shape: f32[2,2,16,16], index: 5, kind: output, shape index: {}]
  %s6 = sld [smem:[#allocation0]]
  $region61: #{ghost_c3_fwd.5} parent=0
    _
  %s8 = ssub.s32 1, %s6
  %s9 = scalar_select 0, %s8, %s6
  %10 = sst [smem:[#allocation3]] %s2
  %11 = sst [smem:[#allocation4]] %s4
  $region1: #{ghost_c3_fwd.5} parent=0
    #allocation5 [shape = 'u8[512]{0}', space=smem, size = 0x200, scoped, tag = 'input window, operand 1, single buffered']
    #allocation6 [shape = 's32[2]{0}', space=sflag, size = 0x8, scoped, tag = 'scoped memory for ghost_c3_fwd.5']
    #allocation7 [shape = 'u8[512]{0}', space=smem, size = 0x200, scoped, tag = 'input window, operand 3, single buffered']
    #allocation8 [shape = 's32[1]{0}', space=sflag, size = 0x4, scoped, tag = 'scoped memory for ghost_c3_fwd.5']
    %12 = vsyncpa [#allocation6], 0
    %13 = vsyncpa [#allocation8], 0
    loop: start=0, step=1, limit=4
    $region2: #{ghost_c3_fwd.5} parent=1 // loop_pre_header
      _
    $region3: #{ghost_c3_fwd.5} parent=1 // loop_header
      %s15 = sphi 0, %s19
      %p16 = scmp.ge.s32.totalorder %s15, 4
      %s25 = sphi 0, %s27
      %s28 = sphi 0, %s25
      %s29 = sphi 0, %s28
      %s45 = sphi 0, %s29
      %s49 = sphi 0, %s49
      %s51 = sphi 0, %s49
      %s52 = sphi 0, %s51
      %s66 = sphi 0, %s52
      %s70 = sphi 0, %s70
      %s72 = sphi 0, %s70
      %s73 = sphi 0, %s72
      %s87 = sphi 0, %s73
      %s91 = sphi 0, %s91
      %s93 = sphi 0, %s91
      %s94 = sphi 0, %s93
      %s108 = sphi 0, %s94
      %s112 = sphi 0, %s112
      %s114 = sphi 0, %s112
      %s115 = sphi 0, %s114
      %s129 = sphi 0, %s115
      %s135 = sphi 0, %s137
      %s138 = sphi 0, %s135
      %s139 = sphi 0, %s138
      %s155 = sphi 0, %s139
    $region4: #{ghost_c3_fwd.5} parent=1 // loop_header_branch
      %18 = sbr.rel (%p16) target = $region8
    $region5: #{ghost_c3_fwd.5} parent=1 // loop_body
      %s20 = ssub.s32 %s15, 1
      %s21 = ssub.s32 %s15, 2
      %s22 = sadd.s32 %s15, 1
      %s23 = ssub.s32 %s15, %s22
      %p24 = scmp.eq.s32.totalorder %s23, 0
      %s26 = sadd.s32 %s25, 1
      %s27 = scalar_select %p24, %s25, %s26
      %p30 = pneg %p24
      %p31 = scmp.eq.s32.totalorder %s15, 1
      %p32 = por %p30, %p31
      %p33 = scmp.ne.s32.totalorder %s25, %s28
      %p34 = scmp.eq.s32.totalorder %s15, 0
      %p35 = por %p33, %p34
      %p36 = scmp.ne.s32.totalorder %s25, %s28
      %p37 = scmp.eq.s32.totalorder %s20, 1
      %p38 = por %p36, %p37
      %p39 = scmp.ne.s32.totalorder %s28, %s29
      %p40 = scmp.eq.s32.totalorder %s20, 0
      %p41 = por %p39, %p40
      %p42 = scmp.ne.s32.totalorder %s28, %s29
      %p43 = scmp.eq.s32.totalorder %s21, 1
      %p44 = por %p42, %p43
      %p46 = scmp.ne.s32.totalorder %s29, %s45
      %p47 = scmp.eq.s32.totalorder %s21, 0
      %p48 = por %p46, %p47
      %s50 = sadd.s32 %s49, 1
      %p53 = scmp.eq.s32.totalorder %s15, 1
      %p54 = scmp.ne.s32.totalorder %s49, %s51
      %p55 = scmp.eq.s32.totalorder %s15, 0
      %p56 = por %p54, %p55
      %p57 = scmp.ne.s32.totalorder %s49, %s51
      %p58 = scmp.eq.s32.totalorder %s20, 1
      %p59 = por %p57, %p58
      %p60 = scmp.ne.s32.totalorder %s51, %s52
      %p61 = scmp.eq.s32.totalorder %s20, 0
      %p62 = por %p60, %p61
      %p63 = scmp.ne.s32.totalorder %s51, %s52
      %p64 = scmp.eq.s32.totalorder %s21, 1
      %p65 = por %p63, %p64
      %p67 = scmp.ne.s32.totalorder %s52, %s66
      %p68 = scmp.eq.s32.totalorder %s21, 0
      %p69 = por %p67, %p68
      %s71 = sadd.s32 %s70, 1
      %p74 = scmp.eq.s32.totalorder %s15, 1
      %p75 = scmp.ne.s32.totalorder %s70, %s72
      %p76 = scmp.eq.s32.totalorder %s15, 0
      %p77 = por %p75, %p76
      %p78 = scmp.ne.s32.totalorder %s70, %s72
      %p79 = scmp.eq.s32.totalorder %s20, 1
      %p80 = por %p78, %p79
      %p81 = scmp.ne.s32.totalorder %s72, %s73
      %p82 = scmp.eq.s32.totalorder %s20, 0
      %p83 = por %p81, %p82
      %p84 = scmp.ne.s32.totalorder %s72, %s73
      %p85 = scmp.eq.s32.totalorder %s21, 1
      %p86 = por %p84, %p85
      %p88 = scmp.ne.s32.totalorder %s73, %s87
      %p89 = scmp.eq.s32.totalorder %s21, 0
      %p90 = por %p88, %p89
      %s92 = sadd.s32 %s91, 1
      %p95 = scmp.eq.s32.totalorder %s15, 1
      %p96 = scmp.ne.s32.totalorder %s91, %s93
      %p97 = scmp.eq.s32.totalorder %s15, 0
      %p98 = por %p96, %p97
      %p99 = scmp.ne.s32.totalorder %s91, %s93
      %p100 = scmp.eq.s32.totalorder %s20, 1
      %p101 = por %p99, %p100
      %p102 = scmp.ne.s32.totalorder %s93, %s94
      %p103 = scmp.eq.s32.totalorder %s20, 0
      %p104 = por %p102, %p103
      %p105 = scmp.ne.s32.totalorder %s93, %s94
      %p106 = scmp.eq.s32.totalorder %s21, 1
      %p107 = por %p105, %p106
      %p109 = scmp.ne.s32.totalorder %s94, %s108
      %p110 = scmp.eq.s32.totalorder %s21, 0
      %p111 = por %p109, %p110
      %s113 = sadd.s32 %s112, 1
      %p116 = scmp.eq.s32.totalorder %s15, 1
      %p117 = scmp.ne.s32.totalorder %s112, %s114
      %p118 = scmp.eq.s32.totalorder %s15, 0
      %p119 = por %p117, %p118
      %p120 = scmp.ne.s32.totalorder %s112, %s114
      %p121 = scmp.eq.s32.totalorder %s20, 1
      %p122 = por %p120, %p121
      %p123 = scmp.ne.s32.totalorder %s114, %s115
      %p124 = scmp.eq.s32.totalorder %s20, 0
      %p125 = por %p123, %p124
      %p126 = scmp.ne.s32.totalorder %s114, %s115
      %p127 = scmp.eq.s32.totalorder %s21, 1
      %p128 = por %p126, %p127
      %p130 = scmp.ne.s32.totalorder %s115, %s129
      %p131 = scmp.eq.s32.totalorder %s21, 0
      %p132 = por %p130, %p131
      %s133 = ssub.s32 %s15, %s22
      %p134 = scmp.eq.s32.totalorder %s133, 0
      %s136 = sadd.s32 %s135, 1
      %s137 = scalar_select %p134, %s135, %s136
      %p140 = pneg %p134
      %p141 = scmp.eq.s32.totalorder %s15, 1
      %p142 = por %p140, %p141
      %p143 = scmp.ne.s32.totalorder %s135, %s138
      %p144 = scmp.eq.s32.totalorder %s15, 0
      %p145 = por %p143, %p144
      %p146 = scmp.ne.s32.totalorder %s135, %s138
      %p147 = scmp.eq.s32.totalorder %s20, 1
      %p148 = por %p146, %p147
      %p149 = scmp.ne.s32.totalorder %s138, %s139
      %p150 = scmp.eq.s32.totalorder %s20, 0
      %p151 = por %p149, %p150
      %p152 = scmp.ne.s32.totalorder %s138, %s139
      %p153 = scmp.eq.s32.totalorder %s21, 1
      %p154 = por %p152, %p153
      %p156 = scmp.ne.s32.totalorder %s139, %s155
      %p157 = scmp.eq.s32.totalorder %s21, 0
      %p158 = por %p156, %p157
      %p159 = scmp.le.s32.totalorder 1, %s15
      %p160 = scmp.lt.s32.totalorder %s15, 3
      %p161 = pnand %p159, %p160
      %p162 = pneg %p161
      // Predicated region
      $region9: #{ghost_c3_fwd.5} parent=5 // pred_check
        _
      $region10: #{ghost_c3_fwd.5} parent=5 // pred_check_branch
        %164 = sbr.rel (%p161) target = $region12
      $region11: #{ghost_c3_fwd.5} parent=5 // pred_region
        %s165 = ssub.s32 %s15, 1
        // Predicated region
        $region13: #{ghost_c3_fwd.5} parent=11 // pred_check
          %p166 = pneg %p62
        $region14: #{ghost_c3_fwd.5} parent=11 // pred_check_branch
          %168 = sbr.rel (%p166) target = $region16
        $region15: #{ghost_c3_fwd.5} parent=11 // pred_region
          %s170 = ssub.s32 16, 16
          %171 = vsyncadd [#allocation6], %s170
          %s173 = sshll.u32 %s1, 4
          %s174 = int_to_ptr.vmem [resolvable:$true] %s173
          %176 = dma.vmem_to_smem %s174, 16, [#allocation5], [#allocation6]
        $region16: #{ghost_c3_fwd.5} parent=11 // pred_fallthru
          _
        // Predicated region
        $region17: #{ghost_c3_fwd.5} parent=11 // pred_check
          %p177 = pneg %p83
        $region18: #{ghost_c3_fwd.5} parent=11 // pred_check_branch
          %179 = sbr.rel (%p177) target = $region20
        $region19: #{ghost_c3_fwd.5} parent=11 // pred_region
          _
        $region20: #{ghost_c3_fwd.5} parent=11 // pred_fallthru
          _
        // Predicated region
        $region21: #{ghost_c3_fwd.5} parent=11 // pred_check
          %p180 = pneg %p104
        $region22: #{ghost_c3_fwd.5} parent=11 // pred_check_branch
          %182 = sbr.rel (%p180) target = $region24
        $region23: #{ghost_c3_fwd.5} parent=11 // pred_region
          %s184 = ssub.s32 16, 16
          %185 = vsyncadd [#allocation8], %s184
          %s187 = sshll.u32 %s3, 4
          %s188 = int_to_ptr.vmem [resolvable:$true] %s187
          %190 = dma.vmem_to_smem %s188, 16, [#allocation7], [#allocation8]
        $region24: #{ghost_c3_fwd.5} parent=11 // pred_fallthru
          _
        // Predicated region
        $region25: #{ghost_c3_fwd.5} parent=11 // pred_check
          %p191 = pneg %p125
        $region26: #{ghost_c3_fwd.5} parent=11 // pred_check_branch
          %193 = sbr.rel (%p191) target = $region28
        $region27: #{ghost_c3_fwd.5} parent=11 // pred_region
          _
        $region28: #{ghost_c3_fwd.5} parent=11 // pred_fallthru
          _
      $region12: #{ghost_c3_fwd.5} parent=5 // pred_fallthru
        _
      %p194 = scmp.lt.s32.totalorder %s15, 2
      // Predicated region
      $region29: #{ghost_c3_fwd.5} parent=5 // pred_check
        %p195 = pneg %p194
      $region30: #{ghost_c3_fwd.5} parent=5 // pred_check_branch
        %197 = sbr.rel (%p195) target = $region32
      $region31: #{ghost_c3_fwd.5} parent=5 // pred_region
        // Predicated region
        $region33: #{ghost_c3_fwd.5} parent=31 // pred_check
          %p198 = pneg %p35
        $region34: #{ghost_c3_fwd.5} parent=31 // pred_check_branch
          %200 = sbr.rel (%p198) target = $region36
        $region35: #{ghost_c3_fwd.5} parent=31 // pred_region
          %p201 = scmp.lt.s32.totalorder %s15, 1
          %s202 = scalar_select %p201, %s15, 1
          %s203 = smul.addr %s202, 8
          %s204 = smul.addr %s203, 8
          %s205 = scalar_lea.vmem %s0, %s204
        $region36: #{ghost_c3_fwd.5} parent=31 // pred_fallthru
          _
      $region32: #{ghost_c3_fwd.5} parent=5 // pred_fallthru
        _
      %p206 = scmp.le.s32.totalorder 1, %s15
      %p207 = scmp.lt.s32.totalorder %s15, 3
      %p208 = pnand %p206, %p207
      %p209 = pneg %p208
      // Predicated region
      $region37: #{ghost_c3_fwd.5} parent=5 // pred_check
        _
      $region38: #{ghost_c3_fwd.5} parent=5 // pred_check_branch
        %211 = sbr.rel (%p208) target = $region40
      $region39: #{ghost_c3_fwd.5} parent=5 // pred_region
        %s212 = ssub.s32 %s15, 1
        // Predicated region
        $region41: #{ghost_c3_fwd.5} parent=39 // pred_check
          %p213 = pneg %p62
        $region42: #{ghost_c3_fwd.5} parent=39 // pred_check_branch
          %215 = sbr.rel (%p213) target = $region44
        $region43: #{ghost_c3_fwd.5} parent=39 // pred_region
          %216 = dma.done [#allocation6], 16
        $region44: #{ghost_c3_fwd.5} parent=39 // pred_fallthru
          _
        // Predicated region
        $region45: #{ghost_c3_fwd.5} parent=39 // pred_check
          %p217 = pneg %p104
        $region46: #{ghost_c3_fwd.5} parent=39 // pred_check_branch
          %219 = sbr.rel (%p217) target = $region48
        $region47: #{ghost_c3_fwd.5} parent=39 // pred_region
          %220 = dma.done [#allocation8], 16
        $region48: #{ghost_c3_fwd.5} parent=39 // pred_fallthru
          _
        %221 = sfence
        %p222 = scmp.lt.s32.totalorder %s20, 1
        %s223 = scalar_select %p222, %s20, 1
        %s224 = smul.addr %s223, 8
        %s225 = smul.addr %s224, 8
        %s226 = scalar_lea.vmem %s0, %s225
        %p227 = pneg %p41
        %p228 = pneg %p38
        %p229 = pneg %p62
        %p230 = pneg %p59
        %p231 = pneg %p83
        %p232 = pneg %p80
        %p233 = pneg %p104
        %p234 = pneg %p101
        %p235 = pneg %p125
        %p236 = pneg %p122
        %p237 = pneg %p151
        %p238 = pneg %p148
        %p239 = scmp.lt.s32.totalorder %s20, 1
        %s240 = scalar_select %p239, %s20, 1
        %s241 = smul.addr %s240, 4
        %s242 = smul.addr %s241, 8
        %s243 = scalar_lea.vmem %s5, %s242
        %p244 = scmp.lt.s32.totalorder %s20, 1
        %s245 = scalar_select %p244, %s20, 1
        %s246 = smul.addr %s245, 8
        %s247 = smul.addr %s246, 8
        %s248 = scalar_lea.vmem %s0, %s247
        %p249 = scmp.lt.s32.totalorder %s20, 1
        %s250 = scalar_select %p249, %s20, 1
        %s251 = smul.addr %s250, 4
        %s252 = smul.addr %s251, 8
        %s253 = scalar_lea.vmem %s5, %s252
        %vm254 = vcmask 162816
        %255 = vst.msk [vmem:[#allocation2] sm:$0xff] %vm254, 0.0
        %256 = vst.msk [vmem:[#allocation2 + $0x8] sm:$0xff] %vm254, 0.0
        %vm257 = vcmask 158720
        %258 = vst.msk [vmem:[#allocation2 + $0x10] sm:$0xf] %vm257, 0.0
        %s259 = sld [smem:[#allocation5]]
        %v260 = vld [vmem:[%s248] sm:$0xff]
        %v261 = vld [vmem:[%s248 + $0x8] sm:$0xff]
        %v262 = vstv %s259
        %v263 = vmul.f32 %v262, %v260
        %v264 = vmul.f32 %v262, %v261
        %v265 = vadd.f32 %v263, 0.0
        %v266 = vadd.f32 %v264, 0.0
        %s267 = sld [smem:[#allocation5 + $0x1]]
        %s268 = scalar_lea.vmem %s248, 16
        %v269 = vld [vmem:[%s268] sm:$0xff]
        %v270 = vld [vmem:[%s268 + $0x8] sm:$0xff]
        %v271 = vstv %s267
        %v272 = vmul.f32 %v271, %v269
        %v273 = vmul.f32 %v271, %v270
        %v274 = vadd.f32 %v265, %v272
        %v275 = vadd.f32 %v266, %v273
        %s276 = sld [smem:[#allocation5 + $0x2]]
        %s277 = scalar_lea.vmem %s248, 32
        %v278 = vld [vmem:[%s277] sm:$0xff]
        %v279 = vld [vmem:[%s277 + $0x8] sm:$0xff]
        %v280 = vstv %s276
        %v281 = vmul.f32 %v280, %v278
        %v282 = vmul.f32 %v280, %v279
        %v283 = vadd.f32 %v274, %v281
        %v284 = vadd.f32 %v275, %v282
        %s285 = sld [smem:[#allocation5 + $0x3]]
        %s286 = scalar_lea.vmem %s248, 48
        %v287 = vld [vmem:[%s286] sm:$0xff]
        %v288 = vld [vmem:[%s286 + $0x8] sm:$0xff]
        %v289 = vstv %s285
        %v290 = vmul.f32 %v289, %v287
        %v291 = vmul.f32 %v289, %v288
        %v292 = vadd.f32 %v283, %v290
        %v293 = vadd.f32 %v284, %v291
        %s294 = sld [smem:[#allocation3]]
        %v295 = vstv %s294
        %v296 = vadd.f32 %v292, %v295
        %v297 = vadd.f32 %v293, %v295
        %v298 = vxor.u32 %v296, 2147483648
        %v299 = vxor.u32 %v297, 2147483648
        %v300 = vmul.f32 %v298, 1.442695
        %v301 = vpow.pop %v300
        %v302 = vmul.f32 %v299, 1.442695
        %v303 = vpow.pop %v302
        %v304 = vadd.f32 %v301, 1.0
        %v305 = vadd.f32 %v303, 1.0
        %v306 = vrcp.pop %v304
        %v307 = vmul.f32 1.0, %v306
        %v308 = vrcp.pop %v305
        %v309 = vmul.f32 1.0, %v308
        %v310 = vmul.f32 %v296, %v307
        %v311 = vmul.f32 %v297, %v309
        %314 = vrot.lane.b32.xlu0 %v310, 2
        %v315 = vpop.permute.xlu0 %314
        %316 = vrot.lane.b32.xlu0 %v311, 2
        %v317 = vpop.permute.xlu0 %316
        %vm320 = vcmask 146448
        %321 = vst.msk [vmem:[#allocation2 + $0x2] sm:$0xff] %vm320, %v315
        %322 = vst.msk [vmem:[#allocation2 + $0xa] sm:$0xff] %vm320, %v317
        %vm323 = vcmask 130048
        %324 = vst.msk [vmem:[%s253] sm:$0xff] %vm323, %v310
        %325 = vst.msk [vmem:[%s253 + $0x8] sm:$0xff] %vm323, %v311
        %v326 = vld [vmem:[#allocation2] sm:$0xff]
        %v327 = vld [vmem:[#allocation2 + $0x8] sm:$0xff]
        %s328 = sld [smem:[#allocation7]]
        %v329 = vstv %s328
        %v330 = vmul.f32 %v326, %v329
        %v331 = vmul.f32 %v327, %v329
        %v332 = vadd.f32 %v330, 0.0
        %v333 = vadd.f32 %v331, 0.0
        %s334 = sld [smem:[#allocation7 + $0x1]]
        %v335 = vstv %s334
        %v336 = vmul.f32 %v326, %v335
        %v337 = vmul.f32 %v327, %v335
        %340 = vrot.lane.b32.xlu0 %v336, 127
        %v341 = vpop.permute.xlu0 %340
        %342 = vrot.lane.b32.xlu0 %v337, 127
        %v343 = vpop.permute.xlu0 %342
        %v346 = vadd.f32 %v332, %v341
        %v347 = vadd.f32 %v333, %v343
        %s348 = sld [smem:[#allocation7 + $0x2]]
        %v349 = vstv %s348
        %v350 = vmul.f32 %v326, %v349
        %v351 = vmul.f32 %v327, %v349
        %354 = vrot.lane.b32.xlu0 %v350, 126
        %v355 = vpop.permute.xlu0 %354
        %356 = vrot.lane.b32.xlu0 %v351, 126
        %v357 = vpop.permute.xlu0 %356
        %v360 = vadd.f32 %v346, %v355
        %v361 = vadd.f32 %v347, %v357
        %s362 = sld [smem:[#allocation7 + $0x3]]
        %v363 = vstv %s362
        %v364 = vmul.f32 %v326, %v363
        %v365 = vmul.f32 %v327, %v363
        %368 = vrot.lane.b32.xlu0 %v364, 125
        %v369 = vpop.permute.xlu0 %368
        %370 = vrot.lane.b32.xlu0 %v365, 125
        %v371 = vpop.permute.xlu0 %370
        %v374 = vadd.f32 %v360, %v369
        %v375 = vadd.f32 %v361, %v371
        %s376 = sld [smem:[#allocation7 + $0x4]]
        %v377 = vstv %s376
        %v378 = vmul.f32 %v326, %v377
        %v379 = vmul.f32 %v327, %v377
        %382 = vrot.lane.b32.xlu0 %v378, 124
        %v383 = vpop.permute.xlu0 %382
        %384 = vrot.lane.b32.xlu0 %v379, 124
        %v385 = vpop.permute.xlu0 %384
        %v388 = vadd.f32 %v374, %v383
        %v389 = vadd.f32 %v375, %v385
        %v390 = vld [vmem:[#allocation2 + $0x1] sm:$0xff]
        %v391 = vld [vmem:[#allocation2 + $0x9] sm:$0xff]
        %s392 = sld [smem:[#allocation7 + $0x5]]
        %v393 = vstv %s392
        %v394 = vmul.f32 %v390, %v393
        %v395 = vmul.f32 %v391, %v393
        %v396 = vadd.f32 %v388, %v394
        %v397 = vadd.f32 %v389, %v395
        %s398 = sld [smem:[#allocation7 + $0x6]]
        %v399 = vstv %s398
        %v400 = vmul.f32 %v390, %v399
        %v401 = vmul.f32 %v391, %v399
        %404 = vrot.lane.b32.xlu0 %v400, 127
        %v405 = vpop.permute.xlu0 %404
        %406 = vrot.lane.b32.xlu0 %v401, 127
        %v407 = vpop.permute.xlu0 %406
        %v410 = vadd.f32 %v396, %v405
        %v411 = vadd.f32 %v397, %v407
        %s412 = sld [smem:[#allocation7 + $0x7]]
        %v413 = vstv %s412
        %v414 = vmul.f32 %v390, %v413
        %v415 = vmul.f32 %v391, %v413
        %418 = vrot.lane.b32.xlu0 %v414, 126
        %v419 = vpop.permute.xlu0 %418
        %420 = vrot.lane.b32.xlu0 %v415, 126
        %v421 = vpop.permute.xlu0 %420
        %v424 = vadd.f32 %v410, %v419
        %v425 = vadd.f32 %v411, %v421
        %s426 = sld [smem:[#allocation7 + $0x8]]
        %v427 = vstv %s426
        %v428 = vmul.f32 %v390, %v427
        %v429 = vmul.f32 %v391, %v427
        %432 = vrot.lane.b32.xlu0 %v428, 125
        %v433 = vpop.permute.xlu0 %432
        %434 = vrot.lane.b32.xlu0 %v429, 125
        %v435 = vpop.permute.xlu0 %434
        %v438 = vadd.f32 %v424, %v433
        %v439 = vadd.f32 %v425, %v435
        %s440 = sld [smem:[#allocation7 + $0x9]]
        %v441 = vstv %s440
        %v442 = vmul.f32 %v390, %v441
        %v443 = vmul.f32 %v391, %v441
        %446 = vrot.lane.b32.xlu0 %v442, 124
        %v447 = vpop.permute.xlu0 %446
        %448 = vrot.lane.b32.xlu0 %v443, 124
        %v449 = vpop.permute.xlu0 %448
        %v452 = vadd.f32 %v438, %v447
        %v453 = vadd.f32 %v439, %v449
        %v454 = vld [vmem:[#allocation2 + $0x2] sm:$0xff]
        %v455 = vld [vmem:[#allocation2 + $0xa] sm:$0xff]
        %s456 = sld [smem:[#allocation7 + $0xa]]
        %v457 = vstv %s456
        %v458 = vmul.f32 %v454, %v457
        %v459 = vmul.f32 %v455, %v457
        %v460 = vadd.f32 %v452, %v458
        %v461 = vadd.f32 %v453, %v459
        %s462 = sld [smem:[#allocation7 + $0xb]]
        %v463 = vstv %s462
        %v464 = vmul.f32 %v454, %v463
        %v465 = vmul.f32 %v455, %v463
        %468 = vrot.lane.b32.xlu0 %v464, 127
        %v469 = vpop.permute.xlu0 %468
        %470 = vrot.lane.b32.xlu0 %v465, 127
        %v471 = vpop.permute.xlu0 %470
        %v474 = vadd.f32 %v460, %v469
        %v475 = vadd.f32 %v461, %v471
        %s476 = sld [smem:[#allocation7 + $0xc]]
        %v477 = vstv %s476
        %v478 = vmul.f32 %v454, %v477
        %v479 = vmul.f32 %v455, %v477
        %482 = vrot.lane.b32.xlu0 %v478, 126
        %v483 = vpop.permute.xlu0 %482
        %484 = vrot.lane.b32.xlu0 %v479, 126
        %v485 = vpop.permute.xlu0 %484
        %v488 = vadd.f32 %v474, %v483
        %v489 = vadd.f32 %v475, %v485
        %s490 = sld [smem:[#allocation7 + $0xd]]
        %v491 = vstv %s490
        %v492 = vmul.f32 %v454, %v491
        %v493 = vmul.f32 %v455, %v491
        %496 = vrot.lane.b32.xlu0 %v492, 125
        %v497 = vpop.permute.xlu0 %496
        %498 = vrot.lane.b32.xlu0 %v493, 125
        %v499 = vpop.permute.xlu0 %498
        %v502 = vadd.f32 %v488, %v497
        %v503 = vadd.f32 %v489, %v499
        %s504 = sld [smem:[#allocation7 + $0xe]]
        %v505 = vstv %s504
        %v506 = vmul.f32 %v454, %v505
        %v507 = vmul.f32 %v455, %v505
        %510 = vrot.lane.b32.xlu0 %v506, 124
        %v511 = vpop.permute.xlu0 %510
        %512 = vrot.lane.b32.xlu0 %v507, 124
        %v513 = vpop.permute.xlu0 %512
        %v516 = vadd.f32 %v502, %v511
        %v517 = vadd.f32 %v503, %v513
        %v518 = vld [vmem:[#allocation2 + $0x3] sm:$0xff]
        %v519 = vld [vmem:[#allocation2 + $0xb] sm:$0xff]
        %s520 = sld [smem:[#allocation7 + $0xf]]
        %v521 = vstv %s520
        %v522 = vmul.f32 %v518, %v521
        %v523 = vmul.f32 %v519, %v521
        %v524 = vadd.f32 %v516, %v522
        %v525 = vadd.f32 %v517, %v523
        %s526 = sld [smem:[#allocation7 + $0x10]]
        %v527 = vstv %s526
        %v528 = vmul.f32 %v518, %v527
        %v529 = vmul.f32 %v519, %v527
        %532 = vrot.lane.b32.xlu0 %v528, 127
        %v533 = vpop.permute.xlu0 %532
        %534 = vrot.lane.b32.xlu0 %v529, 127
        %v535 = vpop.permute.xlu0 %534
        %v538 = vadd.f32 %v524, %v533
        %v539 = vadd.f32 %v525, %v535
        %s540 = sld [smem:[#allocation7 + $0x11]]
        %v541 = vstv %s540
        %v542 = vmul.f32 %v518, %v541
        %v543 = vmul.f32 %v519, %v541
        %546 = vrot.lane.b32.xlu0 %v542, 126
        %v547 = vpop.permute.xlu0 %546
        %548 = vrot.lane.b32.xlu0 %v543, 126
        %v549 = vpop.permute.xlu0 %548
        %v552 = vadd.f32 %v538, %v547
        %v553 = vadd.f32 %v539, %v549
        %s554 = sld [smem:[#allocation7 + $0x12]]
        %v555 = vstv %s554
        %v556 = vmul.f32 %v518, %v555
        %v557 = vmul.f32 %v519, %v555
        %560 = vrot.lane.b32.xlu0 %v556, 125
        %v561 = vpop.permute.xlu0 %560
        %562 = vrot.lane.b32.xlu0 %v557, 125
        %v563 = vpop.permute.xlu0 %562
        %v566 = vadd.f32 %v552, %v561
        %v567 = vadd.f32 %v553, %v563
        %s568 = sld [smem:[#allocation7 + $0x13]]
        %v569 = vstv %s568
        %v570 = vmul.f32 %v518, %v569
        %v571 = vmul.f32 %v519, %v569
        %574 = vrot.lane.b32.xlu0 %v570, 124
        %v575 = vpop.permute.xlu0 %574
        %576 = vrot.lane.b32.xlu0 %v571, 124
        %v577 = vpop.permute.xlu0 %576
        %v580 = vadd.f32 %v566, %v575
        %v581 = vadd.f32 %v567, %v577
        %v582 = vld [vmem:[#allocation2 + $0x4] sm:$0xff]
        %v583 = vld [vmem:[#allocation2 + $0xc] sm:$0xff]
        %s584 = sld [smem:[#allocation7 + $0x14]]
        %v585 = vstv %s584
        %v586 = vmul.f32 %v582, %v585
        %v587 = vmul.f32 %v583, %v585
        %v588 = vadd.f32 %v580, %v586
        %v589 = vadd.f32 %v581, %v587
        %s590 = sld [smem:[#allocation7 + $0x15]]
        %v591 = vstv %s590
        %v592 = vmul.f32 %v582, %v591
        %v593 = vmul.f32 %v583, %v591
        %596 = vrot.lane.b32.xlu0 %v592, 127
        %v597 = vpop.permute.xlu0 %596
        %598 = vrot.lane.b32.xlu0 %v593, 127
        %v599 = vpop.permute.xlu0 %598
        %v602 = vadd.f32 %v588, %v597
        %v603 = vadd.f32 %v589, %v599
        %s604 = sld [smem:[#allocation7 + $0x16]]
        %v605 = vstv %s604
        %v606 = vmul.f32 %v582, %v605
        %v607 = vmul.f32 %v583, %v605
        %610 = vrot.lane.b32.xlu0 %v606, 126
        %v611 = vpop.permute.xlu0 %610
        %612 = vrot.lane.b32.xlu0 %v607, 126
        %v613 = vpop.permute.xlu0 %612
        %v616 = vadd.f32 %v602, %v611
        %v617 = vadd.f32 %v603, %v613
        %s618 = sld [smem:[#allocation7 + $0x17]]
        %v619 = vstv %s618
        %v620 = vmul.f32 %v582, %v619
        %v621 = vmul.f32 %v583, %v619
        %624 = vrot.lane.b32.xlu0 %v620, 125
        %v625 = vpop.permute.xlu0 %624
        %626 = vrot.lane.b32.xlu0 %v621, 125
        %v627 = vpop.permute.xlu0 %626
        %v630 = vadd.f32 %v616, %v625
        %v631 = vadd.f32 %v617, %v627
        %s632 = sld [smem:[#allocation7 + $0x18]]
        %v633 = vstv %s632
        %v634 = vmul.f32 %v582, %v633
        %v635 = vmul.f32 %v583, %v633
        %638 = vrot.lane.b32.xlu0 %v634, 124
        %v639 = vpop.permute.xlu0 %638
        %640 = vrot.lane.b32.xlu0 %v635, 124
        %v641 = vpop.permute.xlu0 %640
        %v644 = vadd.f32 %v630, %v639
        %v645 = vadd.f32 %v631, %v641
        %s646 = sld [smem:[#allocation4]]
        %v647 = vstv %s646
        %v648 = vadd.f32 %v644, %v647
        %v649 = vadd.f32 %v645, %v647
        %v650 = vxor.u32 %v648, 2147483648
        %v651 = vxor.u32 %v649, 2147483648
        %v652 = vmul.f32 %v650, 1.442695
        %v653 = vpow.pop %v652
        %v654 = vmul.f32 %v651, 1.442695
        %v655 = vpow.pop %v654
        %v656 = vadd.f32 %v653, 1.0
        %v657 = vadd.f32 %v655, 1.0
        %v658 = vrcp.pop %v656
        %v659 = vmul.f32 1.0, %v658
        %v660 = vrcp.pop %v657
        %v661 = vmul.f32 1.0, %v660
        %v662 = vmul.f32 %v648, %v659
        %v663 = vmul.f32 %v649, %v661
        %s664 = scalar_lea.vmem %s253, 16
        %665 = vst.msk [vmem:[%s664] sm:$0xff] %vm323, %v662
        %666 = vst.msk [vmem:[%s664 + $0x8] sm:$0xff] %vm323, %v663
        %p667 = scmp.lt.s32.totalorder %s20, 1
        %s668 = scalar_select %p667, %s20, 1
        %s669 = smul.addr %s668, 4
        %s670 = smul.addr %s669, 8
        %s671 = scalar_lea.vmem %s5, %s670
        // Predicated region
        $region49: #{ghost_c3_fwd.5} parent=39 // pred_check
          %p672 = pneg %p148
        $region50: #{ghost_c3_fwd.5} parent=39 // pred_check_branch
          %674 = sbr.rel (%p672) target = $region52
        $region51: #{ghost_c3_fwd.5} parent=39 // pred_region
          _
        $region52: #{ghost_c3_fwd.5} parent=39 // pred_fallthru
          _
      $region40: #{ghost_c3_fwd.5} parent=5 // pred_fallthru
        _
      %p675 = scmp.le.s32.totalorder 2, %s15
      // Predicated region
      $region53: #{ghost_c3_fwd.5} parent=5 // pred_check
        %p676 = pneg %p675
      $region54: #{ghost_c3_fwd.5} parent=5 // pred_check_branch
        %678 = sbr.rel (%p676) target = $region56
      $region55: #{ghost_c3_fwd.5} parent=5 // pred_region
        %s679 = ssub.s32 %s15, 2
        // Predicated region
        $region57: #{ghost_c3_fwd.5} parent=55 // pred_check
          %p680 = pneg %p154
        $region58: #{ghost_c3_fwd.5} parent=55 // pred_check_branch
          %682 = sbr.rel (%p680) target = $region60
        $region59: #{ghost_c3_fwd.5} parent=55 // pred_region
          %p683 = scmp.lt.s32.totalorder %s21, 1
          %s684 = scalar_select %p683, %s21, 1
          %s685 = smul.addr %s684, 4
          %s686 = smul.addr %s685, 8
          %s687 = scalar_lea.vmem %s5, %s686
        $region60: #{ghost_c3_fwd.5} parent=55 // pred_fallthru
          _
      $region56: #{ghost_c3_fwd.5} parent=5 // pred_fallthru
        _
    $region6: #{ghost_c3_fwd.5} parent=1 // loop_footer
      %s19 = sadd.s32 1, %s15
    $region7: #{ghost_c3_fwd.5} parent=1 // loop_footer_branch
      %14 = sbr.rel target = $region3
    $region8: #{ghost_c3_fwd.5} parent=1 // loop_exit
      _
    %688 = vsyncpa [#allocation6], 1
    %s689 = scalar_lea.sflag [#allocation6], 1
    %690 = vsyncpa %s689, 1
    %691 = vsyncpa [#allocation8], 1

// kernel: ghost_c3_fwd.6
$region0: #{ghost_c3_fwd.6}
  #allocation0 [shape = 'u32[]', space=smem, size = 0x4, offset = 0x4, fixed_abs, tag = 'smem constant byte address 0x4 - core index']
  #allocation1 [shape = 'u32[144,128]{1,0:T(1,128)}', space=vmem, size = 0x12000, scoped, tag = 'internal scratch']
  #allocation2 [shape = 'f32[2,20,20]{2,1,0:T(8,128)}', space=vmem, size = 0x6000, scoped, tag = 'scratch operand']
  %s0 = inlined_call_operand.vmem [shape: f32[2,2,16,16], index: 0, kind: input, shape index: {}]
  %s1 = inlined_call_operand.vmem [shape: f32[2,2], index: 1, kind: input, shape index: {}]
  %s2 = inlined_call_operand.vmem [shape: f32[2], index: 2, kind: input, shape index: {}]
  %s3 = inlined_call_operand.vmem [shape: f32[2,25], index: 3, kind: input, shape index: {}]
  %s4 = inlined_call_operand.vmem [shape: f32[2], index: 4, kind: input, shape index: {}]
  %s5 = inlined_call_operand.vmem [shape: f32[2,4,16,16], index: 5, kind: input, shape index: {}]
  %s6 = inlined_call_operand.vmem [shape: f32[2,4,16,16], index: 6, kind: output, shape index: {}]
  %s7 = sld [smem:[#allocation0]]
  $region73: #{ghost_c3_fwd.6} parent=0
    _
  %s9 = ssub.s32 1, %s7
  %s10 = scalar_select 0, %s9, %s7
  $region1: #{ghost_c3_fwd.6} parent=0
    #allocation3 [shape = 'u8[1024]{0}', space=smem, size = 0x400, scoped, tag = 'input window, operand 1, single buffered']
    #allocation4 [shape = 's32[2]{0}', space=sflag, size = 0x8, scoped, tag = 'scoped memory for ghost_c3_fwd.6']
    #allocation5 [shape = 'u8[512]{0}', space=smem, size = 0x200, scoped, tag = 'input window, operand 2, single buffered']
    #allocation6 [shape = 's32[1]{0}', space=sflag, size = 0x4, scoped, tag = 'scoped memory for ghost_c3_fwd.6']
    #allocation7 [shape = 'u8[1024]{0}', space=smem, size = 0x400, scoped, tag = 'input window, operand 3, single buffered']
    #allocation8 [shape = 'u8[512]{0}', space=smem, size = 0x200, scoped, tag = 'input window, operand 4, single buffered']
    #allocation9 [shape = 's32[1]{0}', space=sflag, size = 0x4, scoped, tag = 'scoped memory for ghost_c3_fwd.6']
    %11 = vsyncpa [#allocation4], 0
    %12 = vsyncpa [#allocation6], 0
    %13 = vsyncpa [#allocation9], 0
    loop: start=0, step=1, limit=4
    $region2: #{ghost_c3_fwd.6} parent=1 // loop_pre_header
      _
    $region3: #{ghost_c3_fwd.6} parent=1 // loop_header
      %s15 = sphi 0, %s19
      %p16 = scmp.ge.s32.totalorder %s15, 4
      %s25 = sphi 0, %s27
      %s28 = sphi 0, %s25
      %s29 = sphi 0, %s28
      %s45 = sphi 0, %s29
      %s49 = sphi 0, %s49
      %s51 = sphi 0, %s49
      %s52 = sphi 0, %s51
      %s66 = sphi 0, %s52
      %s70 = sphi 0, %s70
      %s72 = sphi 0, %s70
      %s73 = sphi 0, %s72
      %s87 = sphi 0, %s73
      %s91 = sphi 0, %s91
      %s93 = sphi 0, %s91
      %s94 = sphi 0, %s93
      %s108 = sphi 0, %s94
      %s112 = sphi 0, %s112
      %s114 = sphi 0, %s112
      %s115 = sphi 0, %s114
      %s129 = sphi 0, %s115
      %s135 = sphi 0, %s137
      %s138 = sphi 0, %s135
      %s139 = sphi 0, %s138
      %s155 = sphi 0, %s139
      %s161 = sphi 0, %s163
      %s164 = sphi 0, %s161
      %s165 = sphi 0, %s164
      %s181 = sphi 0, %s165
    $region4: #{ghost_c3_fwd.6} parent=1 // loop_header_branch
      %18 = sbr.rel (%p16) target = $region8
    $region5: #{ghost_c3_fwd.6} parent=1 // loop_body
      %s20 = ssub.s32 %s15, 1
      %s21 = ssub.s32 %s15, 2
      %s22 = sadd.s32 %s15, 1
      %s23 = ssub.s32 %s15, %s22
      %p24 = scmp.eq.s32.totalorder %s23, 0
      %s26 = sadd.s32 %s25, 1
      %s27 = scalar_select %p24, %s25, %s26
      %p30 = pneg %p24
      %p31 = scmp.eq.s32.totalorder %s15, 1
      %p32 = por %p30, %p31
      %p33 = scmp.ne.s32.totalorder %s25, %s28
      %p34 = scmp.eq.s32.totalorder %s15, 0
      %p35 = por %p33, %p34
      %p36 = scmp.ne.s32.totalorder %s25, %s28
      %p37 = scmp.eq.s32.totalorder %s20, 1
      %p38 = por %p36, %p37
      %p39 = scmp.ne.s32.totalorder %s28, %s29
      %p40 = scmp.eq.s32.totalorder %s20, 0
      %p41 = por %p39, %p40
      %p42 = scmp.ne.s32.totalorder %s28, %s29
      %p43 = scmp.eq.s32.totalorder %s21, 1
      %p44 = por %p42, %p43
      %p46 = scmp.ne.s32.totalorder %s29, %s45
      %p47 = scmp.eq.s32.totalorder %s21, 0
      %p48 = por %p46, %p47
      %s50 = sadd.s32 %s49, 1
      %p53 = scmp.eq.s32.totalorder %s15, 1
      %p54 = scmp.ne.s32.totalorder %s49, %s51
      %p55 = scmp.eq.s32.totalorder %s15, 0
      %p56 = por %p54, %p55
      %p57 = scmp.ne.s32.totalorder %s49, %s51
      %p58 = scmp.eq.s32.totalorder %s20, 1
      %p59 = por %p57, %p58
      %p60 = scmp.ne.s32.totalorder %s51, %s52
      %p61 = scmp.eq.s32.totalorder %s20, 0
      %p62 = por %p60, %p61
      %p63 = scmp.ne.s32.totalorder %s51, %s52
      %p64 = scmp.eq.s32.totalorder %s21, 1
      %p65 = por %p63, %p64
      %p67 = scmp.ne.s32.totalorder %s52, %s66
      %p68 = scmp.eq.s32.totalorder %s21, 0
      %p69 = por %p67, %p68
      %s71 = sadd.s32 %s70, 1
      %p74 = scmp.eq.s32.totalorder %s15, 1
      %p75 = scmp.ne.s32.totalorder %s70, %s72
      %p76 = scmp.eq.s32.totalorder %s15, 0
      %p77 = por %p75, %p76
      %p78 = scmp.ne.s32.totalorder %s70, %s72
      %p79 = scmp.eq.s32.totalorder %s20, 1
      %p80 = por %p78, %p79
      %p81 = scmp.ne.s32.totalorder %s72, %s73
      %p82 = scmp.eq.s32.totalorder %s20, 0
      %p83 = por %p81, %p82
      %p84 = scmp.ne.s32.totalorder %s72, %s73
      %p85 = scmp.eq.s32.totalorder %s21, 1
      %p86 = por %p84, %p85
      %p88 = scmp.ne.s32.totalorder %s73, %s87
      %p89 = scmp.eq.s32.totalorder %s21, 0
      %p90 = por %p88, %p89
      %s92 = sadd.s32 %s91, 1
      %p95 = scmp.eq.s32.totalorder %s15, 1
      %p96 = scmp.ne.s32.totalorder %s91, %s93
      %p97 = scmp.eq.s32.totalorder %s15, 0
      %p98 = por %p96, %p97
      %p99 = scmp.ne.s32.totalorder %s91, %s93
      %p100 = scmp.eq.s32.totalorder %s20, 1
      %p101 = por %p99, %p100
      %p102 = scmp.ne.s32.totalorder %s93, %s94
      %p103 = scmp.eq.s32.totalorder %s20, 0
      %p104 = por %p102, %p103
      %p105 = scmp.ne.s32.totalorder %s93, %s94
      %p106 = scmp.eq.s32.totalorder %s21, 1
      %p107 = por %p105, %p106
      %p109 = scmp.ne.s32.totalorder %s94, %s108
      %p110 = scmp.eq.s32.totalorder %s21, 0
      %p111 = por %p109, %p110
      %s113 = sadd.s32 %s112, 1
      %p116 = scmp.eq.s32.totalorder %s15, 1
      %p117 = scmp.ne.s32.totalorder %s112, %s114
      %p118 = scmp.eq.s32.totalorder %s15, 0
      %p119 = por %p117, %p118
      %p120 = scmp.ne.s32.totalorder %s112, %s114
      %p121 = scmp.eq.s32.totalorder %s20, 1
      %p122 = por %p120, %p121
      %p123 = scmp.ne.s32.totalorder %s114, %s115
      %p124 = scmp.eq.s32.totalorder %s20, 0
      %p125 = por %p123, %p124
      %p126 = scmp.ne.s32.totalorder %s114, %s115
      %p127 = scmp.eq.s32.totalorder %s21, 1
      %p128 = por %p126, %p127
      %p130 = scmp.ne.s32.totalorder %s115, %s129
      %p131 = scmp.eq.s32.totalorder %s21, 0
      %p132 = por %p130, %p131
      %s133 = ssub.s32 %s15, %s22
      %p134 = scmp.eq.s32.totalorder %s133, 0
      %s136 = sadd.s32 %s135, 1
      %s137 = scalar_select %p134, %s135, %s136
      %p140 = pneg %p134
      %p141 = scmp.eq.s32.totalorder %s15, 1
      %p142 = por %p140, %p141
      %p143 = scmp.ne.s32.totalorder %s135, %s138
      %p144 = scmp.eq.s32.totalorder %s15, 0
      %p145 = por %p143, %p144
      %p146 = scmp.ne.s32.totalorder %s135, %s138
      %p147 = scmp.eq.s32.totalorder %s20, 1
      %p148 = por %p146, %p147
      %p149 = scmp.ne.s32.totalorder %s138, %s139
      %p150 = scmp.eq.s32.totalorder %s20, 0
      %p151 = por %p149, %p150
      %p152 = scmp.ne.s32.totalorder %s138, %s139
      %p153 = scmp.eq.s32.totalorder %s21, 1
      %p154 = por %p152, %p153
      %p156 = scmp.ne.s32.totalorder %s139, %s155
      %p157 = scmp.eq.s32.totalorder %s21, 0
      %p158 = por %p156, %p157
      %s159 = ssub.s32 %s15, %s22
      %p160 = scmp.eq.s32.totalorder %s159, 0
      %s162 = sadd.s32 %s161, 1
      %s163 = scalar_select %p160, %s161, %s162
      %p166 = pneg %p160
      %p167 = scmp.eq.s32.totalorder %s15, 1
      %p168 = por %p166, %p167
      %p169 = scmp.ne.s32.totalorder %s161, %s164
      %p170 = scmp.eq.s32.totalorder %s15, 0
      %p171 = por %p169, %p170
      %p172 = scmp.ne.s32.totalorder %s161, %s164
      %p173 = scmp.eq.s32.totalorder %s20, 1
      %p174 = por %p172, %p173
      %p175 = scmp.ne.s32.totalorder %s164, %s165
      %p176 = scmp.eq.s32.totalorder %s20, 0
      %p177 = por %p175, %p176
      %p178 = scmp.ne.s32.totalorder %s164, %s165
      %p179 = scmp.eq.s32.totalorder %s21, 1
      %p180 = por %p178, %p179
      %p182 = scmp.ne.s32.totalorder %s165, %s181
      %p183 = scmp.eq.s32.totalorder %s21, 0
      %p184 = por %p182, %p183
      %p185 = scmp.le.s32.totalorder 1, %s15
      %p186 = scmp.lt.s32.totalorder %s15, 3
      %p187 = pnand %p185, %p186
      %p188 = pneg %p187
      // Predicated region
      $region9: #{ghost_c3_fwd.6} parent=5 // pred_check
        _
      $region10: #{ghost_c3_fwd.6} parent=5 // pred_check_branch
        %190 = sbr.rel (%p187) target = $region12
      $region11: #{ghost_c3_fwd.6} parent=5 // pred_region
        %s191 = ssub.s32 %s15, 1
        // Predicated region
        $region13: #{ghost_c3_fwd.6} parent=11 // pred_check
          %p192 = pneg %p62
        $region14: #{ghost_c3_fwd.6} parent=11 // pred_check_branch
          %194 = sbr.rel (%p192) target = $region16
        $region15: #{ghost_c3_fwd.6} parent=11 // pred_region
          %s196 = ssub.s32 32, 32
          %197 = vsyncadd [#allocation4], %s196
          %s199 = sshll.u32 %s1, 4
          %s200 = int_to_ptr.vmem [resolvable:$true] %s199
          %202 = dma.vmem_to_smem %s200, 32, [#allocation3], [#allocation4]
        $region16: #{ghost_c3_fwd.6} parent=11 // pred_fallthru
          _
        // Predicated region
        $region17: #{ghost_c3_fwd.6} parent=11 // pred_check
          %p203 = pneg %p83
        $region18: #{ghost_c3_fwd.6} parent=11 // pred_check_branch
          %205 = sbr.rel (%p203) target = $region20
        $region19: #{ghost_c3_fwd.6} parent=11 // pred_region
          %s207 = ssub.s32 16, 16
          %208 = vsyncadd [#allocation6], %s207
          %s210 = sshll.u32 %s2, 4
          %s211 = int_to_ptr.vmem [resolvable:$true] %s210
          %213 = dma.vmem_to_smem %s211, 16, [#allocation5], [#allocation6]
        $region20: #{ghost_c3_fwd.6} parent=11 // pred_fallthru
          _
        // Predicated region
        $region21: #{ghost_c3_fwd.6} parent=11 // pred_check
          %p214 = pneg %p104
        $region22: #{ghost_c3_fwd.6} parent=11 // pred_check_branch
          %216 = sbr.rel (%p214) target = $region24
        $region23: #{ghost_c3_fwd.6} parent=11 // pred_region
          %s218 = ssub.s32 32, 32
          %219 = vsyncadd [#allocation6], %s218
          %s221 = sshll.u32 %s3, 4
          %s222 = int_to_ptr.vmem [resolvable:$true] %s221
          %224 = dma.vmem_to_smem %s222, 32, [#allocation7], [#allocation6]
        $region24: #{ghost_c3_fwd.6} parent=11 // pred_fallthru
          _
        // Predicated region
        $region25: #{ghost_c3_fwd.6} parent=11 // pred_check
          %p225 = pneg %p125
        $region26: #{ghost_c3_fwd.6} parent=11 // pred_check_branch
          %227 = sbr.rel (%p225) target = $region28
        $region27: #{ghost_c3_fwd.6} parent=11 // pred_region
          %s229 = ssub.s32 16, 16
          %230 = vsyncadd [#allocation9], %s229
          %s232 = sshll.u32 %s4, 4
          %s233 = int_to_ptr.vmem [resolvable:$true] %s232
          %235 = dma.vmem_to_smem %s233, 16, [#allocation8], [#allocation9]
        $region28: #{ghost_c3_fwd.6} parent=11 // pred_fallthru
          _
      $region12: #{ghost_c3_fwd.6} parent=5 // pred_fallthru
        _
      %p236 = scmp.lt.s32.totalorder %s15, 2
      // Predicated region
      $region29: #{ghost_c3_fwd.6} parent=5 // pred_check
        %p237 = pneg %p236
      $region30: #{ghost_c3_fwd.6} parent=5 // pred_check_branch
        %239 = sbr.rel (%p237) target = $region32
      $region31: #{ghost_c3_fwd.6} parent=5 // pred_region
        // Predicated region
        $region33: #{ghost_c3_fwd.6} parent=31 // pred_check
          %p240 = pneg %p35
        $region34: #{ghost_c3_fwd.6} parent=31 // pred_check_branch
          %242 = sbr.rel (%p240) target = $region36
        $region35: #{ghost_c3_fwd.6} parent=31 // pred_region
          %p243 = scmp.lt.s32.totalorder %s15, 1
          %s244 = scalar_select %p243, %s15, 1
          %s245 = smul.addr %s244, 4
          %s246 = smul.addr %s245, 8
          %s247 = scalar_lea.vmem %s0, %s246
        $region36: #{ghost_c3_fwd.6} parent=31 // pred_fallthru
          _
        // Predicated region
        $region37: #{ghost_c3_fwd.6} parent=31 // pred_check
          %p248 = pneg %p145
        $region38: #{ghost_c3_fwd.6} parent=31 // pred_check_branch
          %250 = sbr.rel (%p248) target = $region40
        $region39: #{ghost_c3_fwd.6} parent=31 // pred_region
          %p251 = scmp.lt.s32.totalorder %s15, 1
          %s252 = scalar_select %p251, %s15, 1
          %s253 = smul.addr %s252, 8
          %s254 = smul.addr %s253, 8
          %s255 = scalar_lea.vmem %s5, %s254
        $region40: #{ghost_c3_fwd.6} parent=31 // pred_fallthru
          _
      $region32: #{ghost_c3_fwd.6} parent=5 // pred_fallthru
        _
      %p256 = scmp.le.s32.totalorder 1, %s15
      %p257 = scmp.lt.s32.totalorder %s15, 3
      %p258 = pnand %p256, %p257
      %p259 = pneg %p258
      // Predicated region
      $region41: #{ghost_c3_fwd.6} parent=5 // pred_check
        _
      $region42: #{ghost_c3_fwd.6} parent=5 // pred_check_branch
        %261 = sbr.rel (%p258) target = $region44
      $region43: #{ghost_c3_fwd.6} parent=5 // pred_region
        %s262 = ssub.s32 %s15, 1
        // Predicated region
        $region45: #{ghost_c3_fwd.6} parent=43 // pred_check
          %p263 = pneg %p62
        $region46: #{ghost_c3_fwd.6} parent=43 // pred_check_branch
          %265 = sbr.rel (%p263) target = $region48
        $region47: #{ghost_c3_fwd.6} parent=43 // pred_region
          %266 = dma.done [#allocation4], 32
        $region48: #{ghost_c3_fwd.6} parent=43 // pred_fallthru
          _
        // Predicated region
        $region49: #{ghost_c3_fwd.6} parent=43 // pred_check
          %p267 = pneg %p83
        $region50: #{ghost_c3_fwd.6} parent=43 // pred_check_branch
          %269 = sbr.rel (%p267) target = $region52
        $region51: #{ghost_c3_fwd.6} parent=43 // pred_region
          %270 = dma.done [#allocation6], 16
        $region52: #{ghost_c3_fwd.6} parent=43 // pred_fallthru
          _
        // Predicated region
        $region53: #{ghost_c3_fwd.6} parent=43 // pred_check
          %p271 = pneg %p104
        $region54: #{ghost_c3_fwd.6} parent=43 // pred_check_branch
          %273 = sbr.rel (%p271) target = $region56
        $region55: #{ghost_c3_fwd.6} parent=43 // pred_region
          %274 = dma.done [#allocation6], 32
        $region56: #{ghost_c3_fwd.6} parent=43 // pred_fallthru
          _
        // Predicated region
        $region57: #{ghost_c3_fwd.6} parent=43 // pred_check
          %p275 = pneg %p125
        $region58: #{ghost_c3_fwd.6} parent=43 // pred_check_branch
          %277 = sbr.rel (%p275) target = $region60
        $region59: #{ghost_c3_fwd.6} parent=43 // pred_region
          %278 = dma.done [#allocation9], 16
        $region60: #{ghost_c3_fwd.6} parent=43 // pred_fallthru
          _
        %279 = sfence
        %p280 = scmp.lt.s32.totalorder %s20, 1
        %s281 = scalar_select %p280, %s20, 1
        %s282 = smul.addr %s281, 4
        %s283 = smul.addr %s282, 8
        %s284 = scalar_lea.vmem %s0, %s283
        %p285 = pneg %p41
        %p286 = pneg %p38
        %p287 = pneg %p62
        %p288 = pneg %p59
        %p289 = pneg %p83
        %p290 = pneg %p80
        %p291 = pneg %p104
        %p292 = pneg %p101
        %p293 = pneg %p125
        %p294 = pneg %p122
        %p295 = scmp.lt.s32.totalorder %s20, 1
        %s296 = scalar_select %p295, %s20, 1
        %s297 = smul.addr %s296, 8
        %s298 = smul.addr %s297, 8
        %s299 = scalar_lea.vmem %s5, %s298
        %p300 = pneg %p151
        %p301 = pneg %p148
        %p302 = pneg %p177
        %p303 = pneg %p174
        %p304 = scmp.lt.s32.totalorder %s20, 1
        %s305 = scalar_select %p304, %s20, 1
        %s306 = smul.addr %s305, 8
        %s307 = smul.addr %s306, 8
        %s308 = scalar_lea.vmem %s6, %s307
        %p309 = scmp.lt.s32.totalorder %s20, 1
        %s310 = scalar_select %p309, %s20, 1
        %s311 = smul.addr %s310, 4
        %s312 = smul.addr %s311, 8
        %s313 = scalar_lea.vmem %s0, %s312
        %p314 = scmp.lt.s32.totalorder %s20, 1
        %s315 = scalar_select %p314, %s20, 1
        %s316 = smul.addr %s315, 8
        %s317 = smul.addr %s316, 8
        %s318 = scalar_lea.vmem %s5, %s317
        %p319 = scmp.lt.s32.totalorder %s20, 1
        %s320 = scalar_select %p319, %s20, 1
        %s321 = smul.addr %s320, 8
        %s322 = smul.addr %s321, 8
        %s323 = scalar_lea.vmem %s6, %s322
        %vm324 = vcmask 162816
        %325 = vst.msk [vmem:[#allocation2] sm:$0xff] %vm324, 0.0
        %326 = vst.msk [vmem:[#allocation2 + $0x8] sm:$0xff] %vm324, 0.0
        %vm327 = vcmask 158720
        %328 = vst.msk [vmem:[#allocation2 + $0x10] sm:$0xf] %vm327, 0.0
        %329 = vst.msk [vmem:[#allocation2 + $0x18] sm:$0xff] %vm324, 0.0
        %330 = vst.msk [vmem:[#allocation2 + $0x20] sm:$0xff] %vm324, 0.0
        %331 = vst.msk [vmem:[#allocation2 + $0x28] sm:$0xf] %vm327, 0.0
        %s332 = sld [smem:[#allocation3]]
        %v333 = vld [vmem:[%s313] sm:$0xff]
        %v334 = vld [vmem:[%s313 + $0x8] sm:$0xff]
        %v335 = vstv %s332
        %v336 = vmul.f32 %v335, %v333
        %v337 = vmul.f32 %v335, %v334
        %v338 = vadd.f32 %v336, 0.0
        %v339 = vadd.f32 %v337, 0.0
        %s340 = sld [smem:[#allocation3 + $0x1]]
        %s341 = scalar_lea.vmem %s313, 16
        %v342 = vld [vmem:[%s341] sm:$0xff]
        %v343 = vld [vmem:[%s341 + $0x8] sm:$0xff]
        %v344 = vstv %s340
        %v345 = vmul.f32 %v344, %v342
        %v346 = vmul.f32 %v344, %v343
        %v347 = vadd.f32 %v338, %v345
        %v348 = vadd.f32 %v339, %v346
        %s349 = sld [smem:[#allocation5]]
        %v350 = vstv %s349
        %v351 = vadd.f32 %v347, %v350
        %v352 = vadd.f32 %v348, %v350
        %355 = vrot.lane.b32.xlu0 %v351, 2
        %v356 = vpop.permute.xlu0 %355
        %357 = vrot.lane.b32.xlu0 %v352, 2
        %v358 = vpop.permute.xlu0 %357
        %vm361 = vcmask 146448
        %362 = vst.msk [vmem:[#allocation2 + $0x2] sm:$0xff] %vm361, %v356
        %363 = vst.msk [vmem:[#allocation2 + $0xa] sm:$0xff] %vm361, %v358
        %v364 = vld [vmem:[%s318] sm:$0xff]
        %v365 = vld [vmem:[%s318 + $0x8] sm:$0xff]
        %v366 = vadd.f32 %v351, %v364
        %v367 = vadd.f32 %v352, %v365
        %vm368 = vcmask 130048
        %369 = vst.msk [vmem:[%s323] sm:$0xff] %vm368, %v366
        %370 = vst.msk [vmem:[%s323 + $0x8] sm:$0xff] %vm368, %v367
        %s371 = sld [smem:[#allocation3 + $0x80]]
        %v372 = vld [vmem:[%s313] sm:$0xff]
        %v373 = vld [vmem:[%s313 + $0x8] sm:$0xff]
        %v374 = vstv %s371
        %v375 = vmul.f32 %v374, %v372
        %v376 = vmul.f32 %v374, %v373
        %v377 = vadd.f32 %v375, 0.0
        %v378 = vadd.f32 %v376, 0.0
        %s379 = sld [smem:[#allocation3 + $0x81]]
        %v380 = vld [vmem:[%s341] sm:$0xff]
        %v381 = vld [vmem:[%s341 + $0x8] sm:$0xff]
        %v382 = vstv %s379
        %v383 = vmul.f32 %v382, %v380
        %v384 = vmul.f32 %v382, %v381
        %v385 = vadd.f32 %v377, %v383
        %v386 = vadd.f32 %v378, %v384
        %s387 = sld [smem:[#allocation5 + $0x1]]
        %v388 = vstv %s387
        %v389 = vadd.f32 %v385, %v388
        %v390 = vadd.f32 %v386, %v388
        %393 = vrot.lane.b32.xlu0 %v389, 2
        %v394 = vpop.permute.xlu0 %393
        %395 = vrot.lane.b32.xlu0 %v390, 2
        %v396 = vpop.permute.xlu0 %395
        %s399 = scalar_lea.vmem [#allocation2], 24
        %400 = vst.msk [vmem:[%s399 + $0x2] sm:$0xff] %vm361, %v394
        %401 = vst.msk [vmem:[%s399 + $0xa] sm:$0xff] %vm361, %v396
        %s402 = scalar_lea.vmem %s318, 16
        %v403 = vld [vmem:[%s402] sm:$0xff]
        %v404 = vld [vmem:[%s402 + $0x8] sm:$0xff]
        %v405 = vadd.f32 %v389, %v403
        %v406 = vadd.f32 %v390, %v404
        %s407 = scalar_lea.vmem %s323, 16
        %408 = vst.msk [vmem:[%s407] sm:$0xff] %vm368, %v405
        %409 = vst.msk [vmem:[%s407 + $0x8] sm:$0xff] %vm368, %v406
        %v410 = vld [vmem:[#allocation2] sm:$0xff]
        %v411 = vld [vmem:[#allocation2 + $0x8] sm:$0xff]
        %s412 = sld [smem:[#allocation7]]
        %v413 = vstv %s412
        %v414 = vmul.f32 %v410, %v413
        %v415 = vmul.f32 %v411, %v413
        %v416 = vadd.f32 %v414, 0.0
        %v417 = vadd.f32 %v415, 0.0
        %s418 = sld [smem:[#allocation7 + $0x1]]
        %v419 = vstv %s418
        %v420 = vmul.f32 %v410, %v419
        %v421 = vmul.f32 %v411, %v419
        %424 = vrot.lane.b32.xlu0 %v420, 127
        %v425 = vpop.permute.xlu0 %424
        %426 = vrot.lane.b32.xlu0 %v421, 127
        %v427 = vpop.permute.xlu0 %426
        %v430 = vadd.f32 %v416, %v425
        %v431 = vadd.f32 %v417, %v427
        %s432 = sld [smem:[#allocation7 + $0x2]]
        %v433 = vstv %s432
        %v434 = vmul.f32 %v410, %v433
        %v435 = vmul.f32 %v411, %v433
        %438 = vrot.lane.b32.xlu0 %v434, 126
        %v439 = vpop.permute.xlu0 %438
        %440 = vrot.lane.b32.xlu0 %v435, 126
        %v441 = vpop.permute.xlu0 %440
        %v444 = vadd.f32 %v430, %v439
        %v445 = vadd.f32 %v431, %v441
        %s446 = sld [smem:[#allocation7 + $0x3]]
        %v447 = vstv %s446
        %v448 = vmul.f32 %v410, %v447
        %v449 = vmul.f32 %v411, %v447
        %452 = vrot.lane.b32.xlu0 %v448, 125
        %v453 = vpop.permute.xlu0 %452
        %454 = vrot.lane.b32.xlu0 %v449, 125
        %v455 = vpop.permute.xlu0 %454
        %v458 = vadd.f32 %v444, %v453
        %v459 = vadd.f32 %v445, %v455
        %s460 = sld [smem:[#allocation7 + $0x4]]
        %v461 = vstv %s460
        %v462 = vmul.f32 %v410, %v461
        %v463 = vmul.f32 %v411, %v461
        %466 = vrot.lane.b32.xlu0 %v462, 124
        %v467 = vpop.permute.xlu0 %466
        %468 = vrot.lane.b32.xlu0 %v463, 124
        %v469 = vpop.permute.xlu0 %468
        %v472 = vadd.f32 %v458, %v467
        %v473 = vadd.f32 %v459, %v469
        %v474 = vld [vmem:[#allocation2 + $0x1] sm:$0xff]
        %v475 = vld [vmem:[#allocation2 + $0x9] sm:$0xff]
        %s476 = sld [smem:[#allocation7 + $0x5]]
        %v477 = vstv %s476
        %v478 = vmul.f32 %v474, %v477
        %v479 = vmul.f32 %v475, %v477
        %v480 = vadd.f32 %v472, %v478
        %v481 = vadd.f32 %v473, %v479
        %s482 = sld [smem:[#allocation7 + $0x6]]
        %v483 = vstv %s482
        %v484 = vmul.f32 %v474, %v483
        %v485 = vmul.f32 %v475, %v483
        %488 = vrot.lane.b32.xlu0 %v484, 127
        %v489 = vpop.permute.xlu0 %488
        %490 = vrot.lane.b32.xlu0 %v485, 127
        %v491 = vpop.permute.xlu0 %490
        %v494 = vadd.f32 %v480, %v489
        %v495 = vadd.f32 %v481, %v491
        %s496 = sld [smem:[#allocation7 + $0x7]]
        %v497 = vstv %s496
        %v498 = vmul.f32 %v474, %v497
        %v499 = vmul.f32 %v475, %v497
        %502 = vrot.lane.b32.xlu0 %v498, 126
        %v503 = vpop.permute.xlu0 %502
        %504 = vrot.lane.b32.xlu0 %v499, 126
        %v505 = vpop.permute.xlu0 %504
        %v508 = vadd.f32 %v494, %v503
        %v509 = vadd.f32 %v495, %v505
        %s510 = sld [smem:[#allocation7 + $0x8]]
        %v511 = vstv %s510
        %v512 = vmul.f32 %v474, %v511
        %v513 = vmul.f32 %v475, %v511
        %516 = vrot.lane.b32.xlu0 %v512, 125
        %v517 = vpop.permute.xlu0 %516
        %518 = vrot.lane.b32.xlu0 %v513, 125
        %v519 = vpop.permute.xlu0 %518
        %v522 = vadd.f32 %v508, %v517
        %v523 = vadd.f32 %v509, %v519
        %s524 = sld [smem:[#allocation7 + $0x9]]
        %v525 = vstv %s524
        %v526 = vmul.f32 %v474, %v525
        %v527 = vmul.f32 %v475, %v525
        %530 = vrot.lane.b32.xlu0 %v526, 124
        %v531 = vpop.permute.xlu0 %530
        %532 = vrot.lane.b32.xlu0 %v527, 124
        %v533 = vpop.permute.xlu0 %532
        %v536 = vadd.f32 %v522, %v531
        %v537 = vadd.f32 %v523, %v533
        %v538 = vld [vmem:[#allocation2 + $0x2] sm:$0xff]
        %v539 = vld [vmem:[#allocation2 + $0xa] sm:$0xff]
        %s540 = sld [smem:[#allocation7 + $0xa]]
        %v541 = vstv %s540
        %v542 = vmul.f32 %v538, %v541
        %v543 = vmul.f32 %v539, %v541
        %v544 = vadd.f32 %v536, %v542
        %v545 = vadd.f32 %v537, %v543
        %s546 = sld [smem:[#allocation7 + $0xb]]
        %v547 = vstv %s546
        %v548 = vmul.f32 %v538, %v547
        %v549 = vmul.f32 %v539, %v547
        %552 = vrot.lane.b32.xlu0 %v548, 127
        %v553 = vpop.permute.xlu0 %552
        %554 = vrot.lane.b32.xlu0 %v549, 127
        %v555 = vpop.permute.xlu0 %554
        %v558 = vadd.f32 %v544, %v553
        %v559 = vadd.f32 %v545, %v555
        %s560 = sld [smem:[#allocation7 + $0xc]]
        %v561 = vstv %s560
        %v562 = vmul.f32 %v538, %v561
        %v563 = vmul.f32 %v539, %v561
        %566 = vrot.lane.b32.xlu0 %v562, 126
        %v567 = vpop.permute.xlu0 %566
        %568 = vrot.lane.b32.xlu0 %v563, 126
        %v569 = vpop.permute.xlu0 %568
        %v572 = vadd.f32 %v558, %v567
        %v573 = vadd.f32 %v559, %v569
        %s574 = sld [smem:[#allocation7 + $0xd]]
        %v575 = vstv %s574
        %v576 = vmul.f32 %v538, %v575
        %v577 = vmul.f32 %v539, %v575
        %580 = vrot.lane.b32.xlu0 %v576, 125
        %v581 = vpop.permute.xlu0 %580
        %582 = vrot.lane.b32.xlu0 %v577, 125
        %v583 = vpop.permute.xlu0 %582
        %v586 = vadd.f32 %v572, %v581
        %v587 = vadd.f32 %v573, %v583
        %s588 = sld [smem:[#allocation7 + $0xe]]
        %v589 = vstv %s588
        %v590 = vmul.f32 %v538, %v589
        %v591 = vmul.f32 %v539, %v589
        %594 = vrot.lane.b32.xlu0 %v590, 124
        %v595 = vpop.permute.xlu0 %594
        %596 = vrot.lane.b32.xlu0 %v591, 124
        %v597 = vpop.permute.xlu0 %596
        %v600 = vadd.f32 %v586, %v595
        %v601 = vadd.f32 %v587, %v597
        %v602 = vld [vmem:[#allocation2 + $0x3] sm:$0xff]
        %v603 = vld [vmem:[#allocation2 + $0xb] sm:$0xff]
        %s604 = sld [smem:[#allocation7 + $0xf]]
        %v605 = vstv %s604
        %v606 = vmul.f32 %v602, %v605
        %v607 = vmul.f32 %v603, %v605
        %v608 = vadd.f32 %v600, %v606
        %v609 = vadd.f32 %v601, %v607
        %s610 = sld [smem:[#allocation7 + $0x10]]
        %v611 = vstv %s610
        %v612 = vmul.f32 %v602, %v611
        %v613 = vmul.f32 %v603, %v611
        %616 = vrot.lane.b32.xlu0 %v612, 127
        %v617 = vpop.permute.xlu0 %616
        %618 = vrot.lane.b32.xlu0 %v613, 127
        %v619 = vpop.permute.xlu0 %618
        %v622 = vadd.f32 %v608, %v617
        %v623 = vadd.f32 %v609, %v619
        %s624 = sld [smem:[#allocation7 + $0x11]]
        %v625 = vstv %s624
        %v626 = vmul.f32 %v602, %v625
        %v627 = vmul.f32 %v603, %v625
        %630 = vrot.lane.b32.xlu0 %v626, 126
        %v631 = vpop.permute.xlu0 %630
        %632 = vrot.lane.b32.xlu0 %v627, 126
        %v633 = vpop.permute.xlu0 %632
        %v636 = vadd.f32 %v622, %v631
        %v637 = vadd.f32 %v623, %v633
        %s638 = sld [smem:[#allocation7 + $0x12]]
        %v639 = vstv %s638
        %v640 = vmul.f32 %v602, %v639
        %v641 = vmul.f32 %v603, %v639
        %644 = vrot.lane.b32.xlu0 %v640, 125
        %v645 = vpop.permute.xlu0 %644
        %646 = vrot.lane.b32.xlu0 %v641, 125
        %v647 = vpop.permute.xlu0 %646
        %v650 = vadd.f32 %v636, %v645
        %v651 = vadd.f32 %v637, %v647
        %s652 = sld [smem:[#allocation7 + $0x13]]
        %v653 = vstv %s652
        %v654 = vmul.f32 %v602, %v653
        %v655 = vmul.f32 %v603, %v653
        %658 = vrot.lane.b32.xlu0 %v654, 124
        %v659 = vpop.permute.xlu0 %658
        %660 = vrot.lane.b32.xlu0 %v655, 124
        %v661 = vpop.permute.xlu0 %660
        %v664 = vadd.f32 %v650, %v659
        %v665 = vadd.f32 %v651, %v661
        %v666 = vld [vmem:[#allocation2 + $0x4] sm:$0xff]
        %v667 = vld [vmem:[#allocation2 + $0xc] sm:$0xff]
        %s668 = sld [smem:[#allocation7 + $0x14]]
        %v669 = vstv %s668
        %v670 = vmul.f32 %v666, %v669
        %v671 = vmul.f32 %v667, %v669
        %v672 = vadd.f32 %v664, %v670
        %v673 = vadd.f32 %v665, %v671
        %s674 = sld [smem:[#allocation7 + $0x15]]
        %v675 = vstv %s674
        %v676 = vmul.f32 %v666, %v675
        %v677 = vmul.f32 %v667, %v675
        %680 = vrot.lane.b32.xlu0 %v676, 127
        %v681 = vpop.permute.xlu0 %680
        %682 = vrot.lane.b32.xlu0 %v677, 127
        %v683 = vpop.permute.xlu0 %682
        %v686 = vadd.f32 %v672, %v681
        %v687 = vadd.f32 %v673, %v683
        %s688 = sld [smem:[#allocation7 + $0x16]]
        %v689 = vstv %s688
        %v690 = vmul.f32 %v666, %v689
        %v691 = vmul.f32 %v667, %v689
        %694 = vrot.lane.b32.xlu0 %v690, 126
        %v695 = vpop.permute.xlu0 %694
        %696 = vrot.lane.b32.xlu0 %v691, 126
        %v697 = vpop.permute.xlu0 %696
        %v700 = vadd.f32 %v686, %v695
        %v701 = vadd.f32 %v687, %v697
        %s702 = sld [smem:[#allocation7 + $0x17]]
        %v703 = vstv %s702
        %v704 = vmul.f32 %v666, %v703
        %v705 = vmul.f32 %v667, %v703
        %708 = vrot.lane.b32.xlu0 %v704, 125
        %v709 = vpop.permute.xlu0 %708
        %710 = vrot.lane.b32.xlu0 %v705, 125
        %v711 = vpop.permute.xlu0 %710
        %v714 = vadd.f32 %v700, %v709
        %v715 = vadd.f32 %v701, %v711
        %s716 = sld [smem:[#allocation7 + $0x18]]
        %v717 = vstv %s716
        %v718 = vmul.f32 %v666, %v717
        %v719 = vmul.f32 %v667, %v717
        %722 = vrot.lane.b32.xlu0 %v718, 124
        %v723 = vpop.permute.xlu0 %722
        %724 = vrot.lane.b32.xlu0 %v719, 124
        %v725 = vpop.permute.xlu0 %724
        %v728 = vadd.f32 %v714, %v723
        %v729 = vadd.f32 %v715, %v725
        %s730 = sld [smem:[#allocation8]]
        %v731 = vstv %s730
        %v732 = vadd.f32 %v728, %v731
        %v733 = vadd.f32 %v729, %v731
        %s734 = scalar_lea.vmem %s318, 32
        %v735 = vld [vmem:[%s734] sm:$0xff]
        %v736 = vld [vmem:[%s734 + $0x8] sm:$0xff]
        %v737 = vadd.f32 %v732, %v735
        %v738 = vadd.f32 %v733, %v736
        %s739 = scalar_lea.vmem %s323, 32
        %740 = vst.msk [vmem:[%s739] sm:$0xff] %vm368, %v737
        %741 = vst.msk [vmem:[%s739 + $0x8] sm:$0xff] %vm368, %v738
        %v742 = vld [vmem:[%s399] sm:$0xff]
        %v743 = vld [vmem:[%s399 + $0x8] sm:$0xff]
        %s744 = sld [smem:[#allocation7 + $0x80]]
        %v745 = vstv %s744
        %v746 = vmul.f32 %v742, %v745
        %v747 = vmul.f32 %v743, %v745
        %v748 = vadd.f32 %v746, 0.0
        %v749 = vadd.f32 %v747, 0.0
        %s750 = sld [smem:[#allocation7 + $0x81]]
        %v751 = vstv %s750
        %v752 = vmul.f32 %v742, %v751
        %v753 = vmul.f32 %v743, %v751
        %756 = vrot.lane.b32.xlu0 %v752, 127
        %v757 = vpop.permute.xlu0 %756
        %758 = vrot.lane.b32.xlu0 %v753, 127
        %v759 = vpop.permute.xlu0 %758
        %v762 = vadd.f32 %v748, %v757
        %v763 = vadd.f32 %v749, %v759
        %s764 = sld [smem:[#allocation7 + $0x82]]
        %v765 = vstv %s764
        %v766 = vmul.f32 %v742, %v765
        %v767 = vmul.f32 %v743, %v765
        %770 = vrot.lane.b32.xlu0 %v766, 126
        %v771 = vpop.permute.xlu0 %770
        %772 = vrot.lane.b32.xlu0 %v767, 126
        %v773 = vpop.permute.xlu0 %772
        %v776 = vadd.f32 %v762, %v771
        %v777 = vadd.f32 %v763, %v773
        %s778 = sld [smem:[#allocation7 + $0x83]]
        %v779 = vstv %s778
        %v780 = vmul.f32 %v742, %v779
        %v781 = vmul.f32 %v743, %v779
        %784 = vrot.lane.b32.xlu0 %v780, 125
        %v785 = vpop.permute.xlu0 %784
        %786 = vrot.lane.b32.xlu0 %v781, 125
        %v787 = vpop.permute.xlu0 %786
        %v790 = vadd.f32 %v776, %v785
        %v791 = vadd.f32 %v777, %v787
        %s792 = sld [smem:[#allocation7 + $0x84]]
        %v793 = vstv %s792
        %v794 = vmul.f32 %v742, %v793
        %v795 = vmul.f32 %v743, %v793
        %798 = vrot.lane.b32.xlu0 %v794, 124
        %v799 = vpop.permute.xlu0 %798
        %800 = vrot.lane.b32.xlu0 %v795, 124
        %v801 = vpop.permute.xlu0 %800
        %v804 = vadd.f32 %v790, %v799
        %v805 = vadd.f32 %v791, %v801
        %v806 = vld [vmem:[%s399 + $0x1] sm:$0xff]
        %v807 = vld [vmem:[%s399 + $0x9] sm:$0xff]
        %s808 = sld [smem:[#allocation7 + $0x85]]
        %v809 = vstv %s808
        %v810 = vmul.f32 %v806, %v809
        %v811 = vmul.f32 %v807, %v809
        %v812 = vadd.f32 %v804, %v810
        %v813 = vadd.f32 %v805, %v811
        %s814 = sld [smem:[#allocation7 + $0x86]]
        %v815 = vstv %s814
        %v816 = vmul.f32 %v806, %v815
        %v817 = vmul.f32 %v807, %v815
        %820 = vrot.lane.b32.xlu0 %v816, 127
        %v821 = vpop.permute.xlu0 %820
        %822 = vrot.lane.b32.xlu0 %v817, 127
        %v823 = vpop.permute.xlu0 %822
        %v826 = vadd.f32 %v812, %v821
        %v827 = vadd.f32 %v813, %v823
        %s828 = sld [smem:[#allocation7 + $0x87]]
        %v829 = vstv %s828
        %v830 = vmul.f32 %v806, %v829
        %v831 = vmul.f32 %v807, %v829
        %834 = vrot.lane.b32.xlu0 %v830, 126
        %v835 = vpop.permute.xlu0 %834
        %836 = vrot.lane.b32.xlu0 %v831, 126
        %v837 = vpop.permute.xlu0 %836
        %v840 = vadd.f32 %v826, %v835
        %v841 = vadd.f32 %v827, %v837
        %s842 = sld [smem:[#allocation7 + $0x88]]
        %v843 = vstv %s842
        %v844 = vmul.f32 %v806, %v843
        %v845 = vmul.f32 %v807, %v843
        %848 = vrot.lane.b32.xlu0 %v844, 125
        %v849 = vpop.permute.xlu0 %848
        %850 = vrot.lane.b32.xlu0 %v845, 125
        %v851 = vpop.permute.xlu0 %850
        %v854 = vadd.f32 %v840, %v849
        %v855 = vadd.f32 %v841, %v851
        %s856 = sld [smem:[#allocation7 + $0x89]]
        %v857 = vstv %s856
        %v858 = vmul.f32 %v806, %v857
        %v859 = vmul.f32 %v807, %v857
        %862 = vrot.lane.b32.xlu0 %v858, 124
        %v863 = vpop.permute.xlu0 %862
        %864 = vrot.lane.b32.xlu0 %v859, 124
        %v865 = vpop.permute.xlu0 %864
        %v868 = vadd.f32 %v854, %v863
        %v869 = vadd.f32 %v855, %v865
        %v870 = vld [vmem:[%s399 + $0x2] sm:$0xff]
        %v871 = vld [vmem:[%s399 + $0xa] sm:$0xff]
        %s872 = sld [smem:[#allocation7 + $0x8a]]
        %v873 = vstv %s872
        %v874 = vmul.f32 %v870, %v873
        %v875 = vmul.f32 %v871, %v873
        %v876 = vadd.f32 %v868, %v874
        %v877 = vadd.f32 %v869, %v875
        %s878 = sld [smem:[#allocation7 + $0x8b]]
        %v879 = vstv %s878
        %v880 = vmul.f32 %v870, %v879
        %v881 = vmul.f32 %v871, %v879
        %884 = vrot.lane.b32.xlu0 %v880, 127
        %v885 = vpop.permute.xlu0 %884
        %886 = vrot.lane.b32.xlu0 %v881, 127
        %v887 = vpop.permute.xlu0 %886
        %v890 = vadd.f32 %v876, %v885
        %v891 = vadd.f32 %v877, %v887
        %s892 = sld [smem:[#allocation7 + $0x8c]]
        %v893 = vstv %s892
        %v894 = vmul.f32 %v870, %v893
        %v895 = vmul.f32 %v871, %v893
        %898 = vrot.lane.b32.xlu0 %v894, 126
        %v899 = vpop.permute.xlu0 %898
        %900 = vrot.lane.b32.xlu0 %v895, 126
        %v901 = vpop.permute.xlu0 %900
        %v904 = vadd.f32 %v890, %v899
        %v905 = vadd.f32 %v891, %v901
        %s906 = sld [smem:[#allocation7 + $0x8d]]
        %v907 = vstv %s906
        %v908 = vmul.f32 %v870, %v907
        %v909 = vmul.f32 %v871, %v907
        %912 = vrot.lane.b32.xlu0 %v908, 125
        %v913 = vpop.permute.xlu0 %912
        %914 = vrot.lane.b32.xlu0 %v909, 125
        %v915 = vpop.permute.xlu0 %914
        %v918 = vadd.f32 %v904, %v913
        %v919 = vadd.f32 %v905, %v915
        %s920 = sld [smem:[#allocation7 + $0x8e]]
        %v921 = vstv %s920
        %v922 = vmul.f32 %v870, %v921
        %v923 = vmul.f32 %v871, %v921
        %926 = vrot.lane.b32.xlu0 %v922, 124
        %v927 = vpop.permute.xlu0 %926
        %928 = vrot.lane.b32.xlu0 %v923, 124
        %v929 = vpop.permute.xlu0 %928
        %v932 = vadd.f32 %v918, %v927
        %v933 = vadd.f32 %v919, %v929
        %v934 = vld [vmem:[%s399 + $0x3] sm:$0xff]
        %v935 = vld [vmem:[%s399 + $0xb] sm:$0xff]
        %s936 = sld [smem:[#allocation7 + $0x8f]]
        %v937 = vstv %s936
        %v938 = vmul.f32 %v934, %v937
        %v939 = vmul.f32 %v935, %v937
        %v940 = vadd.f32 %v932, %v938
        %v941 = vadd.f32 %v933, %v939
        %s942 = sld [smem:[#allocation7 + $0x90]]
        %v943 = vstv %s942
        %v944 = vmul.f32 %v934, %v943
        %v945 = vmul.f32 %v935, %v943
        %948 = vrot.lane.b32.xlu0 %v944, 127
        %v949 = vpop.permute.xlu0 %948
        %950 = vrot.lane.b32.xlu0 %v945, 127
        %v951 = vpop.permute.xlu0 %950
        %v954 = vadd.f32 %v940, %v949
        %v955 = vadd.f32 %v941, %v951
        %s956 = sld [smem:[#allocation7 + $0x91]]
        %v957 = vstv %s956
        %v958 = vmul.f32 %v934, %v957
        %v959 = vmul.f32 %v935, %v957
        %962 = vrot.lane.b32.xlu0 %v958, 126
        %v963 = vpop.permute.xlu0 %962
        %964 = vrot.lane.b32.xlu0 %v959, 126
        %v965 = vpop.permute.xlu0 %964
        %v968 = vadd.f32 %v954, %v963
        %v969 = vadd.f32 %v955, %v965
        %s970 = sld [smem:[#allocation7 + $0x92]]
        %v971 = vstv %s970
        %v972 = vmul.f32 %v934, %v971
        %v973 = vmul.f32 %v935, %v971
        %976 = vrot.lane.b32.xlu0 %v972, 125
        %v977 = vpop.permute.xlu0 %976
        %978 = vrot.lane.b32.xlu0 %v973, 125
        %v979 = vpop.permute.xlu0 %978
        %v982 = vadd.f32 %v968, %v977
        %v983 = vadd.f32 %v969, %v979
        %s984 = sld [smem:[#allocation7 + $0x93]]
        %v985 = vstv %s984
        %v986 = vmul.f32 %v934, %v985
        %v987 = vmul.f32 %v935, %v985
        %990 = vrot.lane.b32.xlu0 %v986, 124
        %v991 = vpop.permute.xlu0 %990
        %992 = vrot.lane.b32.xlu0 %v987, 124
        %v993 = vpop.permute.xlu0 %992
        %v996 = vadd.f32 %v982, %v991
        %v997 = vadd.f32 %v983, %v993
        %v998 = vld [vmem:[%s399 + $0x4] sm:$0xff]
        %v999 = vld [vmem:[%s399 + $0xc] sm:$0xff]
        %s1000 = sld [smem:[#allocation7 + $0x94]]
        %v1001 = vstv %s1000
        %v1002 = vmul.f32 %v998, %v1001
        %v1003 = vmul.f32 %v999, %v1001
        %v1004 = vadd.f32 %v996, %v1002
        %v1005 = vadd.f32 %v997, %v1003
        %s1006 = sld [smem:[#allocation7 + $0x95]]
        %v1007 = vstv %s1006
        %v1008 = vmul.f32 %v998, %v1007
        %v1009 = vmul.f32 %v999, %v1007
        %1012 = vrot.lane.b32.xlu0 %v1008, 127
        %v1013 = vpop.permute.xlu0 %1012
        %1014 = vrot.lane.b32.xlu0 %v1009, 127
        %v1015 = vpop.permute.xlu0 %1014
        %v1018 = vadd.f32 %v1004, %v1013
        %v1019 = vadd.f32 %v1005, %v1015
        %s1020 = sld [smem:[#allocation7 + $0x96]]
        %v1021 = vstv %s1020
        %v1022 = vmul.f32 %v998, %v1021
        %v1023 = vmul.f32 %v999, %v1021
        %1026 = vrot.lane.b32.xlu0 %v1022, 126
        %v1027 = vpop.permute.xlu0 %1026
        %1028 = vrot.lane.b32.xlu0 %v1023, 126
        %v1029 = vpop.permute.xlu0 %1028
        %v1032 = vadd.f32 %v1018, %v1027
        %v1033 = vadd.f32 %v1019, %v1029
        %s1034 = sld [smem:[#allocation7 + $0x97]]
        %v1035 = vstv %s1034
        %v1036 = vmul.f32 %v998, %v1035
        %v1037 = vmul.f32 %v999, %v1035
        %1040 = vrot.lane.b32.xlu0 %v1036, 125
        %v1041 = vpop.permute.xlu0 %1040
        %1042 = vrot.lane.b32.xlu0 %v1037, 125
        %v1043 = vpop.permute.xlu0 %1042
        %v1046 = vadd.f32 %v1032, %v1041
        %v1047 = vadd.f32 %v1033, %v1043
        %s1048 = sld [smem:[#allocation7 + $0x98]]
        %v1049 = vstv %s1048
        %v1050 = vmul.f32 %v998, %v1049
        %v1051 = vmul.f32 %v999, %v1049
        %1054 = vrot.lane.b32.xlu0 %v1050, 124
        %v1055 = vpop.permute.xlu0 %1054
        %1056 = vrot.lane.b32.xlu0 %v1051, 124
        %v1057 = vpop.permute.xlu0 %1056
        %v1060 = vadd.f32 %v1046, %v1055
        %v1061 = vadd.f32 %v1047, %v1057
        %s1062 = sld [smem:[#allocation8 + $0x1]]
        %v1063 = vstv %s1062
        %v1064 = vadd.f32 %v1060, %v1063
        %v1065 = vadd.f32 %v1061, %v1063
        %s1066 = scalar_lea.vmem %s318, 48
        %v1067 = vld [vmem:[%s1066] sm:$0xff]
        %v1068 = vld [vmem:[%s1066 + $0x8] sm:$0xff]
        %v1069 = vadd.f32 %v1064, %v1067
        %v1070 = vadd.f32 %v1065, %v1068
        %s1071 = scalar_lea.vmem %s323, 48
        %1072 = vst.msk [vmem:[%s1071] sm:$0xff] %vm368, %v1069
        %1073 = vst.msk [vmem:[%s1071 + $0x8] sm:$0xff] %vm368, %v1070
        %p1074 = scmp.lt.s32.totalorder %s20, 1
        %s1075 = scalar_select %p1074, %s20, 1
        %s1076 = smul.addr %s1075, 8
        %s1077 = smul.addr %s1076, 8
        %s1078 = scalar_lea.vmem %s6, %s1077
        // Predicated region
        $region61: #{ghost_c3_fwd.6} parent=43 // pred_check
          %p1079 = pneg %p174
        $region62: #{ghost_c3_fwd.6} parent=43 // pred_check_branch
          %1081 = sbr.rel (%p1079) target = $region64
        $region63: #{ghost_c3_fwd.6} parent=43 // pred_region
          _
        $region64: #{ghost_c3_fwd.6} parent=43 // pred_fallthru
          _
      $region44: #{ghost_c3_fwd.6} parent=5 // pred_fallthru
        _
      %p1082 = scmp.le.s32.totalorder 2, %s15
      // Predicated region
      $region65: #{ghost_c3_fwd.6} parent=5 // pred_check
        %p1083 = pneg %p1082
      $region66: #{ghost_c3_fwd.6} parent=5 // pred_check_branch
        %1085 = sbr.rel (%p1083) target = $region68
      $region67: #{ghost_c3_fwd.6} parent=5 // pred_region
        %s1086 = ssub.s32 %s15, 2
        // Predicated region
        $region69: #{ghost_c3_fwd.6} parent=67 // pred_check
          %p1087 = pneg %p180
        $region70: #{ghost_c3_fwd.6} parent=67 // pred_check_branch
          %1089 = sbr.rel (%p1087) target = $region72
        $region71: #{ghost_c3_fwd.6} parent=67 // pred_region
          %p1090 = scmp.lt.s32.totalorder %s21, 1
          %s1091 = scalar_select %p1090, %s21, 1
          %s1092 = smul.addr %s1091, 8
          %s1093 = smul.addr %s1092, 8
          %s1094 = scalar_lea.vmem %s6, %s1093
        $region72: #{ghost_c3_fwd.6} parent=67 // pred_fallthru
          _
      $region68: #{ghost_c3_fwd.6} parent=5 // pred_fallthru
        _
    $region6: #{ghost_c3_fwd.6} parent=1 // loop_footer
      %s19 = sadd.s32 1, %s15
    $region7: #{ghost_c3_fwd.6} parent=1 // loop_footer_branch
      %14 = sbr.rel target = $region3
    $region8: #{ghost_c3_fwd.6} parent=1 // loop_exit
      _
    %1095 = vsyncpa [#allocation4], 1
    %s1096 = scalar_lea.sflag [#allocation4], 1
    %1097 = vsyncpa %s1096, 1
    %1098 = vsyncpa [#allocation6], 1
    %1099 = vsyncpa [#allocation9], 1

</llo_original>
